<compile_context>
chip_gen: v7x
topology: tpu7x:2x2x1
jax: 0.10.0
libtpu: 0.0.40
codegen_flags: <defaults>
</compile_context>

<pallas_src>
import functools

import jax
import jax.numpy as jnp
from jax import lax
from jax.experimental import pallas as pl
from jax.experimental.pallas import tpu as pltpu

VOCAB_SIZE = 500
EMBED_DIM = 128
HIDDEN_DIM = 128
LAYER_DIM = 1


def lstm_dir_kernel(emb_ref,            # (Tc*B, E)  bf16   chunk of embeddings
                    wih_ref,            # (E, 4H)    bf16   this direction
                    whh_ref,            # (H, 4H)    bf16   this direction
                    b_ref,              # (1, 4H)    f32    b_ih + b_hh
                    hseq_ref,           # (Tc*B, H)  f32    per-dir hidden seq
                    hn_ref, hc_ref,     # (B, H)     f32    final h / c
                    gates_scr,          # (Tc*B, 4H) f32    hoisted i2h gates
                    h_scr, c_scr,       # (B, H)     f32    carry across chunks
                    *, Tc, B, H):
    """One (direction, time-chunk) grid step of the bidirectional LSTM.

    grid = (2, n_chunks): axis 0 = direction ("parallel": split across the two
    TensorCores on v7x), axis 1 = time chunk ("arbitrary": h/c carried in VMEM
    scratch, analogous to the flash-attention accumulator pattern).
    """
    d = pl.program_id(0)                      # 0 = forward, 1 = backward
    k = pl.program_id(1)
    nk = pl.num_programs(1)
    f32 = jnp.float32
    bf16 = jnp.bfloat16

    @pl.when(k == 0)
    def _():                                  # fresh state per direction
        h_scr[...] = jnp.zeros_like(h_scr)
        c_scr[...] = jnp.zeros_like(c_scr)

    # Hoisted input-to-hidden projection for the whole chunk (bias folded in):
    # one (Tc*B, E) @ (E, 4H) bf16 MXU matmul per grid step.
    gates_scr[...] = (
        jnp.dot(emb_ref[...], wih_ref[...], preferred_element_type=f32)
        + b_ref[...])

    def step(t, carry):
        h, c = carry
        # Row inside the chunk: forward walks 0..Tc-1, backward walks Tc-1..0.
        rt = t + d * (Tc - 1 - 2 * t)
        off = pl.multiple_of(rt * B, 8)
        g = gates_scr[pl.ds(off, B), :] + jnp.dot(
            h.astype(bf16), whh_ref[...], preferred_element_type=f32)
        i = jax.nn.sigmoid(g[:, 0:H])
        f = jax.nn.sigmoid(g[:, H:2 * H])
        gg = jnp.tanh(g[:, 2 * H:3 * H])
        o = jax.nn.sigmoid(g[:, 3 * H:4 * H])
        c = f * c + i * gg
        h = o * jnp.tanh(c)
        hseq_ref[pl.ds(off, B), :] = h        # lane-dense (B, 128) store
        return h, c

    unroll = True if Tc <= 32 else 8
    h, c = lax.fori_loop(0, Tc, step, (h_scr[...], c_scr[...]), unroll=unroll)

    # Carry the state to the next time chunk.
    h_scr[...] = h
    c_scr[...] = c

    @pl.when(k == nk - 1)
    def _():
        hn_ref[...] = h
        hc_ref[...] = c


def _pick_time_chunk(T, Bp, target_rows=1024):
    """Largest divisor of T with Tc*Bp <= target_rows (bounds resident VMEM)."""
    max_tc = max(1, target_rows // Bp)
    tc = 1
    for cand in range(1, min(T, max_tc) + 1):
        if T % cand == 0:
            tc = cand
    return tc


def _vmem_limit_bytes(Tc, Bp, E, H):
    resident = (
        2 * Tc * Bp * E * 2          # emb chunk (bf16), double-buffered
        + 2 * E * 4 * H * 2          # wih block (bf16)
        + 2 * H * 4 * H * 2          # whh block (bf16)
        + 2 * 4 * H * 4              # bias block (f32)
        + 2 * Tc * Bp * H * 4        # per-direction hidden-seq out block
        + 4 * Bp * H * 4             # hn / hc out blocks
        + Tc * Bp * 4 * H * 4        # gate scratch (f32)
        + 2 * Bp * H * 4)            # h / c carry scratch
    try:
        # ~48 MiB on v7x (64 MiB physical), ~96 MiB on v5e/v6e (128 MiB).
        cap = int(pltpu.get_tpu_info().vmem_capacity_bytes) * 3 // 4
    except Exception:  # interpret mode / older jax: conservative fallback
        cap = 48 * 2**20
    return int(min(cap, max(16 * 2**20, 2 * resident)))


def lstm_encoder_forward(x, params):
    """x: (B, T) int32 token ids. Returns (out (B,T,H), (h_n, h_c) each (1,B,H))."""
    B, T = x.shape
    E, H = EMBED_DIM, HIDDEN_DIM
    Bp = ((B + 7) // 8) * 8                      # pad batch to full sublanes

    # Embedding gather is data-dependent -> plain XLA. Gathering with x.T
    # produces the time-major bf16 layout directly (no transpose/cast passes).
    table = params['embedding'].astype(jnp.bfloat16)
    emb_tm = jnp.take(table, x.T, axis=0)                     # (T, B, E) bf16
    if Bp != B:
        emb_tm = jnp.pad(emb_tm, ((0, 0), (0, Bp - B), (0, 0)))
    emb2d = emb_tm.reshape(T * Bp, E)                         # time-major 2D

    # Per-direction weights stacked on a leading direction axis.
    wih = jnp.stack([params['wih_f'], params['wih_b']]).astype(jnp.bfloat16)
    whh = jnp.stack([params['whh_f'], params['whh_b']]).astype(jnp.bfloat16)
    bias = jnp.stack([params['b_f'], params['b_b']])           # (2, 1, 4H) f32

    Tc = _pick_time_chunk(T, Bp)
    nk = T // Tc

    def chunk_idx(d, k):
        # forward (d=0): chunk k; backward (d=1): chunk nk-1-k (reverse walk).
        return k + d * (nk - 1 - 2 * k)

    kernel = functools.partial(lstm_dir_kernel, Tc=Tc, B=Bp, H=H)
    grid_spec = pltpu.PrefetchScalarGridSpec(
        num_scalar_prefetch=0,
        grid=(2, nk),
        in_specs=[
            pl.BlockSpec((Tc * Bp, E), lambda d, k: (chunk_idx(d, k), 0)),
            pl.BlockSpec((None, E, 4 * H), lambda d, k: (d, 0, 0)),
            pl.BlockSpec((None, H, 4 * H), lambda d, k: (d, 0, 0)),
            pl.BlockSpec((None, 1, 4 * H), lambda d, k: (d, 0, 0)),
        ],
        out_specs=[
            pl.BlockSpec((None, Tc * Bp, H),
                         lambda d, k: (d, chunk_idx(d, k), 0)),
            pl.BlockSpec((None, Bp, H), lambda d, k: (d, 0, 0)),
            pl.BlockSpec((None, Bp, H), lambda d, k: (d, 0, 0)),
        ],
        scratch_shapes=[
            pltpu.VMEM((Tc * Bp, 4 * H), jnp.float32),   # hoisted gates
            pltpu.VMEM((Bp, H), jnp.float32),            # h carry
            pltpu.VMEM((Bp, H), jnp.float32),            # c carry
        ],
    )
    hseq, hn_dir, hc_dir = pl.pallas_call(
        kernel,
        grid_spec=grid_spec,
        out_shape=(
            jax.ShapeDtypeStruct((2, T * Bp, H), jnp.float32),
            jax.ShapeDtypeStruct((2, Bp, H), jnp.float32),
            jax.ShapeDtypeStruct((2, Bp, H), jnp.float32),
        ),
        compiler_params=pltpu.CompilerParams(
            dimension_semantics=("parallel", "arbitrary"),
            vmem_limit_bytes=_vmem_limit_bytes(Tc, Bp, E, H)),
    )(emb2d, wih, whh, bias)

    # Tiny epilogue in XLA (per review): direction mean + final projections.
    out_tm = (hseq[0] + hseq[1]) * 0.5                         # (T*Bp, H)
    out = jnp.transpose(out_tm.reshape(T, Bp, H)[:, :B, :], (1, 0, 2))
    hn_cat = jnp.concatenate([hn_dir[0, :B], hn_dir[1, :B]], axis=-1)
    hc_cat = jnp.concatenate([hc_dir[0, :B], hc_dir[1, :B]], axis=-1)
    h_n = (hn_cat @ params['w_lh'] + params['b_lh'])[None]     # (1, B, H)
    h_c = (hc_cat @ params['w_lc'] + params['b_lc'])[None]
    return out, (h_n, h_c)


def init_params(key, vocab_size=VOCAB_SIZE, embed_dim=EMBED_DIM,
                hidden_dim=HIDDEN_DIM):
    ks = jax.random.split(key, 13)
    k = 1.0 / jnp.sqrt(hidden_dim)

    def u(kk, shape):
        return jax.random.uniform(kk, shape, jnp.float32, -k, k)

    H4 = 4 * hidden_dim
    params = {
        'embedding': jax.random.normal(ks[0], (vocab_size, embed_dim),
                                       jnp.float32) * 0.1,
        # LSTM weights stored pre-transposed so the kernel computes x @ W.
        'wih_f': u(ks[1], (embed_dim, H4)),
        'whh_f': u(ks[2], (hidden_dim, H4)),
        'b_f':   u(ks[3], (1, H4)) + u(ks[4], (1, H4)),   # b_ih + b_hh
        'wih_b': u(ks[5], (embed_dim, H4)),
        'whh_b': u(ks[6], (hidden_dim, H4)),
        'b_b':   u(ks[7], (1, H4)) + u(ks[8], (1, H4)),
        # linear_hidden / linear_content, pre-transposed (2H, H).
        'w_lh': u(ks[9], (2 * hidden_dim, hidden_dim)),
        'b_lh': u(ks[10], (1, hidden_dim)),
        'w_lc': u(ks[11], (2 * hidden_dim, hidden_dim)),
        'b_lc': u(ks[12], (1, hidden_dim)),
        # NOTE: self.fc1 exists in __init__ but is unused in forward -> omitted.
    }
    return params


# ------------------------- pure-JAX reference ------------------------------
# Matches the kernel's mixed precision: bf16 matmul operands, f32 accumulation
# and f32 elementwise / state math.
def reference_forward(x, params):
    H = HIDDEN_DIM
    table = params['embedding'].astype(jnp.bfloat16)
    emb_tm = jnp.take(table, x.T, axis=0)                     # (T, B, E) bf16
    B = x.shape[0]

    def run_dir(seq, wih, whh, b):
        wih = wih.astype(jnp.bfloat16)
        whh = whh.astype(jnp.bfloat16)

        def step(carry, x_t):
            h, c = carry
            g = (jnp.dot(x_t, wih, preferred_element_type=jnp.float32)
                 + jnp.dot(h.astype(jnp.bfloat16), whh,
                           preferred_element_type=jnp.float32)
                 + b)
            i = jax.nn.sigmoid(g[:, :H]); f = jax.nn.sigmoid(g[:, H:2 * H])
            gg = jnp.tanh(g[:, 2 * H:3 * H]); o = jax.nn.sigmoid(g[:, 3 * H:])
            c = f * c + i * gg
            h = o * jnp.tanh(c)
            return (h, c), h

        init = (jnp.zeros((B, H), jnp.float32), jnp.zeros((B, H), jnp.float32))
        (hn, cn), hs = lax.scan(step, init, seq)
        return hs, hn, cn

    hs_f, hn_f, cn_f = run_dir(emb_tm, params['wih_f'], params['whh_f'],
                               params['b_f'])
    hs_b_rev, hn_b, cn_b = run_dir(emb_tm[::-1], params['wih_b'],
                                   params['whh_b'], params['b_b'])
    hs_b = hs_b_rev[::-1]
    out = jnp.transpose((hs_f + hs_b) * 0.5, (1, 0, 2))
    hn = jnp.concatenate([hn_f, hn_b], -1) @ params['w_lh'] + params['b_lh']
    hc = jnp.concatenate([cn_f, cn_b], -1) @ params['w_lc'] + params['b_lc']
    return out, (hn[None], hc[None])


if __name__ == "__main__":
    key = jax.random.PRNGKey(0)
    pkey, xkey = jax.random.split(key)
    params = init_params(pkey)

    B, T = 2, 8
    x = jax.random.randint(xkey, (B, T), 0, VOCAB_SIZE, dtype=jnp.int32)

    out, (h_n, h_c) = jax.block_until_ready(lstm_encoder_forward(x, params))
    ref_out, (ref_hn, ref_hc) = reference_forward(x, params)

    assert out.shape == (B, T, HIDDEN_DIM)
    assert h_n.shape == (LAYER_DIM, B, HIDDEN_DIM)
    assert h_c.shape == (LAYER_DIM, B, HIDDEN_DIM)
    # bf16-operand matmuls (f32 accumulation) in both kernel and reference;
    # only accumulation-order differences remain.
    assert jnp.allclose(out, ref_out, atol=1e-3, rtol=1e-3)
    assert jnp.allclose(h_n, ref_hn, atol=1e-3, rtol=1e-3)
    assert jnp.allclose(h_c, ref_hc, atol=1e-3, rtol=1e-3)

    print("KERNEL_OK")
</pallas_src>

<mosaic_0001>
module attributes {stable_mosaic.version = 11 : i64} {
  func.func @lstm_dir_kernel(%arg0: i32, %arg1: i32, %arg2: memref<64x128xbf16, #tpu.memory_space<vmem>>, %arg3: memref<1x128x512xbf16, #tpu.memory_space<vmem>>, %arg4: memref<1x128x512xbf16, #tpu.memory_space<vmem>>, %arg5: memref<1x1x512xf32, #tpu.memory_space<vmem>>, %arg6: memref<1x64x128xf32, #tpu.memory_space<vmem>>, %arg7: memref<1x8x128xf32, #tpu.memory_space<vmem>>, %arg8: memref<1x8x128xf32, #tpu.memory_space<vmem>>, %arg9: memref<64x512xf32, #tpu.memory_space<vmem>>, %arg10: memref<8x128xf32, #tpu.memory_space<vmem>>, %arg11: memref<8x128xf32, #tpu.memory_space<vmem>>) attributes {dimension_semantics = [#tpu.dimension_semantics<parallel>, #tpu.dimension_semantics<arbitrary>], iteration_bounds = array<i64: 2, 1>, scalar_prefetch = 0 : i64, scratch_operands = 3 : i64, tpu.core_type = #tpu.core_type<tc>, window_params = [{transform_indices = @transform_0, window_bounds = array<i64: 64, 128>}, {transform_indices = @transform_1, window_bounds = array<i64: 1, 128, 512>}, {transform_indices = @transform_2, window_bounds = array<i64: 1, 128, 512>}, {transform_indices = @transform_3, window_bounds = array<i64: 1, 1, 512>}, {transform_indices = @transform_4, window_bounds = array<i64: 1, 64, 128>}, {transform_indices = @transform_5, window_bounds = array<i64: 1, 8, 128>}, {transform_indices = @transform_6, window_bounds = array<i64: 1, 8, 128>}]} {
    %c0_i32 = arith.constant 0 : i32
    %0 = arith.cmpi eq, %arg1, %c0_i32 : i32
    %1 = arith.extui %0 : i1 to i32
    %c0_i32_0 = arith.constant 0 : i32
    %2 = arith.cmpi ne, %1, %c0_i32_0 : i32
    scf.if %2 {
      %cst_125 = arith.constant 0.000000e+00 : f32
      %355 = vector.broadcast %cst_125 : f32 to vector<8x128xf32>
      %c0_126 = arith.constant 0 : index
      %c0_127 = arith.constant 0 : index
      %356 = vector.load %arg10[%c0_126, %c0_127] : memref<8x128xf32, #tpu.memory_space<vmem>>, vector<8x128xf32>
      tpu.vector_store %arg10[%c0_126, %c0_127], %355 {strides = array<i32>} : memref<8x128xf32, #tpu.memory_space<vmem>>, vector<8x128xf32>,
      %cst_128 = arith.constant 0.000000e+00 : f32
      %357 = vector.broadcast %cst_128 : f32 to vector<8x128xf32>
      %c0_129 = arith.constant 0 : index
      %c0_130 = arith.constant 0 : index
      %358 = vector.load %arg11[%c0_129, %c0_130] : memref<8x128xf32, #tpu.memory_space<vmem>>, vector<8x128xf32>
      tpu.vector_store %arg11[%c0_129, %c0_130], %357 {strides = array<i32>} : memref<8x128xf32, #tpu.memory_space<vmem>>, vector<8x128xf32>,
    } else {
    }
    %c0 = arith.constant 0 : index
    %c0_1 = arith.constant 0 : index
    %3 = vector.load %arg2[%c0, %c0_1] : memref<64x128xbf16, #tpu.memory_space<vmem>>, vector<64x128xbf16>
    %c0_2 = arith.constant 0 : index
    %c0_3 = arith.constant 0 : index
    %c0_4 = arith.constant 0 : index
    %4 = vector.load %arg3[%c0_2, %c0_3, %c0_4] : memref<1x128x512xbf16, #tpu.memory_space<vmem>>, vector<1x128x512xbf16>
    %5 = vector.shape_cast %4 : vector<1x128x512xbf16> to vector<128x512xbf16>
    %cst = arith.constant dense<0.000000e+00> : vector<64x512xf32>
    %6 = tpu.matmul %3, %5, %cst {dimension_numbers = #tpu.dot_dimension_numbers<[1], [0], [0], [1], [0, 0, 1, 1], [], []>} : vector<64x128xbf16>, vector<128x512xbf16>, vector<64x512xf32> -> vector<64x512xf32>
    %c0_5 = arith.constant 0 : index
    %c0_6 = arith.constant 0 : index
    %c0_7 = arith.constant 0 : index
    %7 = vector.load %arg5[%c0_5, %c0_6, %c0_7] : memref<1x1x512xf32, #tpu.memory_space<vmem>>, vector<1x1x512xf32>
    %8 = vector.shape_cast %7 : vector<1x1x512xf32> to vector<1x512xf32>
    %9 = vector.broadcast %8 : vector<1x512xf32> to vector<64x512xf32>
    %10 = arith.addf %6, %9 : vector<64x512xf32>
    %c0_8 = arith.constant 0 : index
    %c0_9 = arith.constant 0 : index
    %11 = vector.load %arg9[%c0_8, %c0_9] : memref<64x512xf32, #tpu.memory_space<vmem>>, vector<64x512xf32>
    tpu.vector_store %arg9[%c0_8, %c0_9], %10 {strides = array<i32>} : memref<64x512xf32, #tpu.memory_space<vmem>>, vector<64x512xf32>,
    %c0_10 = arith.constant 0 : index
    %c0_11 = arith.constant 0 : index
    %12 = vector.load %arg10[%c0_10, %c0_11] : memref<8x128xf32, #tpu.memory_space<vmem>>, vector<8x128xf32>
    %c0_12 = arith.constant 0 : index
    %c0_13 = arith.constant 0 : index
    %13 = vector.load %arg11[%c0_12, %c0_13] : memref<8x128xf32, #tpu.memory_space<vmem>>, vector<8x128xf32>
    %c0_i32_14 = arith.constant 0 : i32
    %c2_i32 = arith.constant 2 : i32
    %14 = arith.muli %c2_i32, %c0_i32_14 : i32
    %c7_i32 = arith.constant 7 : i32
    %15 = arith.subi %c7_i32, %14 : i32
    %16 = arith.muli %arg0, %15 : i32
    %17 = arith.addi %c0_i32_14, %16 : i32
    %c8_i32 = arith.constant 8 : i32
    %18 = arith.muli %17, %c8_i32 : i32
    %19 = tpu.assume_multiple %18, 8 : i32
    %20 = arith.index_cast %19 : i32 to index
    %c0_15 = arith.constant 0 : index
    %21 = vector.load %arg9[%20, %c0_15] : memref<64x512xf32, #tpu.memory_space<vmem>>, vector<8x512xf32>
    %22 = arith.truncf %12 : vector<8x128xf32> to vector<8x128xbf16>
    %c0_16 = arith.constant 0 : index
    %c0_17 = arith.constant 0 : index
    %c0_18 = arith.constant 0 : index
    %23 = vector.load %arg4[%c0_16, %c0_17, %c0_18] : memref<1x128x512xbf16, #tpu.memory_space<vmem>>, vector<1x128x512xbf16>
    %24 = vector.shape_cast %23 : vector<1x128x512xbf16> to vector<128x512xbf16>
    %cst_19 = arith.constant dense<0.000000e+00> : vector<8x512xf32>
    %25 = tpu.matmul %22, %24, %cst_19 {dimension_numbers = #tpu.dot_dimension_numbers<[1], [0], [0], [1], [0, 0, 1, 1], [], []>} : vector<8x128xbf16>, vector<128x512xbf16>, vector<8x512xf32> -> vector<8x512xf32>
    %26 = arith.addf %21, %25 : vector<8x512xf32>
    %27 = vector.extract_strided_slice %26 {offsets = [0, 0], sizes = [8, 128], strides = [1, 1]} : vector<8x512xf32> to vector<8x128xf32>
    %28 = arith.negf %27 : vector<8x128xf32>
    %29 = math.exp %28 : vector<8x128xf32>
    %cst_20 = arith.constant 1.000000e+00 : f32
    %30 = vector.broadcast %cst_20 : f32 to vector<8x128xf32>
    %31 = arith.addf %30, %29 : vector<8x128xf32>
    %32 = arith.divf %30, %31 : vector<8x128xf32>
    %33 = vector.extract_strided_slice %26 {offsets = [0, 128], sizes = [8, 128], strides = [1, 1]} : vector<8x512xf32> to vector<8x128xf32>
    %34 = arith.negf %33 : vector<8x128xf32>
    %35 = math.exp %34 : vector<8x128xf32>
    %cst_21 = arith.constant 1.000000e+00 : f32
    %36 = vector.broadcast %cst_21 : f32 to vector<8x128xf32>
    %37 = arith.addf %36, %35 : vector<8x128xf32>
    %38 = arith.divf %36, %37 : vector<8x128xf32>
    %39 = vector.extract_strided_slice %26 {offsets = [0, 256], sizes = [8, 128], strides = [1, 1]} : vector<8x512xf32> to vector<8x128xf32>
    %40 = math.tanh %39 : vector<8x128xf32>
    %41 = vector.extract_strided_slice %26 {offsets = [0, 384], sizes = [8, 128], strides = [1, 1]} : vector<8x512xf32> to vector<8x128xf32>
    %42 = arith.negf %41 : vector<8x128xf32>
    %43 = math.exp %42 : vector<8x128xf32>
    %cst_22 = arith.constant 1.000000e+00 : f32
    %44 = vector.broadcast %cst_22 : f32 to vector<8x128xf32>
    %45 = arith.addf %44, %43 : vector<8x128xf32>
    %46 = arith.divf %44, %45 : vector<8x128xf32>
    %47 = arith.mulf %38, %13 : vector<8x128xf32>
    %48 = arith.mulf %32, %40 : vector<8x128xf32>
    %49 = arith.addf %47, %48 : vector<8x128xf32>
    %50 = math.tanh %49 : vector<8x128xf32>
    %51 = arith.mulf %46, %50 : vector<8x128xf32>
    %c0_23 = arith.constant 0 : index
    %52 = arith.index_cast %19 : i32 to index
    %c0_24 = arith.constant 0 : index
    %53 = vector.load %arg6[%c0_23, %52, %c0_24] : memref<1x64x128xf32, #tpu.memory_space<vmem>>, vector<1x8x128xf32>
    %54 = vector.shape_cast %53 : vector<1x8x128xf32> to vector<8x128xf32>
    %55 = vector.shape_cast %51 : vector<8x128xf32> to vector<1x8x128xf32>
    tpu.vector_store %arg6[%c0_23, %52, %c0_24], %55 {strides = array<i32>} : memref<1x64x128xf32, #tpu.memory_space<vmem>>, vector<1x8x128xf32>,
    %c1_i32 = arith.constant 1 : i32
    %c2_i32_25 = arith.constant 2 : i32
    %56 = arith.muli %c2_i32_25, %c1_i32 : i32
    %c7_i32_26 = arith.constant 7 : i32
    %57 = arith.subi %c7_i32_26, %56 : i32
    %58 = arith.muli %arg0, %57 : i32
    %59 = arith.addi %c1_i32, %58 : i32
    %c8_i32_27 = arith.constant 8 : i32
    %60 = arith.muli %59, %c8_i32_27 : i32
    %61 = tpu.assume_multiple %60, 8 : i32
    %62 = arith.index_cast %61 : i32 to index
    %c0_28 = arith.constant 0 : index
    %63 = vector.load %arg9[%62, %c0_28] : memref<64x512xf32, #tpu.memory_space<vmem>>, vector<8x512xf32>
    %64 = arith.truncf %51 : vector<8x128xf32> to vector<8x128xbf16>
    %c0_29 = arith.constant 0 : index
    %c0_30 = arith.constant 0 : index
    %c0_31 = arith.constant 0 : index
    %65 = vector.load %arg4[%c0_29, %c0_30, %c0_31] : memref<1x128x512xbf16, #tpu.memory_space<vmem>>, vector<1x128x512xbf16>
    %66 = vector.shape_cast %65 : vector<1x128x512xbf16> to vector<128x512xbf16>
    %cst_32 = arith.constant dense<0.000000e+00> : vector<8x512xf32>
    %67 = tpu.matmul %64, %66, %cst_32 {dimension_numbers = #tpu.dot_dimension_numbers<[1], [0], [0], [1], [0, 0, 1, 1], [], []>} : vector<8x128xbf16>, vector<128x512xbf16>, vector<8x512xf32> -> vector<8x512xf32>
    %68 = arith.addf %63, %67 : vector<8x512xf32>
    %69 = vector.extract_strided_slice %68 {offsets = [0, 0], sizes = [8, 128], strides = [1, 1]} : vector<8x512xf32> to vector<8x128xf32>
    %70 = arith.negf %69 : vector<8x128xf32>
    %71 = math.exp %70 : vector<8x128xf32>
    %cst_33 = arith.constant 1.000000e+00 : f32
    %72 = vector.broadcast %cst_33 : f32 to vector<8x128xf32>
    %73 = arith.addf %72, %71 : vector<8x128xf32>
    %74 = arith.divf %72, %73 : vector<8x128xf32>
    %75 = vector.extract_strided_slice %68 {offsets = [0, 128], sizes = [8, 128], strides = [1, 1]} : vector<8x512xf32> to vector<8x128xf32>
    %76 = arith.negf %75 : vector<8x128xf32>
    %77 = math.exp %76 : vector<8x128xf32>
    %cst_34 = arith.constant 1.000000e+00 : f32
    %78 = vector.broadcast %cst_34 : f32 to vector<8x128xf32>
    %79 = arith.addf %78, %77 : vector<8x128xf32>
    %80 = arith.divf %78, %79 : vector<8x128xf32>
    %81 = vector.extract_strided_slice %68 {offsets = [0, 256], sizes = [8, 128], strides = [1, 1]} : vector<8x512xf32> to vector<8x128xf32>
    %82 = math.tanh %81 : vector<8x128xf32>
    %83 = vector.extract_strided_slice %68 {offsets = [0, 384], sizes = [8, 128], strides = [1, 1]} : vector<8x512xf32> to vector<8x128xf32>
    %84 = arith.negf %83 : vector<8x128xf32>
    %85 = math.exp %84 : vector<8x128xf32>
    %cst_35 = arith.constant 1.000000e+00 : f32
    %86 = vector.broadcast %cst_35 : f32 to vector<8x128xf32>
    %87 = arith.addf %86, %85 : vector<8x128xf32>
    %88 = arith.divf %86, %87 : vector<8x128xf32>
    %89 = arith.mulf %80, %49 : vector<8x128xf32>
    %90 = arith.mulf %74, %82 : vector<8x128xf32>
    %91 = arith.addf %89, %90 : vector<8x128xf32>
    %92 = math.tanh %91 : vector<8x128xf32>
    %93 = arith.mulf %88, %92 : vector<8x128xf32>
    %c0_36 = arith.constant 0 : index
    %94 = arith.index_cast %61 : i32 to index
    %c0_37 = arith.constant 0 : index
    %95 = vector.load %arg6[%c0_36, %94, %c0_37] : memref<1x64x128xf32, #tpu.memory_space<vmem>>, vector<1x8x128xf32>
    %96 = vector.shape_cast %95 : vector<1x8x128xf32> to vector<8x128xf32>
    %97 = vector.shape_cast %93 : vector<8x128xf32> to vector<1x8x128xf32>
    tpu.vector_store %arg6[%c0_36, %94, %c0_37], %97 {strides = array<i32>} : memref<1x64x128xf32, #tpu.memory_space<vmem>>, vector<1x8x128xf32>,
    %c2_i32_38 = arith.constant 2 : i32
    %c2_i32_39 = arith.constant 2 : i32
    %98 = arith.muli %c2_i32_39, %c2_i32_38 : i32
    %c7_i32_40 = arith.constant 7 : i32
    %99 = arith.subi %c7_i32_40, %98 : i32
    %100 = arith.muli %arg0, %99 : i32
    %101 = arith.addi %c2_i32_38, %100 : i32
    %c8_i32_41 = arith.constant 8 : i32
    %102 = arith.muli %101, %c8_i32_41 : i32
    %103 = tpu.assume_multiple %102, 8 : i32
    %104 = arith.index_cast %103 : i32 to index
    %c0_42 = arith.constant 0 : index
    %105 = vector.load %arg9[%104, %c0_42] : memref<64x512xf32, #tpu.memory_space<vmem>>, vector<8x512xf32>
    %106 = arith.truncf %93 : vector<8x128xf32> to vector<8x128xbf16>
    %c0_43 = arith.constant 0 : index
    %c0_44 = arith.constant 0 : index
    %c0_45 = arith.constant 0 : index
    %107 = vector.load %arg4[%c0_43, %c0_44, %c0_45] : memref<1x128x512xbf16, #tpu.memory_space<vmem>>, vector<1x128x512xbf16>
    %108 = vector.shape_cast %107 : vector<1x128x512xbf16> to vector<128x512xbf16>
    %cst_46 = arith.constant dense<0.000000e+00> : vector<8x512xf32>
    %109 = tpu.matmul %106, %108, %cst_46 {dimension_numbers = #tpu.dot_dimension_numbers<[1], [0], [0], [1], [0, 0, 1, 1], [], []>} : vector<8x128xbf16>, vector<128x512xbf16>, vector<8x512xf32> -> vector<8x512xf32>
    %110 = arith.addf %105, %109 : vector<8x512xf32>
    %111 = vector.extract_strided_slice %110 {offsets = [0, 0], sizes = [8, 128], strides = [1, 1]} : vector<8x512xf32> to vector<8x128xf32>
    %112 = arith.negf %111 : vector<8x128xf32>
    %113 = math.exp %112 : vector<8x128xf32>
    %cst_47 = arith.constant 1.000000e+00 : f32
    %114 = vector.broadcast %cst_47 : f32 to vector<8x128xf32>
    %115 = arith.addf %114, %113 : vector<8x128xf32>
    %116 = arith.divf %114, %115 : vector<8x128xf32>
    %117 = vector.extract_strided_slice %110 {offsets = [0, 128], sizes = [8, 128], strides = [1, 1]} : vector<8x512xf32> to vector<8x128xf32>
    %118 = arith.negf %117 : vector<8x128xf32>
    %119 = math.exp %118 : vector<8x128xf32>
    %cst_48 = arith.constant 1.000000e+00 : f32
    %120 = vector.broadcast %cst_48 : f32 to vector<8x128xf32>
    %121 = arith.addf %120, %119 : vector<8x128xf32>
    %122 = arith.divf %120, %121 : vector<8x128xf32>
    %123 = vector.extract_strided_slice %110 {offsets = [0, 256], sizes = [8, 128], strides = [1, 1]} : vector<8x512xf32> to vector<8x128xf32>
    %124 = math.tanh %123 : vector<8x128xf32>
    %125 = vector.extract_strided_slice %110 {offsets = [0, 384], sizes = [8, 128], strides = [1, 1]} : vector<8x512xf32> to vector<8x128xf32>
    %126 = arith.negf %125 : vector<8x128xf32>
    %127 = math.exp %126 : vector<8x128xf32>
    %cst_49 = arith.constant 1.000000e+00 : f32
    %128 = vector.broadcast %cst_49 : f32 to vector<8x128xf32>
    %129 = arith.addf %128, %127 : vector<8x128xf32>
    %130 = arith.divf %128, %129 : vector<8x128xf32>
    %131 = arith.mulf %122, %91 : vector<8x128xf32>
    %132 = arith.mulf %116, %124 : vector<8x128xf32>
    %133 = arith.addf %131, %132 : vector<8x128xf32>
    %134 = math.tanh %133 : vector<8x128xf32>
    %135 = arith.mulf %130, %134 : vector<8x128xf32>
    %c0_50 = arith.constant 0 : index
    %136 = arith.index_cast %103 : i32 to index
    %c0_51 = arith.constant 0 : index
    %137 = vector.load %arg6[%c0_50, %136, %c0_51] : memref<1x64x128xf32, #tpu.memory_space<vmem>>, vector<1x8x128xf32>
    %138 = vector.shape_cast %137 : vector<1x8x128xf32> to vector<8x128xf32>
    %139 = vector.shape_cast %135 : vector<8x128xf32> to vector<1x8x128xf32>
    tpu.vector_store %arg6[%c0_50, %136, %c0_51], %139 {strides = array<i32>} : memref<1x64x128xf32, #tpu.memory_space<vmem>>, vector<1x8x128xf32>,
    %c3_i32 = arith.constant 3 : i32
    %c2_i32_52 = arith.constant 2 : i32
    %140 = arith.muli %c2_i32_52, %c3_i32 : i32
    %c7_i32_53 = arith.constant 7 : i32
    %141 = arith.subi %c7_i32_53, %140 : i32
    %142 = arith.muli %arg0, %141 : i32
    %143 = arith.addi %c3_i32, %142 : i32
    %c8_i32_54 = arith.constant 8 : i32
    %144 = arith.muli %143, %c8_i32_54 : i32
    %145 = tpu.assume_multiple %144, 8 : i32
    %146 = arith.index_cast %145 : i32 to index
    %c0_55 = arith.constant 0 : index
    %147 = vector.load %arg9[%146, %c0_55] : memref<64x512xf32, #tpu.memory_space<vmem>>, vector<8x512xf32>
    %148 = arith.truncf %135 : vector<8x128xf32> to vector<8x128xbf16>
    %c0_56 = arith.constant 0 : index
    %c0_57 = arith.constant 0 : index
    %c0_58 = arith.constant 0 : index
    %149 = vector.load %arg4[%c0_56, %c0_57, %c0_58] : memref<1x128x512xbf16, #tpu.memory_space<vmem>>, vector<1x128x512xbf16>
    %150 = vector.shape_cast %149 : vector<1x128x512xbf16> to vector<128x512xbf16>
    %cst_59 = arith.constant dense<0.000000e+00> : vector<8x512xf32>
    %151 = tpu.matmul %148, %150, %cst_59 {dimension_numbers = #tpu.dot_dimension_numbers<[1], [0], [0], [1], [0, 0, 1, 1], [], []>} : vector<8x128xbf16>, vector<128x512xbf16>, vector<8x512xf32> -> vector<8x512xf32>
    %152 = arith.addf %147, %151 : vector<8x512xf32>
    %153 = vector.extract_strided_slice %152 {offsets = [0, 0], sizes = [8, 128], strides = [1, 1]} : vector<8x512xf32> to vector<8x128xf32>
    %154 = arith.negf %153 : vector<8x128xf32>
    %155 = math.exp %154 : vector<8x128xf32>
    %cst_60 = arith.constant 1.000000e+00 : f32
    %156 = vector.broadcast %cst_60 : f32 to vector<8x128xf32>
    %157 = arith.addf %156, %155 : vector<8x128xf32>
    %158 = arith.divf %156, %157 : vector<8x128xf32>
    %159 = vector.extract_strided_slice %152 {offsets = [0, 128], sizes = [8, 128], strides = [1, 1]} : vector<8x512xf32> to vector<8x128xf32>
    %160 = arith.negf %159 : vector<8x128xf32>
    %161 = math.exp %160 : vector<8x128xf32>
    %cst_61 = arith.constant 1.000000e+00 : f32
    %162 = vector.broadcast %cst_61 : f32 to vector<8x128xf32>
    %163 = arith.addf %162, %161 : vector<8x128xf32>
    %164 = arith.divf %162, %163 : vector<8x128xf32>
    %165 = vector.extract_strided_slice %152 {offsets = [0, 256], sizes = [8, 128], strides = [1, 1]} : vector<8x512xf32> to vector<8x128xf32>
    %166 = math.tanh %165 : vector<8x128xf32>
    %167 = vector.extract_strided_slice %152 {offsets = [0, 384], sizes = [8, 128], strides = [1, 1]} : vector<8x512xf32> to vector<8x128xf32>
    %168 = arith.negf %167 : vector<8x128xf32>
    %169 = math.exp %168 : vector<8x128xf32>
    %cst_62 = arith.constant 1.000000e+00 : f32
    %170 = vector.broadcast %cst_62 : f32 to vector<8x128xf32>
    %171 = arith.addf %170, %169 : vector<8x128xf32>
    %172 = arith.divf %170, %171 : vector<8x128xf32>
    %173 = arith.mulf %164, %133 : vector<8x128xf32>
    %174 = arith.mulf %158, %166 : vector<8x128xf32>
    %175 = arith.addf %173, %174 : vector<8x128xf32>
    %176 = math.tanh %175 : vector<8x128xf32>
    %177 = arith.mulf %172, %176 : vector<8x128xf32>
    %c0_63 = arith.constant 0 : index
    %178 = arith.index_cast %145 : i32 to index
    %c0_64 = arith.constant 0 : index
    %179 = vector.load %arg6[%c0_63, %178, %c0_64] : memref<1x64x128xf32, #tpu.memory_space<vmem>>, vector<1x8x128xf32>
    %180 = vector.shape_cast %179 : vector<1x8x128xf32> to vector<8x128xf32>
    %181 = vector.shape_cast %177 : vector<8x128xf32> to vector<1x8x128xf32>
    tpu.vector_store %arg6[%c0_63, %178, %c0_64], %181 {strides = array<i32>} : memref<1x64x128xf32, #tpu.memory_space<vmem>>, vector<1x8x128xf32>,
    %c4_i32 = arith.constant 4 : i32
    %c2_i32_65 = arith.constant 2 : i32
    %182 = arith.muli %c2_i32_65, %c4_i32 : i32
    %c7_i32_66 = arith.constant 7 : i32
    %183 = arith.subi %c7_i32_66, %182 : i32
    %184 = arith.muli %arg0, %183 : i32
    %185 = arith.addi %c4_i32, %184 : i32
    %c8_i32_67 = arith.constant 8 : i32
    %186 = arith.muli %185, %c8_i32_67 : i32
    %187 = tpu.assume_multiple %186, 8 : i32
    %188 = arith.index_cast %187 : i32 to index
    %c0_68 = arith.constant 0 : index
    %189 = vector.load %arg9[%188, %c0_68] : memref<64x512xf32, #tpu.memory_space<vmem>>, vector<8x512xf32>
    %190 = arith.truncf %177 : vector<8x128xf32> to vector<8x128xbf16>
    %c0_69 = arith.constant 0 : index
    %c0_70 = arith.constant 0 : index
    %c0_71 = arith.constant 0 : index
    %191 = vector.load %arg4[%c0_69, %c0_70, %c0_71] : memref<1x128x512xbf16, #tpu.memory_space<vmem>>, vector<1x128x512xbf16>
    %192 = vector.shape_cast %191 : vector<1x128x512xbf16> to vector<128x512xbf16>
    %cst_72 = arith.constant dense<0.000000e+00> : vector<8x512xf32>
    %193 = tpu.matmul %190, %192, %cst_72 {dimension_numbers = #tpu.dot_dimension_numbers<[1], [0], [0], [1], [0, 0, 1, 1], [], []>} : vector<8x128xbf16>, vector<128x512xbf16>, vector<8x512xf32> -> vector<8x512xf32>
    %194 = arith.addf %189, %193 : vector<8x512xf32>
    %195 = vector.extract_strided_slice %194 {offsets = [0, 0], sizes = [8, 128], strides = [1, 1]} : vector<8x512xf32> to vector<8x128xf32>
    %196 = arith.negf %195 : vector<8x128xf32>
    %197 = math.exp %196 : vector<8x128xf32>
    %cst_73 = arith.constant 1.000000e+00 : f32
    %198 = vector.broadcast %cst_73 : f32 to vector<8x128xf32>
    %199 = arith.addf %198, %197 : vector<8x128xf32>
    %200 = arith.divf %198, %199 : vector<8x128xf32>
    %201 = vector.extract_strided_slice %194 {offsets = [0, 128], sizes = [8, 128], strides = [1, 1]} : vector<8x512xf32> to vector<8x128xf32>
    %202 = arith.negf %201 : vector<8x128xf32>
    %203 = math.exp %202 : vector<8x128xf32>
    %cst_74 = arith.constant 1.000000e+00 : f32
    %204 = vector.broadcast %cst_74 : f32 to vector<8x128xf32>
    %205 = arith.addf %204, %203 : vector<8x128xf32>
    %206 = arith.divf %204, %205 : vector<8x128xf32>
    %207 = vector.extract_strided_slice %194 {offsets = [0, 256], sizes = [8, 128], strides = [1, 1]} : vector<8x512xf32> to vector<8x128xf32>
    %208 = math.tanh %207 : vector<8x128xf32>
    %209 = vector.extract_strided_slice %194 {offsets = [0, 384], sizes = [8, 128], strides = [1, 1]} : vector<8x512xf32> to vector<8x128xf32>
    %210 = arith.negf %209 : vector<8x128xf32>
    %211 = math.exp %210 : vector<8x128xf32>
    %cst_75 = arith.constant 1.000000e+00 : f32
    %212 = vector.broadcast %cst_75 : f32 to vector<8x128xf32>
    %213 = arith.addf %212, %211 : vector<8x128xf32>
    %214 = arith.divf %212, %213 : vector<8x128xf32>
    %215 = arith.mulf %206, %175 : vector<8x128xf32>
    %216 = arith.mulf %200, %208 : vector<8x128xf32>
    %217 = arith.addf %215, %216 : vector<8x128xf32>
    %218 = math.tanh %217 : vector<8x128xf32>
    %219 = arith.mulf %214, %218 : vector<8x128xf32>
    %c0_76 = arith.constant 0 : index
    %220 = arith.index_cast %187 : i32 to index
    %c0_77 = arith.constant 0 : index
    %221 = vector.load %arg6[%c0_76, %220, %c0_77] : memref<1x64x128xf32, #tpu.memory_space<vmem>>, vector<1x8x128xf32>
    %222 = vector.shape_cast %221 : vector<1x8x128xf32> to vector<8x128xf32>
    %223 = vector.shape_cast %219 : vector<8x128xf32> to vector<1x8x128xf32>
    tpu.vector_store %arg6[%c0_76, %220, %c0_77], %223 {strides = array<i32>} : memref<1x64x128xf32, #tpu.memory_space<vmem>>, vector<1x8x128xf32>,
    %c5_i32 = arith.constant 5 : i32
    %c2_i32_78 = arith.constant 2 : i32
    %224 = arith.muli %c2_i32_78, %c5_i32 : i32
    %c7_i32_79 = arith.constant 7 : i32
    %225 = arith.subi %c7_i32_79, %224 : i32
    %226 = arith.muli %arg0, %225 : i32
    %227 = arith.addi %c5_i32, %226 : i32
    %c8_i32_80 = arith.constant 8 : i32
    %228 = arith.muli %227, %c8_i32_80 : i32
    %229 = tpu.assume_multiple %228, 8 : i32
    %230 = arith.index_cast %229 : i32 to index
    %c0_81 = arith.constant 0 : index
    %231 = vector.load %arg9[%230, %c0_81] : memref<64x512xf32, #tpu.memory_space<vmem>>, vector<8x512xf32>
    %232 = arith.truncf %219 : vector<8x128xf32> to vector<8x128xbf16>
    %c0_82 = arith.constant 0 : index
    %c0_83 = arith.constant 0 : index
    %c0_84 = arith.constant 0 : index
    %233 = vector.load %arg4[%c0_82, %c0_83, %c0_84] : memref<1x128x512xbf16, #tpu.memory_space<vmem>>, vector<1x128x512xbf16>
    %234 = vector.shape_cast %233 : vector<1x128x512xbf16> to vector<128x512xbf16>
    %cst_85 = arith.constant dense<0.000000e+00> : vector<8x512xf32>
    %235 = tpu.matmul %232, %234, %cst_85 {dimension_numbers = #tpu.dot_dimension_numbers<[1], [0], [0], [1], [0, 0, 1, 1], [], []>} : vector<8x128xbf16>, vector<128x512xbf16>, vector<8x512xf32> -> vector<8x512xf32>
    %236 = arith.addf %231, %235 : vector<8x512xf32>
    %237 = vector.extract_strided_slice %236 {offsets = [0, 0], sizes = [8, 128], strides = [1, 1]} : vector<8x512xf32> to vector<8x128xf32>
    %238 = arith.negf %237 : vector<8x128xf32>
    %239 = math.exp %238 : vector<8x128xf32>
    %cst_86 = arith.constant 1.000000e+00 : f32
    %240 = vector.broadcast %cst_86 : f32 to vector<8x128xf32>
    %241 = arith.addf %240, %239 : vector<8x128xf32>
    %242 = arith.divf %240, %241 : vector<8x128xf32>
    %243 = vector.extract_strided_slice %236 {offsets = [0, 128], sizes = [8, 128], strides = [1, 1]} : vector<8x512xf32> to vector<8x128xf32>
    %244 = arith.negf %243 : vector<8x128xf32>
    %245 = math.exp %244 : vector<8x128xf32>
    %cst_87 = arith.constant 1.000000e+00 : f32
    %246 = vector.broadcast %cst_87 : f32 to vector<8x128xf32>
    %247 = arith.addf %246, %245 : vector<8x128xf32>
    %248 = arith.divf %246, %247 : vector<8x128xf32>
    %249 = vector.extract_strided_slice %236 {offsets = [0, 256], sizes = [8, 128], strides = [1, 1]} : vector<8x512xf32> to vector<8x128xf32>
    %250 = math.tanh %249 : vector<8x128xf32>
    %251 = vector.extract_strided_slice %236 {offsets = [0, 384], sizes = [8, 128], strides = [1, 1]} : vector<8x512xf32> to vector<8x128xf32>
    %252 = arith.negf %251 : vector<8x128xf32>
    %253 = math.exp %252 : vector<8x128xf32>
    %cst_88 = arith.constant 1.000000e+00 : f32
    %254 = vector.broadcast %cst_88 : f32 to vector<8x128xf32>
    %255 = arith.addf %254, %253 : vector<8x128xf32>
    %256 = arith.divf %254, %255 : vector<8x128xf32>
    %257 = arith.mulf %248, %217 : vector<8x128xf32>
    %258 = arith.mulf %242, %250 : vector<8x128xf32>
    %259 = arith.addf %257, %258 : vector<8x128xf32>
    %260 = math.tanh %259 : vector<8x128xf32>
    %261 = arith.mulf %256, %260 : vector<8x128xf32>
    %c0_89 = arith.constant 0 : index
    %262 = arith.index_cast %229 : i32 to index
    %c0_90 = arith.constant 0 : index
    %263 = vector.load %arg6[%c0_89, %262, %c0_90] : memref<1x64x128xf32, #tpu.memory_space<vmem>>, vector<1x8x128xf32>
    %264 = vector.shape_cast %263 : vector<1x8x128xf32> to vector<8x128xf32>
    %265 = vector.shape_cast %261 : vector<8x128xf32> to vector<1x8x128xf32>
    tpu.vector_store %arg6[%c0_89, %262, %c0_90], %265 {strides = array<i32>} : memref<1x64x128xf32, #tpu.memory_space<vmem>>, vector<1x8x128xf32>,
    %c6_i32 = arith.constant 6 : i32
    %c2_i32_91 = arith.constant 2 : i32
    %266 = arith.muli %c2_i32_91, %c6_i32 : i32
    %c7_i32_92 = arith.constant 7 : i32
    %267 = arith.subi %c7_i32_92, %266 : i32
    %268 = arith.muli %arg0, %267 : i32
    %269 = arith.addi %c6_i32, %268 : i32
    %c8_i32_93 = arith.constant 8 : i32
    %270 = arith.muli %269, %c8_i32_93 : i32
    %271 = tpu.assume_multiple %270, 8 : i32
    %272 = arith.index_cast %271 : i32 to index
    %c0_94 = arith.constant 0 : index
    %273 = vector.load %arg9[%272, %c0_94] : memref<64x512xf32, #tpu.memory_space<vmem>>, vector<8x512xf32>
    %274 = arith.truncf %261 : vector<8x128xf32> to vector<8x128xbf16>
    %c0_95 = arith.constant 0 : index
    %c0_96 = arith.constant 0 : index
    %c0_97 = arith.constant 0 : index
    %275 = vector.load %arg4[%c0_95, %c0_96, %c0_97] : memref<1x128x512xbf16, #tpu.memory_space<vmem>>, vector<1x128x512xbf16>
    %276 = vector.shape_cast %275 : vector<1x128x512xbf16> to vector<128x512xbf16>
    %cst_98 = arith.constant dense<0.000000e+00> : vector<8x512xf32>
    %277 = tpu.matmul %274, %276, %cst_98 {dimension_numbers = #tpu.dot_dimension_numbers<[1], [0], [0], [1], [0, 0, 1, 1], [], []>} : vector<8x128xbf16>, vector<128x512xbf16>, vector<8x512xf32> -> vector<8x512xf32>
    %278 = arith.addf %273, %277 : vector<8x512xf32>
    %279 = vector.extract_strided_slice %278 {offsets = [0, 0], sizes = [8, 128], strides = [1, 1]} : vector<8x512xf32> to vector<8x128xf32>
    %280 = arith.negf %279 : vector<8x128xf32>
    %281 = math.exp %280 : vector<8x128xf32>
    %cst_99 = arith.constant 1.000000e+00 : f32
    %282 = vector.broadcast %cst_99 : f32 to vector<8x128xf32>
    %283 = arith.addf %282, %281 : vector<8x128xf32>
    %284 = arith.divf %282, %283 : vector<8x128xf32>
    %285 = vector.extract_strided_slice %278 {offsets = [0, 128], sizes = [8, 128], strides = [1, 1]} : vector<8x512xf32> to vector<8x128xf32>
    %286 = arith.negf %285 : vector<8x128xf32>
    %287 = math.exp %286 : vector<8x128xf32>
    %cst_100 = arith.constant 1.000000e+00 : f32
    %288 = vector.broadcast %cst_100 : f32 to vector<8x128xf32>
    %289 = arith.addf %288, %287 : vector<8x128xf32>
    %290 = arith.divf %288, %289 : vector<8x128xf32>
    %291 = vector.extract_strided_slice %278 {offsets = [0, 256], sizes = [8, 128], strides = [1, 1]} : vector<8x512xf32> to vector<8x128xf32>
    %292 = math.tanh %291 : vector<8x128xf32>
    %293 = vector.extract_strided_slice %278 {offsets = [0, 384], sizes = [8, 128], strides = [1, 1]} : vector<8x512xf32> to vector<8x128xf32>
    %294 = arith.negf %293 : vector<8x128xf32>
    %295 = math.exp %294 : vector<8x128xf32>
    %cst_101 = arith.constant 1.000000e+00 : f32
    %296 = vector.broadcast %cst_101 : f32 to vector<8x128xf32>
    %297 = arith.addf %296, %295 : vector<8x128xf32>
    %298 = arith.divf %296, %297 : vector<8x128xf32>
    %299 = arith.mulf %290, %259 : vector<8x128xf32>
    %300 = arith.mulf %284, %292 : vector<8x128xf32>
    %301 = arith.addf %299, %300 : vector<8x128xf32>
    %302 = math.tanh %301 : vector<8x128xf32>
    %303 = arith.mulf %298, %302 : vector<8x128xf32>
    %c0_102 = arith.constant 0 : index
    %304 = arith.index_cast %271 : i32 to index
    %c0_103 = arith.constant 0 : index
    %305 = vector.load %arg6[%c0_102, %304, %c0_103] : memref<1x64x128xf32, #tpu.memory_space<vmem>>, vector<1x8x128xf32>
    %306 = vector.shape_cast %305 : vector<1x8x128xf32> to vector<8x128xf32>
    %307 = vector.shape_cast %303 : vector<8x128xf32> to vector<1x8x128xf32>
    tpu.vector_store %arg6[%c0_102, %304, %c0_103], %307 {strides = array<i32>} : memref<1x64x128xf32, #tpu.memory_space<vmem>>, vector<1x8x128xf32>,
    %c7_i32_104 = arith.constant 7 : i32
    %c2_i32_105 = arith.constant 2 : i32
    %308 = arith.muli %c2_i32_105, %c7_i32_104 : i32
    %c7_i32_106 = arith.constant 7 : i32
    %309 = arith.subi %c7_i32_106, %308 : i32
    %310 = arith.muli %arg0, %309 : i32
    %311 = arith.addi %c7_i32_104, %310 : i32
    %c8_i32_107 = arith.constant 8 : i32
    %312 = arith.muli %311, %c8_i32_107 : i32
    %313 = tpu.assume_multiple %312, 8 : i32
    %314 = arith.index_cast %313 : i32 to index
    %c0_108 = arith.constant 0 : index
    %315 = vector.load %arg9[%314, %c0_108] : memref<64x512xf32, #tpu.memory_space<vmem>>, vector<8x512xf32>
    %316 = arith.truncf %303 : vector<8x128xf32> to vector<8x128xbf16>
    %c0_109 = arith.constant 0 : index
    %c0_110 = arith.constant 0 : index
    %c0_111 = arith.constant 0 : index
    %317 = vector.load %arg4[%c0_109, %c0_110, %c0_111] : memref<1x128x512xbf16, #tpu.memory_space<vmem>>, vector<1x128x512xbf16>
    %318 = vector.shape_cast %317 : vector<1x128x512xbf16> to vector<128x512xbf16>
    %cst_112 = arith.constant dense<0.000000e+00> : vector<8x512xf32>
    %319 = tpu.matmul %316, %318, %cst_112 {dimension_numbers = #tpu.dot_dimension_numbers<[1], [0], [0], [1], [0, 0, 1, 1], [], []>} : vector<8x128xbf16>, vector<128x512xbf16>, vector<8x512xf32> -> vector<8x512xf32>
    %320 = arith.addf %315, %319 : vector<8x512xf32>
    %321 = vector.extract_strided_slice %320 {offsets = [0, 0], sizes = [8, 128], strides = [1, 1]} : vector<8x512xf32> to vector<8x128xf32>
    %322 = arith.negf %321 : vector<8x128xf32>
    %323 = math.exp %322 : vector<8x128xf32>
    %cst_113 = arith.constant 1.000000e+00 : f32
    %324 = vector.broadcast %cst_113 : f32 to vector<8x128xf32>
    %325 = arith.addf %324, %323 : vector<8x128xf32>
    %326 = arith.divf %324, %325 : vector<8x128xf32>
    %327 = vector.extract_strided_slice %320 {offsets = [0, 128], sizes = [8, 128], strides = [1, 1]} : vector<8x512xf32> to vector<8x128xf32>
    %328 = arith.negf %327 : vector<8x128xf32>
    %329 = math.exp %328 : vector<8x128xf32>
    %cst_114 = arith.constant 1.000000e+00 : f32
    %330 = vector.broadcast %cst_114 : f32 to vector<8x128xf32>
    %331 = arith.addf %330, %329 : vector<8x128xf32>
    %332 = arith.divf %330, %331 : vector<8x128xf32>
    %333 = vector.extract_strided_slice %320 {offsets = [0, 256], sizes = [8, 128], strides = [1, 1]} : vector<8x512xf32> to vector<8x128xf32>
    %334 = math.tanh %333 : vector<8x128xf32>
    %335 = vector.extract_strided_slice %320 {offsets = [0, 384], sizes = [8, 128], strides = [1, 1]} : vector<8x512xf32> to vector<8x128xf32>
    %336 = arith.negf %335 : vector<8x128xf32>
    %337 = math.exp %336 : vector<8x128xf32>
    %cst_115 = arith.constant 1.000000e+00 : f32
    %338 = vector.broadcast %cst_115 : f32 to vector<8x128xf32>
    %339 = arith.addf %338, %337 : vector<8x128xf32>
    %340 = arith.divf %338, %339 : vector<8x128xf32>
    %341 = arith.mulf %332, %301 : vector<8x128xf32>
    %342 = arith.mulf %326, %334 : vector<8x128xf32>
    %343 = arith.addf %341, %342 : vector<8x128xf32>
    %344 = math.tanh %343 : vector<8x128xf32>
    %345 = arith.mulf %340, %344 : vector<8x128xf32>
    %c0_116 = arith.constant 0 : index
    %346 = arith.index_cast %313 : i32 to index
    %c0_117 = arith.constant 0 : index
    %347 = vector.load %arg6[%c0_116, %346, %c0_117] : memref<1x64x128xf32, #tpu.memory_space<vmem>>, vector<1x8x128xf32>
    %348 = vector.shape_cast %347 : vector<1x8x128xf32> to vector<8x128xf32>
    %349 = vector.shape_cast %345 : vector<8x128xf32> to vector<1x8x128xf32>
    tpu.vector_store %arg6[%c0_116, %346, %c0_117], %349 {strides = array<i32>} : memref<1x64x128xf32, #tpu.memory_space<vmem>>, vector<1x8x128xf32>,
    %c8_i32_118 = arith.constant 8 : i32
    %c0_119 = arith.constant 0 : index
    %c0_120 = arith.constant 0 : index
    %350 = vector.load %arg10[%c0_119, %c0_120] : memref<8x128xf32, #tpu.memory_space<vmem>>, vector<8x128xf32>
    tpu.vector_store %arg10[%c0_119, %c0_120], %345 {strides = array<i32>} : memref<8x128xf32, #tpu.memory_space<vmem>>, vector<8x128xf32>,
    %c0_121 = arith.constant 0 : index
    %c0_122 = arith.constant 0 : index
    %351 = vector.load %arg11[%c0_121, %c0_122] : memref<8x128xf32, #tpu.memory_space<vmem>>, vector<8x128xf32>
    tpu.vector_store %arg11[%c0_121, %c0_122], %343 {strides = array<i32>} : memref<8x128xf32, #tpu.memory_space<vmem>>, vector<8x128xf32>,
    %c0_i32_123 = arith.constant 0 : i32
    %352 = arith.cmpi eq, %arg1, %c0_i32_123 : i32
    %353 = arith.extui %352 : i1 to i32
    %c0_i32_124 = arith.constant 0 : i32
    %354 = arith.cmpi ne, %353, %c0_i32_124 : i32
    scf.if %354 {
      %c0_125 = arith.constant 0 : index
      %c0_126 = arith.constant 0 : index
      %c0_127 = arith.constant 0 : index
      %355 = vector.load %arg7[%c0_125, %c0_126, %c0_127] : memref<1x8x128xf32, #tpu.memory_space<vmem>>, vector<1x8x128xf32>
      %356 = vector.shape_cast %355 : vector<1x8x128xf32> to vector<8x128xf32>
      %357 = vector.shape_cast %345 : vector<8x128xf32> to vector<1x8x128xf32>
      tpu.vector_store %arg7[%c0_125, %c0_126, %c0_127], %357 {strides = array<i32>} : memref<1x8x128xf32, #tpu.memory_space<vmem>>, vector<1x8x128xf32>,
      %c0_128 = arith.constant 0 : index
      %c0_129 = arith.constant 0 : index
      %c0_130 = arith.constant 0 : index
      %358 = vector.load %arg8[%c0_128, %c0_129, %c0_130] : memref<1x8x128xf32, #tpu.memory_space<vmem>>, vector<1x8x128xf32>
      %359 = vector.shape_cast %358 : vector<1x8x128xf32> to vector<8x128xf32>
      %360 = vector.shape_cast %343 : vector<8x128xf32> to vector<1x8x128xf32>
      tpu.vector_store %arg8[%c0_128, %c0_129, %c0_130], %360 {strides = array<i32>} : memref<1x8x128xf32, #tpu.memory_space<vmem>>, vector<1x8x128xf32>,
    } else {
    }
    return
  }
  func.func @transform_0(%arg0: i32, %arg1: i32) -> (i32, i32) {
    %c2_i32 = arith.constant 2 : i32
    %0 = arith.muli %c2_i32, %arg1 : i32
    %c0_i32 = arith.constant 0 : i32
    %1 = arith.subi %c0_i32, %0 : i32
    %2 = arith.muli %arg0, %1 : i32
    %3 = arith.addi %arg1, %2 : i32
    %c0_i32_0 = arith.constant 0 : i32
    %c0_i32_1 = arith.constant 0 : i32
    return %3, %c0_i32_0 : i32, i32
  }
  func.func @transform_1(%arg0: i32, %arg1: i32) -> (i32, i32, i32) {
    %c0_i32 = arith.constant 0 : i32
    %c0_i32_0 = arith.constant 0 : i32
    %c0_i32_1 = arith.constant 0 : i32
    return %arg0, %c0_i32, %c0_i32_0 : i32, i32, i32
  }
  func.func @transform_2(%arg0: i32, %arg1: i32) -> (i32, i32, i32) {
    %c0_i32 = arith.constant 0 : i32
    %c0_i32_0 = arith.constant 0 : i32
    %c0_i32_1 = arith.constant 0 : i32
    return %arg0, %c0_i32, %c0_i32_0 : i32, i32, i32
  }
  func.func @transform_3(%arg0: i32, %arg1: i32) -> (i32, i32, i32) {
    %c0_i32 = arith.constant 0 : i32
    %c0_i32_0 = arith.constant 0 : i32
    %c0_i32_1 = arith.constant 0 : i32
    return %arg0, %c0_i32, %c0_i32_0 : i32, i32, i32
  }
  func.func @transform_4(%arg0: i32, %arg1: i32) -> (i32, i32, i32) {
    %c2_i32 = arith.constant 2 : i32
    %0 = arith.muli %c2_i32, %arg1 : i32
    %c0_i32 = arith.constant 0 : i32
    %1 = arith.subi %c0_i32, %0 : i32
    %2 = arith.muli %arg0, %1 : i32
    %3 = arith.addi %arg1, %2 : i32
    %c0_i32_0 = arith.constant 0 : i32
    %c0_i32_1 = arith.constant 0 : i32
    return %arg0, %3, %c0_i32_0 : i32, i32, i32
  }
  func.func @transform_5(%arg0: i32, %arg1: i32) -> (i32, i32, i32) {
    %c0_i32 = arith.constant 0 : i32
    %c0_i32_0 = arith.constant 0 : i32
    %c0_i32_1 = arith.constant 0 : i32
    return %arg0, %c0_i32, %c0_i32_0 : i32, i32, i32
  }
  func.func @transform_6(%arg0: i32, %arg1: i32) -> (i32, i32, i32) {
    %c0_i32 = arith.constant 0 : i32
    %c0_i32_0 = arith.constant 0 : i32
    %c0_i32_1 = arith.constant 0 : i32
    return %arg0, %c0_i32, %c0_i32_0 : i32, i32, i32
  }
}

</mosaic_0001>

<llo_original>
// kernel: tpu_custom_call.1
$region0: #{tpu_custom_call.1}
  #allocation0 [shape = 'u32[]', space=smem, size = 0x4, offset = 0x4, fixed_abs, tag = 'smem constant byte address 0x4 - core index']
  #allocation1 [shape = 'u32[144,128]{1,0:T(1,128)}', space=vmem, size = 0x12000, scoped, tag = 'internal scratch']
  #allocation2 [shape = 'f32[64,512]{1,0:T(8,128)}', space=vmem, size = 0x20000, scoped, tag = 'scratch operand']
  #allocation3 [shape = 'f32[8,128]{1,0:T(8,128)}', space=vmem, size = 0x1000, scoped, tag = 'scratch operand']
  #allocation4 [shape = 'f32[8,128]{1,0:T(8,128)}', space=vmem, size = 0x1000, scoped, tag = 'scratch operand']
  %s0 = inlined_call_operand.hbm [shape: bf16[64,128], index: 0, kind: input, shape index: {}]
  %s1 = inlined_call_operand.hbm [shape: bf16[2,128,512], index: 1, kind: input, shape index: {}]
  %s2 = inlined_call_operand.hbm [shape: bf16[2,128,512], index: 2, kind: input, shape index: {}]
  %s3 = inlined_call_operand.vmem [shape: f32[2,1,512], index: 3, kind: input, shape index: {}]
  %s4 = inlined_call_operand.hbm [shape: f32[2,64,128], index: 4, kind: output, shape index: {0}]
  %s5 = inlined_call_operand.hbm [shape: f32[2,8,128], index: 5, kind: output, shape index: {1}]
  %s6 = inlined_call_operand.hbm [shape: f32[2,8,128], index: 6, kind: output, shape index: {2}]
  %7 = xla_tuple %s4, %s5, %s6
  %s8 = sld [smem:[#allocation0]]
  $region85: #{tpu_custom_call.1} parent=0
    _
  %s10 = ssub.s32 1, %s8
  %s11 = scalar_select 0, %s10, %s8
  $region1: #{tpu_custom_call.1} parent=0
    #allocation5 [shape = 'u8[32768]{0}', space=vmem, size = 0x8000, scoped, tag = 'input window, operand 0']
    #allocation6 [shape = 's32[2]{0}', space=sflag, size = 0x8, scoped, tag = 'scoped memory for tpu_custom_call.1']
    #allocation7 [shape = 's32[2]{0}', space=sflag, size = 0x8, scoped, tag = 'scoped memory for tpu_custom_call.1']
    #allocation8 [shape = 'u8[262144]{0}', space=vmem, size = 0x40000, scoped, tag = 'input window, operand 1']
    #allocation9 [shape = 's32[2]{0}', space=sflag, size = 0x8, scoped, tag = 'scoped memory for tpu_custom_call.1']
    #allocation10 [shape = 'u8[262144]{0}', space=vmem, size = 0x40000, scoped, tag = 'input window, operand 2']
    #allocation11 [shape = 'u8[65536]{0}', space=vmem, size = 0x10000, scoped, tag = 'output window, operand 0']
    #allocation12 [shape = 'u8[8192]{0}', space=vmem, size = 0x2000, scoped, tag = 'output window, operand 1']
    #allocation13 [shape = 's32[2]{0}', space=sflag, size = 0x8, scoped, tag = 'scoped memory for tpu_custom_call.1']
    #allocation14 [shape = 'u8[8192]{0}', space=vmem, size = 0x2000, scoped, tag = 'output window, operand 2']
    %12 = vsyncpa [#allocation6], 0
    %s13 = scalar_lea.sflag [#allocation6], 1
    %14 = vsyncpa %s13, 0
    %15 = vsyncpa [#allocation9], 0
    %s16 = scalar_lea.sflag [#allocation9], 1
    %17 = vsyncpa %s16, 0
    %18 = vsyncpa [#allocation7], 0
    %s19 = scalar_lea.sflag [#allocation7], 1
    %20 = vsyncpa %s19, 0
    %21 = vsyncpa [#allocation13], 0
    %s22 = scalar_lea.sflag [#allocation13], 1
    %23 = vsyncpa %s22, 0
    loop: start=0, step=1, limit=4
    $region2: #{tpu_custom_call.1} parent=1 // loop_pre_header
      _
    $region3: #{tpu_custom_call.1} parent=1 // loop_header
      %s25 = sphi 0, %s29
      %p26 = scmp.ge.s32.totalorder %s25, 4
      %s32 = sphi 0, %s44
      %s33 = sphi 0, %s40
      %s34 = sphi 0, %s32
      %s35 = sphi 0, %s33
      %s36 = sphi 0, %s34
      %s37 = sphi 0, %s35
      %s55 = sphi 0, %s57
      %s58 = sphi 0, %s55
      %s59 = sphi 0, %s58
      %s75 = sphi 0, %s59
      %s81 = sphi 0, %s83
      %s84 = sphi 0, %s81
      %s85 = sphi 0, %s84
      %s101 = sphi 0, %s85
      %s107 = sphi 0, %s109
      %s110 = sphi 0, %s107
      %s111 = sphi 0, %s110
      %s127 = sphi 0, %s111
      %s133 = sphi 0, %s135
      %s136 = sphi 0, %s133
      %s137 = sphi 0, %s136
      %s153 = sphi 0, %s137
      %s169 = sphi 0, %s171
      %s172 = sphi 0, %s169
      %s173 = sphi 0, %s172
      %s189 = sphi 0, %s173
      %s195 = sphi 0, %s197
      %s198 = sphi 0, %s195
      %s199 = sphi 0, %s198
      %s215 = sphi 0, %s199
      %s221 = sphi 0, %s223
      %s224 = sphi 0, %s221
      %s225 = sphi 0, %s224
      %s241 = sphi 0, %s225
    $region4: #{tpu_custom_call.1} parent=1 // loop_header_branch
      %28 = sbr.rel (%p26) target = $region8
    $region5: #{tpu_custom_call.1} parent=1 // loop_body
      %s30 = ssub.s32 %s25, 1
      %s31 = ssub.s32 %s25, 2
      %s38 = sadd.s32 1, %s33
      %p39 = scmp.ge.s32.totalorder %s38, 1
      %s40 = scalar_select %p39, 0, %s38
      %s41 = sadd.s32 1, %s32
      %s42 = scalar_select %p39, %s41, %s32
      %p43 = scmp.ge.s32.totalorder %s42, 2
      %s44 = scalar_select %p43, 0, %s42
      %s45 = smul.u32 %s33, 2
      %s46 = ssub.s32 0, %s45
      %s47 = smul.u32 %s32, %s46
      %s48 = sadd.s32 %s33, %s47
      %s49 = smul.u32 %s40, 2
      %s50 = ssub.s32 0, %s49
      %s51 = smul.u32 %s44, %s50
      %s52 = sadd.s32 %s40, %s51
      %s53 = ssub.s32 %s48, %s52
      %p54 = scmp.eq.s32.totalorder %s53, 0
      %s56 = sadd.s32 %s55, 1
      %s57 = scalar_select %p54, %s55, %s56
      %p60 = pneg %p54
      %p61 = scmp.eq.s32.totalorder %s25, 1
      %p62 = por %p60, %p61
      %p63 = scmp.ne.s32.totalorder %s55, %s58
      %p64 = scmp.eq.s32.totalorder %s25, 0
      %p65 = por %p63, %p64
      %p66 = scmp.ne.s32.totalorder %s55, %s58
      %p67 = scmp.eq.s32.totalorder %s30, 1
      %p68 = por %p66, %p67
      %p69 = scmp.ne.s32.totalorder %s58, %s59
      %p70 = scmp.eq.s32.totalorder %s30, 0
      %p71 = por %p69, %p70
      %p72 = scmp.ne.s32.totalorder %s58, %s59
      %p73 = scmp.eq.s32.totalorder %s31, 1
      %p74 = por %p72, %p73
      %p76 = scmp.ne.s32.totalorder %s59, %s75
      %p77 = scmp.eq.s32.totalorder %s31, 0
      %p78 = por %p76, %p77
      %s79 = ssub.s32 %s32, %s44
      %p80 = scmp.eq.s32.totalorder %s79, 0
      %s82 = sadd.s32 %s81, 1
      %s83 = scalar_select %p80, %s81, %s82
      %p86 = pneg %p80
      %p87 = scmp.eq.s32.totalorder %s25, 1
      %p88 = por %p86, %p87
      %p89 = scmp.ne.s32.totalorder %s81, %s84
      %p90 = scmp.eq.s32.totalorder %s25, 0
      %p91 = por %p89, %p90
      %p92 = scmp.ne.s32.totalorder %s81, %s84
      %p93 = scmp.eq.s32.totalorder %s30, 1
      %p94 = por %p92, %p93
      %p95 = scmp.ne.s32.totalorder %s84, %s85
      %p96 = scmp.eq.s32.totalorder %s30, 0
      %p97 = por %p95, %p96
      %p98 = scmp.ne.s32.totalorder %s84, %s85
      %p99 = scmp.eq.s32.totalorder %s31, 1
      %p100 = por %p98, %p99
      %p102 = scmp.ne.s32.totalorder %s85, %s101
      %p103 = scmp.eq.s32.totalorder %s31, 0
      %p104 = por %p102, %p103
      %s105 = ssub.s32 %s32, %s44
      %p106 = scmp.eq.s32.totalorder %s105, 0
      %s108 = sadd.s32 %s107, 1
      %s109 = scalar_select %p106, %s107, %s108
      %p112 = pneg %p106
      %p113 = scmp.eq.s32.totalorder %s25, 1
      %p114 = por %p112, %p113
      %p115 = scmp.ne.s32.totalorder %s107, %s110
      %p116 = scmp.eq.s32.totalorder %s25, 0
      %p117 = por %p115, %p116
      %p118 = scmp.ne.s32.totalorder %s107, %s110
      %p119 = scmp.eq.s32.totalorder %s30, 1
      %p120 = por %p118, %p119
      %p121 = scmp.ne.s32.totalorder %s110, %s111
      %p122 = scmp.eq.s32.totalorder %s30, 0
      %p123 = por %p121, %p122
      %p124 = scmp.ne.s32.totalorder %s110, %s111
      %p125 = scmp.eq.s32.totalorder %s31, 1
      %p126 = por %p124, %p125
      %p128 = scmp.ne.s32.totalorder %s111, %s127
      %p129 = scmp.eq.s32.totalorder %s31, 0
      %p130 = por %p128, %p129
      %s131 = ssub.s32 %s32, %s44
      %p132 = scmp.eq.s32.totalorder %s131, 0
      %s134 = sadd.s32 %s133, 1
      %s135 = scalar_select %p132, %s133, %s134
      %p138 = pneg %p132
      %p139 = scmp.eq.s32.totalorder %s25, 1
      %p140 = por %p138, %p139
      %p141 = scmp.ne.s32.totalorder %s133, %s136
      %p142 = scmp.eq.s32.totalorder %s25, 0
      %p143 = por %p141, %p142
      %p144 = scmp.ne.s32.totalorder %s133, %s136
      %p145 = scmp.eq.s32.totalorder %s30, 1
      %p146 = por %p144, %p145
      %p147 = scmp.ne.s32.totalorder %s136, %s137
      %p148 = scmp.eq.s32.totalorder %s30, 0
      %p149 = por %p147, %p148
      %p150 = scmp.ne.s32.totalorder %s136, %s137
      %p151 = scmp.eq.s32.totalorder %s31, 1
      %p152 = por %p150, %p151
      %p154 = scmp.ne.s32.totalorder %s137, %s153
      %p155 = scmp.eq.s32.totalorder %s31, 0
      %p156 = por %p154, %p155
      %s157 = smul.u32 %s33, 2
      %s158 = ssub.s32 0, %s157
      %s159 = smul.u32 %s32, %s158
      %s160 = sadd.s32 %s33, %s159
      %s161 = smul.u32 %s40, 2
      %s162 = ssub.s32 0, %s161
      %s163 = smul.u32 %s44, %s162
      %s164 = sadd.s32 %s40, %s163
      %s165 = ssub.s32 %s32, %s44
      %s166 = ssub.s32 %s160, %s164
      %s167 = sor.u32 %s165, %s166
      %p168 = scmp.eq.s32.totalorder %s167, 0
      %s170 = sadd.s32 %s169, 1
      %s171 = scalar_select %p168, %s169, %s170
      %p174 = pneg %p168
      %p175 = scmp.eq.s32.totalorder %s25, 1
      %p176 = por %p174, %p175
      %p177 = scmp.ne.s32.totalorder %s169, %s172
      %p178 = scmp.eq.s32.totalorder %s25, 0
      %p179 = por %p177, %p178
      %p180 = scmp.ne.s32.totalorder %s169, %s172
      %p181 = scmp.eq.s32.totalorder %s30, 1
      %p182 = por %p180, %p181
      %p183 = scmp.ne.s32.totalorder %s172, %s173
      %p184 = scmp.eq.s32.totalorder %s30, 0
      %p185 = por %p183, %p184
      %p186 = scmp.ne.s32.totalorder %s172, %s173
      %p187 = scmp.eq.s32.totalorder %s31, 1
      %p188 = por %p186, %p187
      %p190 = scmp.ne.s32.totalorder %s173, %s189
      %p191 = scmp.eq.s32.totalorder %s31, 0
      %p192 = por %p190, %p191
      %s193 = ssub.s32 %s32, %s44
      %p194 = scmp.eq.s32.totalorder %s193, 0
      %s196 = sadd.s32 %s195, 1
      %s197 = scalar_select %p194, %s195, %s196
      %p200 = pneg %p194
      %p201 = scmp.eq.s32.totalorder %s25, 1
      %p202 = por %p200, %p201
      %p203 = scmp.ne.s32.totalorder %s195, %s198
      %p204 = scmp.eq.s32.totalorder %s25, 0
      %p205 = por %p203, %p204
      %p206 = scmp.ne.s32.totalorder %s195, %s198
      %p207 = scmp.eq.s32.totalorder %s30, 1
      %p208 = por %p206, %p207
      %p209 = scmp.ne.s32.totalorder %s198, %s199
      %p210 = scmp.eq.s32.totalorder %s30, 0
      %p211 = por %p209, %p210
      %p212 = scmp.ne.s32.totalorder %s198, %s199
      %p213 = scmp.eq.s32.totalorder %s31, 1
      %p214 = por %p212, %p213
      %p216 = scmp.ne.s32.totalorder %s199, %s215
      %p217 = scmp.eq.s32.totalorder %s31, 0
      %p218 = por %p216, %p217
      %s219 = ssub.s32 %s32, %s44
      %p220 = scmp.eq.s32.totalorder %s219, 0
      %s222 = sadd.s32 %s221, 1
      %s223 = scalar_select %p220, %s221, %s222
      %p226 = pneg %p220
      %p227 = scmp.eq.s32.totalorder %s25, 1
      %p228 = por %p226, %p227
      %p229 = scmp.ne.s32.totalorder %s221, %s224
      %p230 = scmp.eq.s32.totalorder %s25, 0
      %p231 = por %p229, %p230
      %p232 = scmp.ne.s32.totalorder %s221, %s224
      %p233 = scmp.eq.s32.totalorder %s30, 1
      %p234 = por %p232, %p233
      %p235 = scmp.ne.s32.totalorder %s224, %s225
      %p236 = scmp.eq.s32.totalorder %s30, 0
      %p237 = por %p235, %p236
      %p238 = scmp.ne.s32.totalorder %s224, %s225
      %p239 = scmp.eq.s32.totalorder %s31, 1
      %p240 = por %p238, %p239
      %p242 = scmp.ne.s32.totalorder %s225, %s241
      %p243 = scmp.eq.s32.totalorder %s31, 0
      %p244 = por %p242, %p243
      %p245 = scmp.le.s32.totalorder 1, %s25
      %p246 = scmp.lt.s32.totalorder %s25, 3
      %p247 = pnand %p245, %p246
      %p248 = pneg %p247
      // Predicated region
      $region9: #{tpu_custom_call.1} parent=5 // pred_check
        _
      $region10: #{tpu_custom_call.1} parent=5 // pred_check_branch
        %250 = sbr.rel (%p247) target = $region12
      $region11: #{tpu_custom_call.1} parent=5 // pred_region
        %s251 = ssub.s32 %s25, 1
      $region12: #{tpu_custom_call.1} parent=5 // pred_fallthru
        _
      %p252 = scmp.lt.s32.totalorder %s25, 2
      // Predicated region
      $region13: #{tpu_custom_call.1} parent=5 // pred_check
        %p253 = pneg %p252
      $region14: #{tpu_custom_call.1} parent=5 // pred_check_branch
        %255 = sbr.rel (%p253) target = $region16
      $region15: #{tpu_custom_call.1} parent=5 // pred_region
        // Predicated region
        $region17: #{tpu_custom_call.1} parent=15 // pred_check
          %p256 = pneg %p65
        $region18: #{tpu_custom_call.1} parent=15 // pred_check_branch
          %258 = sbr.rel (%p256) target = $region20
        $region19: #{tpu_custom_call.1} parent=15 // pred_region
          %s259 = sand.u32 %s55, 1
          %s260 = scalar_lea.sflag [#allocation6], %s259
          %s261 = sand.u32 %s55, 1
          %s262 = smul.addr %s261, 32
          %s263 = scalar_lea.vmem [#allocation5], %s262
          %s264 = smul.u32 %s33, 2
          %s265 = ssub.s32 0, %s264
          %s266 = smul.u32 %s32, %s265
          %s267 = sadd.s32 %s33, %s266
          %s268 = smul.u32 8, %s267
          %s270 = ssub.s32 512, 512
          %271 = vsyncadd %s260, %s270
          %s272 = smul.addr %s268, 64
          %s273 = scalar_lea.hbm %s0, %s272
          %s274 = sshll.u32 %s263, 4
          %s275 = int_to_ptr.vmem [resolvable:$true] %s274
          %280 = dma.hbm_to_vmem [thread:$0]  %s273, 512, %s275, %s260, 64, 64, 4
        $region20: #{tpu_custom_call.1} parent=15 // pred_fallthru
          _
        // Predicated region
        $region21: #{tpu_custom_call.1} parent=15 // pred_check
          %p281 = pneg %p91
        $region22: #{tpu_custom_call.1} parent=15 // pred_check_branch
          %283 = sbr.rel (%p281) target = $region24
        $region23: #{tpu_custom_call.1} parent=15 // pred_region
          %s284 = sand.u32 %s25, 1
          %s285 = scalar_lea.sflag [#allocation9], %s284
          %s286 = sand.u32 %s81, 1
          %s287 = smul.addr %s286, 256
          %s288 = scalar_lea.vmem [#allocation8], %s287
          %s290 = ssub.s32 4096, 4096
          %291 = vsyncadd %s285, %s290
          %s292 = smul.addr %s32, 64
          %s293 = smul.addr %s292, 64
          %s294 = scalar_lea.hbm %s1, %s293
          %s295 = sshll.u32 %s288, 4
          %s296 = int_to_ptr.vmem [resolvable:$true] %s295
          %301 = dma.hbm_to_vmem [thread:$0]  %s294, 4096, %s296, %s285, 256, 256, 16
        $region24: #{tpu_custom_call.1} parent=15 // pred_fallthru
          _
        // Predicated region
        $region25: #{tpu_custom_call.1} parent=15 // pred_check
          %p302 = pneg %p117
        $region26: #{tpu_custom_call.1} parent=15 // pred_check_branch
          %304 = sbr.rel (%p302) target = $region28
        $region27: #{tpu_custom_call.1} parent=15 // pred_region
          %s305 = sand.u32 %s25, 1
          %s306 = scalar_lea.sflag [#allocation9], %s305
          %s307 = sand.u32 %s107, 1
          %s308 = smul.addr %s307, 256
          %s309 = scalar_lea.vmem [#allocation10], %s308
          %s311 = ssub.s32 4096, 4096
          %312 = vsyncadd %s306, %s311
          %s313 = smul.addr %s32, 64
          %s314 = smul.addr %s313, 64
          %s315 = scalar_lea.hbm %s2, %s314
          %s316 = sshll.u32 %s309, 4
          %s317 = int_to_ptr.vmem [resolvable:$true] %s316
          %322 = dma.hbm_to_vmem [thread:$0]  %s315, 4096, %s317, %s306, 256, 256, 16
        $region28: #{tpu_custom_call.1} parent=15 // pred_fallthru
          _
        // Predicated region
        $region29: #{tpu_custom_call.1} parent=15 // pred_check
          %p323 = pneg %p143
        $region30: #{tpu_custom_call.1} parent=15 // pred_check_branch
          %325 = sbr.rel (%p323) target = $region32
        $region31: #{tpu_custom_call.1} parent=15 // pred_region
          %p326 = scmp.lt.s32.totalorder %s32, 1
          %s327 = scalar_select %p326, %s32, 1
          %s328 = smul.addr %s327, 4
          %s329 = scalar_lea.vmem %s3, %s328
        $region32: #{tpu_custom_call.1} parent=15 // pred_fallthru
          _
      $region16: #{tpu_custom_call.1} parent=5 // pred_fallthru
        _
      %p330 = scmp.le.s32.totalorder 1, %s25
      %p331 = scmp.lt.s32.totalorder %s25, 3
      %p332 = pnand %p330, %p331
      %p333 = pneg %p332
      // Predicated region
      $region33: #{tpu_custom_call.1} parent=5 // pred_check
        _
      $region34: #{tpu_custom_call.1} parent=5 // pred_check_branch
        %335 = sbr.rel (%p332) target = $region36
      $region35: #{tpu_custom_call.1} parent=5 // pred_region
        %s336 = ssub.s32 %s25, 1
        %s337 = sand.u32 %s58, 1
        %s338 = scalar_lea.sflag [#allocation6], %s337
        %s339 = sand.u32 %s58, 1
        %s340 = smul.addr %s339, 32
        %s341 = scalar_lea.vmem [#allocation5], %s340
        // Predicated region
        $region37: #{tpu_custom_call.1} parent=35 // pred_check
          %p342 = pneg %p71
        $region38: #{tpu_custom_call.1} parent=35 // pred_check_branch
          %344 = sbr.rel (%p342) target = $region40
        $region39: #{tpu_custom_call.1} parent=35 // pred_region
          %345 = dma.done %s338, 512
        $region40: #{tpu_custom_call.1} parent=35 // pred_fallthru
          _
        %s346 = sand.u32 %s30, 1
        %s347 = scalar_lea.sflag [#allocation9], %s346
        %s348 = sand.u32 %s84, 1
        %s349 = smul.addr %s348, 256
        %s350 = scalar_lea.vmem [#allocation8], %s349
        // Predicated region
        $region41: #{tpu_custom_call.1} parent=35 // pred_check
          %p351 = pneg %p97
        $region42: #{tpu_custom_call.1} parent=35 // pred_check_branch
          %353 = sbr.rel (%p351) target = $region44
        $region43: #{tpu_custom_call.1} parent=35 // pred_region
          %354 = dma.done %s347, 4096
        $region44: #{tpu_custom_call.1} parent=35 // pred_fallthru
          _
        %s355 = sand.u32 %s30, 1
        %s356 = scalar_lea.sflag [#allocation9], %s355
        %s357 = sand.u32 %s110, 1
        %s358 = smul.addr %s357, 256
        %s359 = scalar_lea.vmem [#allocation10], %s358
        // Predicated region
        $region45: #{tpu_custom_call.1} parent=35 // pred_check
          %p360 = pneg %p123
        $region46: #{tpu_custom_call.1} parent=35 // pred_check_branch
          %362 = sbr.rel (%p360) target = $region48
        $region47: #{tpu_custom_call.1} parent=35 // pred_region
          %363 = dma.done %s356, 4096
        $region48: #{tpu_custom_call.1} parent=35 // pred_fallthru
          _
        %s364 = sand.u32 %s58, 1
        %s365 = scalar_lea.sflag [#allocation6], %s364
        %s366 = sand.u32 %s58, 1
        %s367 = smul.addr %s366, 32
        %s368 = scalar_lea.vmem [#allocation5], %s367
        %p369 = pneg %p71
        %p370 = pneg %p68
        %s371 = sand.u32 %s30, 1
        %s372 = scalar_lea.sflag [#allocation9], %s371
        %s373 = sand.u32 %s84, 1
        %s374 = smul.addr %s373, 256
        %s375 = scalar_lea.vmem [#allocation8], %s374
        %p376 = pneg %p97
        %p377 = pneg %p94
        %s378 = sand.u32 %s30, 1
        %s379 = scalar_lea.sflag [#allocation9], %s378
        %s380 = sand.u32 %s110, 1
        %s381 = smul.addr %s380, 256
        %s382 = scalar_lea.vmem [#allocation10], %s381
        %p383 = pneg %p123
        %p384 = pneg %p120
        %p385 = scmp.lt.s32.totalorder %s34, 1
        %s386 = scalar_select %p385, %s34, 1
        %s387 = smul.addr %s386, 4
        %s388 = scalar_lea.vmem %s3, %s387
        %p389 = pneg %p149
        %p390 = pneg %p146
        %p391 = pneg %p185
        %p392 = pneg %p182
        %s393 = sand.u32 %s172, 1
        %s394 = scalar_lea.sflag [#allocation7], %s393
        %s395 = sand.u32 %s172, 1
        %s396 = smul.addr %s395, 64
        %s397 = scalar_lea.vmem [#allocation11], %s396
        %p398 = pneg %p211
        %p399 = pneg %p208
        %s400 = sand.u32 %s30, 1
        %s401 = scalar_lea.sflag [#allocation13], %s400
        %s402 = sand.u32 %s198, 1
        %s403 = smul.addr %s402, 8
        %s404 = scalar_lea.vmem [#allocation12], %s403
        %p405 = pneg %p237
        %p406 = pneg %p234
        %s407 = sand.u32 %s30, 1
        %s408 = scalar_lea.sflag [#allocation13], %s407
        %s409 = sand.u32 %s224, 1
        %s410 = smul.addr %s409, 8
        %s411 = scalar_lea.vmem [#allocation14], %s410
        %s412 = smul.u32 %s35, 2
        %s413 = ssub.s32 0, %s412
        %s414 = smul.u32 %s34, %s413
        %s415 = sadd.s32 %s35, %s414
        %s416 = smul.u32 8, %s415
        %p417 = scmp.lt.s32.totalorder %s34, 1
        %s418 = scalar_select %p417, %s34, 1
        %s419 = smul.addr %s418, 4
        %s420 = scalar_lea.vmem %s3, %s419
        %s421 = smul.u32 %s35, 2
        %s422 = ssub.s32 0, %s421
        %s423 = smul.u32 %s34, %s422
        %s424 = sadd.s32 %s35, %s423
        %s425 = smul.u32 8, %s424
        %p427 = scmp.eq.s32.totalorder %s35, 0
        // Predicated region
        $region49: #{tpu_custom_call.1} parent=35 // pred_check
          %p428 = pneg %p427
        $region50: #{tpu_custom_call.1} parent=35 // pred_check_branch
          %430 = sbr.rel (%p428) target = $region52
        $region51: #{tpu_custom_call.1} parent=35 // pred_region
          %431 = vst [vmem:[#allocation3] sm:$0xff] 0.0
          %432 = vst [vmem:[#allocation4] sm:$0xff] 0.0
        $region52: #{tpu_custom_call.1} parent=35 // pred_fallthru
          _
        %v433 = vld [vmem:[%s341] sm:$0xf]
        %v434 = vld [vmem:[%s341 + $0x4] sm:$0xf]
        %v435 = vld [vmem:[%s341 + $0x8] sm:$0xf]
        %v436 = vld [vmem:[%s341 + $0xc] sm:$0xf]
        %v437 = vld [vmem:[%s341 + $0x10] sm:$0xf]
        %v438 = vld [vmem:[%s341 + $0x14] sm:$0xf]
        %v439 = vld [vmem:[%s341 + $0x18] sm:$0xf]
        %v440 = vld [vmem:[%s341 + $0x1c] sm:$0xf]
        %v441 = vld [vmem:[%s350] sm:$0xff]
        %v442 = vld [vmem:[%s350 + $0x8] sm:$0xff]
        %v443 = vld [vmem:[%s350 + $0x10] sm:$0xff]
        %v444 = vld [vmem:[%s350 + $0x18] sm:$0xff]
        %v445 = vld [vmem:[%s350 + $0x20] sm:$0xff]
        %v446 = vld [vmem:[%s350 + $0x28] sm:$0xff]
        %v447 = vld [vmem:[%s350 + $0x30] sm:$0xff]
        %v448 = vld [vmem:[%s350 + $0x38] sm:$0xff]
        %v449 = vld [vmem:[%s350 + $0x40] sm:$0xff]
        %v450 = vld [vmem:[%s350 + $0x48] sm:$0xff]
        %v451 = vld [vmem:[%s350 + $0x50] sm:$0xff]
        %v452 = vld [vmem:[%s350 + $0x58] sm:$0xff]
        %v453 = vld [vmem:[%s350 + $0x60] sm:$0xff]
        %v454 = vld [vmem:[%s350 + $0x68] sm:$0xff]
        %v455 = vld [vmem:[%s350 + $0x70] sm:$0xff]
        %v456 = vld [vmem:[%s350 + $0x78] sm:$0xff]
        %v457 = vld [vmem:[%s350 + $0x80] sm:$0xff]
        %v458 = vld [vmem:[%s350 + $0x88] sm:$0xff]
        %v459 = vld [vmem:[%s350 + $0x90] sm:$0xff]
        %v460 = vld [vmem:[%s350 + $0x98] sm:$0xff]
        %v461 = vld [vmem:[%s350 + $0xa0] sm:$0xff]
        %v462 = vld [vmem:[%s350 + $0xa8] sm:$0xff]
        %v463 = vld [vmem:[%s350 + $0xb0] sm:$0xff]
        %v464 = vld [vmem:[%s350 + $0xb8] sm:$0xff]
        %v465 = vld [vmem:[%s350 + $0xc0] sm:$0xff]
        %v466 = vld [vmem:[%s350 + $0xc8] sm:$0xff]
        %v467 = vld [vmem:[%s350 + $0xd0] sm:$0xff]
        %v468 = vld [vmem:[%s350 + $0xd8] sm:$0xff]
        %v469 = vld [vmem:[%s350 + $0xe0] sm:$0xff]
        %v470 = vld [vmem:[%s350 + $0xe8] sm:$0xff]
        %v471 = vld [vmem:[%s350 + $0xf0] sm:$0xff]
        %v472 = vld [vmem:[%s350 + $0xf8] sm:$0xff]
        %v473 = vld [vmem:[%s420] sm:$0xf]
        %v475 = vlaneseq
        %v476 = vshrl.u32 %v475, 7
        %v477 = vsub.s32 0, %v476
        %v478 = vrot.slane %v473, %v477
        %v479 = vlaneseq
        %v480 = vshrl.u32 %v479, 7
        %v481 = vsub.s32 1, %v480
        %v482 = vrot.slane %v473, %v481
        %v483 = vlaneseq
        %v484 = vshrl.u32 %v483, 7
        %v485 = vsub.s32 2, %v484
        %v486 = vrot.slane %v473, %v485
        %v487 = vlaneseq
        %v488 = vshrl.u32 %v487, 7
        %v489 = vsub.s32 3, %v488
        %v490 = vrot.slane %v473, %v489
        %v503 = vunpack.c.l.b16 %v433
        %v504 = vunpack.c.l.b16 %v434
        %v505 = vunpack.c.l.b16 %v435
        %v506 = vunpack.c.l.b16 %v436
        %v507 = vunpack.c.l.b16 %v437
        %v508 = vunpack.c.l.b16 %v438
        %v509 = vunpack.c.l.b16 %v439
        %v510 = vunpack.c.l.b16 %v440
        %v511 = vpack.c.b16 %v504, %v503
        %v512 = vpack.c.b16 %v506, %v505
        %v513 = vpack.c.b16 %v508, %v507
        %v514 = vpack.c.b16 %v510, %v509
        %v551 = vunpack.c.l.b16 %v441
        %v552 = vunpack.c.h.b16 %v441
        %v553 = vunpack.c.l.b16 %v442
        %v554 = vunpack.c.h.b16 %v442
        %v555 = vunpack.c.l.b16 %v443
        %v556 = vunpack.c.h.b16 %v443
        %v557 = vunpack.c.l.b16 %v444
        %v558 = vunpack.c.h.b16 %v444
        %v559 = vunpack.c.l.b16 %v445
        %v560 = vunpack.c.h.b16 %v445
        %v561 = vunpack.c.l.b16 %v446
        %v562 = vunpack.c.h.b16 %v446
        %v563 = vunpack.c.l.b16 %v447
        %v564 = vunpack.c.h.b16 %v447
        %v565 = vunpack.c.l.b16 %v448
        %v566 = vunpack.c.h.b16 %v448
        %v567 = vunpack.c.l.b16 %v449
        %v568 = vunpack.c.h.b16 %v449
        %v569 = vunpack.c.l.b16 %v450
        %v570 = vunpack.c.h.b16 %v450
        %v571 = vunpack.c.l.b16 %v451
        %v572 = vunpack.c.h.b16 %v451
        %v573 = vunpack.c.l.b16 %v452
        %v574 = vunpack.c.h.b16 %v452
        %v575 = vunpack.c.l.b16 %v453
        %v576 = vunpack.c.h.b16 %v453
        %v577 = vunpack.c.l.b16 %v454
        %v578 = vunpack.c.h.b16 %v454
        %v579 = vunpack.c.l.b16 %v455
        %v580 = vunpack.c.h.b16 %v455
        %v581 = vunpack.c.l.b16 %v456
        %v582 = vunpack.c.h.b16 %v456
        %v583 = vunpack.c.l.b16 %v457
        %v584 = vunpack.c.h.b16 %v457
        %v585 = vunpack.c.l.b16 %v458
        %v586 = vunpack.c.h.b16 %v458
        %v587 = vunpack.c.l.b16 %v459
        %v588 = vunpack.c.h.b16 %v459
        %v589 = vunpack.c.l.b16 %v460
        %v590 = vunpack.c.h.b16 %v460
        %v591 = vunpack.c.l.b16 %v461
        %v592 = vunpack.c.h.b16 %v461
        %v593 = vunpack.c.l.b16 %v462
        %v594 = vunpack.c.h.b16 %v462
        %v595 = vunpack.c.l.b16 %v463
        %v596 = vunpack.c.h.b16 %v463
        %v597 = vunpack.c.l.b16 %v464
        %v598 = vunpack.c.h.b16 %v464
        %v599 = vunpack.c.l.b16 %v465
        %v600 = vunpack.c.h.b16 %v465
        %v601 = vunpack.c.l.b16 %v466
        %v602 = vunpack.c.h.b16 %v466
        %v603 = vunpack.c.l.b16 %v467
        %v604 = vunpack.c.h.b16 %v467
        %v605 = vunpack.c.l.b16 %v468
        %v606 = vunpack.c.h.b16 %v468
        %v607 = vunpack.c.l.b16 %v469
        %v608 = vunpack.c.h.b16 %v469
        %v609 = vunpack.c.l.b16 %v470
        %v610 = vunpack.c.h.b16 %v470
        %v611 = vunpack.c.l.b16 %v471
        %v612 = vunpack.c.h.b16 %v471
        %v613 = vunpack.c.l.b16 %v472
        %v614 = vunpack.c.h.b16 %v472
        %v615 = vpack.c.b16 %v555, %v551
        %v616 = vpack.c.b16 %v556, %v552
        %v617 = vpack.c.b16 %v557, %v553
        %v618 = vpack.c.b16 %v558, %v554
        %v619 = vpack.c.b16 %v563, %v559
        %v620 = vpack.c.b16 %v564, %v560
        %v621 = vpack.c.b16 %v565, %v561
        %v622 = vpack.c.b16 %v566, %v562
        %v623 = vpack.c.b16 %v571, %v567
        %v624 = vpack.c.b16 %v572, %v568
        %v625 = vpack.c.b16 %v573, %v569
        %v626 = vpack.c.b16 %v574, %v570
        %v627 = vpack.c.b16 %v579, %v575
        %v628 = vpack.c.b16 %v580, %v576
        %v629 = vpack.c.b16 %v581, %v577
        %v630 = vpack.c.b16 %v582, %v578
        %v631 = vpack.c.b16 %v587, %v583
        %v632 = vpack.c.b16 %v588, %v584
        %v633 = vpack.c.b16 %v589, %v585
        %v634 = vpack.c.b16 %v590, %v586
        %v635 = vpack.c.b16 %v595, %v591
        %v636 = vpack.c.b16 %v596, %v592
        %v637 = vpack.c.b16 %v597, %v593
        %v638 = vpack.c.b16 %v598, %v594
        %v639 = vpack.c.b16 %v603, %v599
        %v640 = vpack.c.b16 %v604, %v600
        %v641 = vpack.c.b16 %v605, %v601
        %v642 = vpack.c.b16 %v606, %v602
        %v643 = vpack.c.b16 %v611, %v607
        %v644 = vpack.c.b16 %v612, %v608
        %v645 = vpack.c.b16 %v613, %v609
        %v646 = vpack.c.b16 %v614, %v610
        %679 = vmatprep.subr.bf16.mxu0 %v616
        %680 = vmatpush1.bf16.msra.mxu0 %v615
        %681 = vmatprep.subr.bf16.mxu0 %v620
        %682 = vmatpush1.bf16.msra.mxu0 %v619
        %683 = vmatprep.subr.bf16.mxu0 %v624
        %684 = vmatpush1.bf16.msra.mxu0 %v623
        %685 = vmatprep.subr.bf16.mxu0 %v628
        %686 = vmatpush1.bf16.msra.mxu0 %v627
        %687 = vmatprep.subr.bf16.mxu0 %v632
        %688 = vmatpush1.bf16.msra.mxu0 %v631
        %689 = vmatprep.subr.bf16.mxu0 %v636
        %690 = vmatpush1.bf16.msra.mxu0 %v635
        %691 = vmatprep.subr.bf16.mxu0 %v640
        %692 = vmatpush1.bf16.msra.mxu0 %v639
        %693 = vmatprep.subr.bf16.mxu0 %v644
        %694 = vmatpush1.bf16.msra.mxu0 %v643
        %695 = vmatprep.subr.bf16.mxu0 0
        %696 = vmatpush1.bf16.msra.mxu0 0
        %697 = vmatprep.subr.bf16.mxu0 0
        %698 = vmatpush1.bf16.msra.mxu0 0
        %699 = vmatprep.subr.bf16.mxu0 0
        %700 = vmatpush1.bf16.msra.mxu0 0
        %701 = vmatprep.subr.bf16.mxu0 0
        %702 = vmatpush1.bf16.msra.mxu0 0
        %703 = vmatprep.subr.bf16.mxu0 0
        %704 = vmatpush1.bf16.msra.mxu0 0
        %705 = vmatprep.subr.bf16.mxu0 0
        %706 = vmatpush1.bf16.msra.mxu0 0
        %707 = vmatprep.subr.bf16.mxu0 0
        %708 = vmatpush1.bf16.msra.mxu0 0
        %709 = vmatprep.subr.bf16.mxu0 0
        %710 = vmatpush1.bf16.msra.mxu0 0
        %711 = vmatprep.mubr.bf16.mxu0 0
        %712 = vmatmul.mubr.bf16.gmra.mrb[0].mxu0 %v511
        %v713 = vpop.f32.mrb[0].mxu0
        %v714 = vadd.f32 %v478, %v713
        %v715 = vpop.f32.mrb[0].mxu0
        %v716 = vadd.f32 %v482, %v715
        %v717 = vpop.f32.mrb[0].mxu0
        %v718 = vadd.f32 %v478, %v717
        %v719 = vpop.f32.mrb[0].mxu0
        %v720 = vadd.f32 %v482, %v719
        %721 = vmatprep.mubr.bf16.mxu0 0
        %722 = vmatmul.mubr.bf16.gmra.mrb[0].mxu0 %v512
        %v723 = vpop.f32.mrb[0].mxu0
        %v724 = vadd.f32 %v478, %v723
        %v725 = vpop.f32.mrb[0].mxu0
        %v726 = vadd.f32 %v482, %v725
        %v727 = vpop.f32.mrb[0].mxu0
        %v728 = vadd.f32 %v478, %v727
        %v729 = vpop.f32.mrb[0].mxu0
        %v730 = vadd.f32 %v482, %v729
        %731 = vmatprep.mubr.bf16.mxu0 0
        %732 = vmatmul.mubr.bf16.gmra.mrb[0].mxu0 %v513
        %v733 = vpop.f32.mrb[0].mxu0
        %v734 = vadd.f32 %v478, %v733
        %v735 = vpop.f32.mrb[0].mxu0
        %v736 = vadd.f32 %v482, %v735
        %v737 = vpop.f32.mrb[0].mxu0
        %v738 = vadd.f32 %v478, %v737
        %v739 = vpop.f32.mrb[0].mxu0
        %v740 = vadd.f32 %v482, %v739
        %741 = vmatprep.mubr.bf16.mxu0 0
        %742 = vmatmul.mubr.bf16.gmra.mrb[0].mxu0 %v514
        %v743 = vpop.f32.mrb[0].mxu0
        %v744 = vadd.f32 %v478, %v743
        %v745 = vpop.f32.mrb[0].mxu0
        %v746 = vadd.f32 %v482, %v745
        %v747 = vpop.f32.mrb[0].mxu0
        %v748 = vadd.f32 %v478, %v747
        %v749 = vpop.f32.mrb[0].mxu0
        %v750 = vadd.f32 %v482, %v749
        %751 = vdwg.mxu0
        %752 = vmatprep.subr.bf16.mxu0 %v618
        %753 = vmatpush1.bf16.msra.mxu0 %v617
        %754 = vmatprep.subr.bf16.mxu0 %v622
        %755 = vmatpush1.bf16.msra.mxu0 %v621
        %756 = vmatprep.subr.bf16.mxu0 %v626
        %757 = vmatpush1.bf16.msra.mxu0 %v625
        %758 = vmatprep.subr.bf16.mxu0 %v630
        %759 = vmatpush1.bf16.msra.mxu0 %v629
        %760 = vmatprep.subr.bf16.mxu0 %v634
        %761 = vmatpush1.bf16.msra.mxu0 %v633
        %762 = vmatprep.subr.bf16.mxu0 %v638
        %763 = vmatpush1.bf16.msra.mxu0 %v637
        %764 = vmatprep.subr.bf16.mxu0 %v642
        %765 = vmatpush1.bf16.msra.mxu0 %v641
        %766 = vmatprep.subr.bf16.mxu0 %v646
        %767 = vmatpush1.bf16.msra.mxu0 %v645
        %768 = vmatprep.subr.bf16.mxu0 0
        %769 = vmatpush1.bf16.msra.mxu0 0
        %770 = vmatprep.subr.bf16.mxu0 0
        %771 = vmatpush1.bf16.msra.mxu0 0
        %772 = vmatprep.subr.bf16.mxu0 0
        %773 = vmatpush1.bf16.msra.mxu0 0
        %774 = vmatprep.subr.bf16.mxu0 0
        %775 = vmatpush1.bf16.msra.mxu0 0
        %776 = vmatprep.subr.bf16.mxu0 0
        %777 = vmatpush1.bf16.msra.mxu0 0
        %778 = vmatprep.subr.bf16.mxu0 0
        %779 = vmatpush1.bf16.msra.mxu0 0
        %780 = vmatprep.subr.bf16.mxu0 0
        %781 = vmatpush1.bf16.msra.mxu0 0
        %782 = vmatprep.subr.bf16.mxu0 0
        %783 = vmatpush1.bf16.msra.mxu0 0
        %784 = vmatprep.mubr.bf16.mxu0 0
        %785 = vmatmul.mubr.bf16.gmra.mrb[0].mxu0 %v511
        %v786 = vpop.f32.mrb[0].mxu0
        %v787 = vadd.f32 %v486, %v786
        %v788 = vpop.f32.mrb[0].mxu0
        %v789 = vadd.f32 %v490, %v788
        %v790 = vpop.f32.mrb[0].mxu0
        %v791 = vadd.f32 %v486, %v790
        %v792 = vpop.f32.mrb[0].mxu0
        %v793 = vadd.f32 %v490, %v792
        %794 = vmatprep.mubr.bf16.mxu0 0
        %795 = vmatmul.mubr.bf16.gmra.mrb[0].mxu0 %v512
        %v796 = vpop.f32.mrb[0].mxu0
        %v797 = vadd.f32 %v486, %v796
        %v798 = vpop.f32.mrb[0].mxu0
        %v799 = vadd.f32 %v490, %v798
        %v800 = vpop.f32.mrb[0].mxu0
        %v801 = vadd.f32 %v486, %v800
        %v802 = vpop.f32.mrb[0].mxu0
        %v803 = vadd.f32 %v490, %v802
        %804 = vmatprep.mubr.bf16.mxu0 0
        %805 = vmatmul.mubr.bf16.gmra.mrb[0].mxu0 %v513
        %v806 = vpop.f32.mrb[0].mxu0
        %v807 = vadd.f32 %v486, %v806
        %v808 = vpop.f32.mrb[0].mxu0
        %v809 = vadd.f32 %v490, %v808
        %v810 = vpop.f32.mrb[0].mxu0
        %v811 = vadd.f32 %v486, %v810
        %v812 = vpop.f32.mrb[0].mxu0
        %v813 = vadd.f32 %v490, %v812
        %814 = vmatprep.mubr.bf16.mxu0 0
        %815 = vmatmul.mubr.bf16.gmra.mrb[0].mxu0 %v514
        %v816 = vpop.f32.mrb[0].mxu0
        %v817 = vadd.f32 %v486, %v816
        %v818 = vpop.f32.mrb[0].mxu0
        %v819 = vadd.f32 %v490, %v818
        %v820 = vpop.f32.mrb[0].mxu0
        %v821 = vadd.f32 %v486, %v820
        %v822 = vpop.f32.mrb[0].mxu0
        %v823 = vadd.f32 %v490, %v822
        %824 = vdwg.mxu0
        %825 = vst [vmem:[#allocation2] sm:$0xff] %v714
        %826 = vst [vmem:[#allocation2 + $0x8] sm:$0xff] %v716
        %827 = vst [vmem:[#allocation2 + $0x10] sm:$0xff] %v787
        %828 = vst [vmem:[#allocation2 + $0x18] sm:$0xff] %v789
        %829 = vst [vmem:[#allocation2 + $0x20] sm:$0xff] %v718
        %830 = vst [vmem:[#allocation2 + $0x28] sm:$0xff] %v720
        %831 = vst [vmem:[#allocation2 + $0x30] sm:$0xff] %v791
        %832 = vst [vmem:[#allocation2 + $0x38] sm:$0xff] %v793
        %833 = vst [vmem:[#allocation2 + $0x40] sm:$0xff] %v724
        %834 = vst [vmem:[#allocation2 + $0x48] sm:$0xff] %v726
        %835 = vst [vmem:[#allocation2 + $0x50] sm:$0xff] %v797
        %836 = vst [vmem:[#allocation2 + $0x58] sm:$0xff] %v799
        %837 = vst [vmem:[#allocation2 + $0x60] sm:$0xff] %v728
        %838 = vst [vmem:[#allocation2 + $0x68] sm:$0xff] %v730
        %839 = vst [vmem:[#allocation2 + $0x70] sm:$0xff] %v801
        %840 = vst [vmem:[#allocation2 + $0x78] sm:$0xff] %v803
        %841 = vst [vmem:[#allocation2 + $0x80] sm:$0xff] %v734
        %842 = vst [vmem:[#allocation2 + $0x88] sm:$0xff] %v736
        %843 = vst [vmem:[#allocation2 + $0x90] sm:$0xff] %v807
        %844 = vst [vmem:[#allocation2 + $0x98] sm:$0xff] %v809
        %845 = vst [vmem:[#allocation2 + $0xa0] sm:$0xff] %v738
        %846 = vst [vmem:[#allocation2 + $0xa8] sm:$0xff] %v740
        %847 = vst [vmem:[#allocation2 + $0xb0] sm:$0xff] %v811
        %848 = vst [vmem:[#allocation2 + $0xb8] sm:$0xff] %v813
        %849 = vst [vmem:[#allocation2 + $0xc0] sm:$0xff] %v744
        %850 = vst [vmem:[#allocation2 + $0xc8] sm:$0xff] %v746
        %851 = vst [vmem:[#allocation2 + $0xd0] sm:$0xff] %v817
        %852 = vst [vmem:[#allocation2 + $0xd8] sm:$0xff] %v819
        %853 = vst [vmem:[#allocation2 + $0xe0] sm:$0xff] %v748
        %854 = vst [vmem:[#allocation2 + $0xe8] sm:$0xff] %v750
        %855 = vst [vmem:[#allocation2 + $0xf0] sm:$0xff] %v821
        %856 = vst [vmem:[#allocation2 + $0xf8] sm:$0xff] %v823
        %v857 = vld [vmem:[#allocation3] sm:$0xff]
        %v858 = vld [vmem:[#allocation4] sm:$0xff]
        %s859 = smul.u32 %s34, 56
        %s860 = sshra.s32 %s859, 3
        %s861 = sand.u32 %s859, 7
        %s862 = smul.u32 %s860, 4
        %s863 = smul.addr %s862, 8
        %s864 = scalar_lea.vmem [#allocation2], %s863
        %v865 = vld [vmem:[%s864] sm:$0xff]
        %v866 = vld [vmem:[%s864 + $0x8] sm:$0xff]
        %v867 = vld [vmem:[%s864 + $0x10] sm:$0xff]
        %v868 = vld [vmem:[%s864 + $0x18] sm:$0xff]
        %v869 = vpack.c.bf16 %v857, %v857
        %v870 = vld [vmem:[%s359] sm:$0xff]
        %v871 = vld [vmem:[%s359 + $0x8] sm:$0xff]
        %v872 = vld [vmem:[%s359 + $0x10] sm:$0xff]
        %v873 = vld [vmem:[%s359 + $0x18] sm:$0xff]
        %v874 = vld [vmem:[%s359 + $0x20] sm:$0xff]
        %v875 = vld [vmem:[%s359 + $0x28] sm:$0xff]
        %v876 = vld [vmem:[%s359 + $0x30] sm:$0xff]
        %v877 = vld [vmem:[%s359 + $0x38] sm:$0xff]
        %v878 = vld [vmem:[%s359 + $0x40] sm:$0xff]
        %v879 = vld [vmem:[%s359 + $0x48] sm:$0xff]
        %v880 = vld [vmem:[%s359 + $0x50] sm:$0xff]
        %v881 = vld [vmem:[%s359 + $0x58] sm:$0xff]
        %v882 = vld [vmem:[%s359 + $0x60] sm:$0xff]
        %v883 = vld [vmem:[%s359 + $0x68] sm:$0xff]
        %v884 = vld [vmem:[%s359 + $0x70] sm:$0xff]
        %v885 = vld [vmem:[%s359 + $0x78] sm:$0xff]
        %v886 = vld [vmem:[%s359 + $0x80] sm:$0xff]
        %v887 = vld [vmem:[%s359 + $0x88] sm:$0xff]
        %v888 = vld [vmem:[%s359 + $0x90] sm:$0xff]
        %v889 = vld [vmem:[%s359 + $0x98] sm:$0xff]
        %v890 = vld [vmem:[%s359 + $0xa0] sm:$0xff]
        %v891 = vld [vmem:[%s359 + $0xa8] sm:$0xff]
        %v892 = vld [vmem:[%s359 + $0xb0] sm:$0xff]
        %v893 = vld [vmem:[%s359 + $0xb8] sm:$0xff]
        %v894 = vld [vmem:[%s359 + $0xc0] sm:$0xff]
        %v895 = vld [vmem:[%s359 + $0xc8] sm:$0xff]
        %v896 = vld [vmem:[%s359 + $0xd0] sm:$0xff]
        %v897 = vld [vmem:[%s359 + $0xd8] sm:$0xff]
        %v898 = vld [vmem:[%s359 + $0xe0] sm:$0xff]
        %v899 = vld [vmem:[%s359 + $0xe8] sm:$0xff]
        %v900 = vld [vmem:[%s359 + $0xf0] sm:$0xff]
        %v901 = vld [vmem:[%s359 + $0xf8] sm:$0xff]
        %v934 = vunpack.c.l.b16 %v870
        %v935 = vunpack.c.h.b16 %v870
        %v936 = vunpack.c.l.b16 %v871
        %v937 = vunpack.c.h.b16 %v871
        %v938 = vunpack.c.l.b16 %v872
        %v939 = vunpack.c.h.b16 %v872
        %v940 = vunpack.c.l.b16 %v873
        %v941 = vunpack.c.h.b16 %v873
        %v942 = vunpack.c.l.b16 %v874
        %v943 = vunpack.c.h.b16 %v874
        %v944 = vunpack.c.l.b16 %v875
        %v945 = vunpack.c.h.b16 %v875
        %v946 = vunpack.c.l.b16 %v876
        %v947 = vunpack.c.h.b16 %v876
        %v948 = vunpack.c.l.b16 %v877
        %v949 = vunpack.c.h.b16 %v877
        %v950 = vunpack.c.l.b16 %v878
        %v951 = vunpack.c.h.b16 %v878
        %v952 = vunpack.c.l.b16 %v879
        %v953 = vunpack.c.h.b16 %v879
        %v954 = vunpack.c.l.b16 %v880
        %v955 = vunpack.c.h.b16 %v880
        %v956 = vunpack.c.l.b16 %v881
        %v957 = vunpack.c.h.b16 %v881
        %v958 = vunpack.c.l.b16 %v882
        %v959 = vunpack.c.h.b16 %v882
        %v960 = vunpack.c.l.b16 %v883
        %v961 = vunpack.c.h.b16 %v883
        %v962 = vunpack.c.l.b16 %v884
        %v963 = vunpack.c.h.b16 %v884
        %v964 = vunpack.c.l.b16 %v885
        %v965 = vunpack.c.h.b16 %v885
        %v966 = vunpack.c.l.b16 %v886
        %v967 = vunpack.c.h.b16 %v886
        %v968 = vunpack.c.l.b16 %v887
        %v969 = vunpack.c.h.b16 %v887
        %v970 = vunpack.c.l.b16 %v888
        %v971 = vunpack.c.h.b16 %v888
        %v972 = vunpack.c.l.b16 %v889
        %v973 = vunpack.c.h.b16 %v889
        %v974 = vunpack.c.l.b16 %v890
        %v975 = vunpack.c.h.b16 %v890
        %v976 = vunpack.c.l.b16 %v891
        %v977 = vunpack.c.h.b16 %v891
        %v978 = vunpack.c.l.b16 %v892
        %v979 = vunpack.c.h.b16 %v892
        %v980 = vunpack.c.l.b16 %v893
        %v981 = vunpack.c.h.b16 %v893
        %v982 = vunpack.c.l.b16 %v894
        %v983 = vunpack.c.h.b16 %v894
        %v984 = vunpack.c.l.b16 %v895
        %v985 = vunpack.c.h.b16 %v895
        %v986 = vunpack.c.l.b16 %v896
        %v987 = vunpack.c.h.b16 %v896
        %v988 = vunpack.c.l.b16 %v897
        %v989 = vunpack.c.h.b16 %v897
        %v990 = vunpack.c.l.b16 %v898
        %v991 = vunpack.c.h.b16 %v898
        %v992 = vunpack.c.l.b16 %v899
        %v993 = vunpack.c.h.b16 %v899
        %v994 = vunpack.c.l.b16 %v900
        %v995 = vunpack.c.h.b16 %v900
        %v996 = vunpack.c.l.b16 %v901
        %v997 = vunpack.c.h.b16 %v901
        %v998 = vpack.c.b16 %v938, %v934
        %v999 = vpack.c.b16 %v939, %v935
        %v1000 = vpack.c.b16 %v940, %v936
        %v1001 = vpack.c.b16 %v941, %v937
        %v1002 = vpack.c.b16 %v946, %v942
        %v1003 = vpack.c.b16 %v947, %v943
        %v1004 = vpack.c.b16 %v948, %v944
        %v1005 = vpack.c.b16 %v949, %v945
        %v1006 = vpack.c.b16 %v954, %v950
        %v1007 = vpack.c.b16 %v955, %v951
        %v1008 = vpack.c.b16 %v956, %v952
        %v1009 = vpack.c.b16 %v957, %v953
        %v1010 = vpack.c.b16 %v962, %v958
        %v1011 = vpack.c.b16 %v963, %v959
        %v1012 = vpack.c.b16 %v964, %v960
        %v1013 = vpack.c.b16 %v965, %v961
        %v1014 = vpack.c.b16 %v970, %v966
        %v1015 = vpack.c.b16 %v971, %v967
        %v1016 = vpack.c.b16 %v972, %v968
        %v1017 = vpack.c.b16 %v973, %v969
        %v1018 = vpack.c.b16 %v978, %v974
        %v1019 = vpack.c.b16 %v979, %v975
        %v1020 = vpack.c.b16 %v980, %v976
        %v1021 = vpack.c.b16 %v981, %v977
        %v1022 = vpack.c.b16 %v986, %v982
        %v1023 = vpack.c.b16 %v987, %v983
        %v1024 = vpack.c.b16 %v988, %v984
        %v1025 = vpack.c.b16 %v989, %v985
        %v1026 = vpack.c.b16 %v994, %v990
        %v1027 = vpack.c.b16 %v995, %v991
        %v1028 = vpack.c.b16 %v996, %v992
        %v1029 = vpack.c.b16 %v997, %v993
        %1062 = vmatprep.subr.bf16.mxu0 %v999
        %1063 = vmatpush1.bf16.msra.mxu0 %v998
        %1064 = vmatprep.subr.bf16.mxu0 %v1003
        %1065 = vmatpush1.bf16.msra.mxu0 %v1002
        %1066 = vmatprep.subr.bf16.mxu0 %v1007
        %1067 = vmatpush1.bf16.msra.mxu0 %v1006
        %1068 = vmatprep.subr.bf16.mxu0 %v1011
        %1069 = vmatpush1.bf16.msra.mxu0 %v1010
        %1070 = vmatprep.subr.bf16.mxu0 %v1015
        %1071 = vmatpush1.bf16.msra.mxu0 %v1014
        %1072 = vmatprep.subr.bf16.mxu0 %v1019
        %1073 = vmatpush1.bf16.msra.mxu0 %v1018
        %1074 = vmatprep.subr.bf16.mxu0 %v1023
        %1075 = vmatpush1.bf16.msra.mxu0 %v1022
        %1076 = vmatprep.subr.bf16.mxu0 %v1027
        %1077 = vmatpush1.bf16.msra.mxu0 %v1026
        %1078 = vmatprep.subr.bf16.mxu0 0
        %1079 = vmatpush1.bf16.msra.mxu0 0
        %1080 = vmatprep.subr.bf16.mxu0 0
        %1081 = vmatpush1.bf16.msra.mxu0 0
        %1082 = vmatprep.subr.bf16.mxu0 0
        %1083 = vmatpush1.bf16.msra.mxu0 0
        %1084 = vmatprep.subr.bf16.mxu0 0
        %1085 = vmatpush1.bf16.msra.mxu0 0
        %1086 = vmatprep.subr.bf16.mxu0 0
        %1087 = vmatpush1.bf16.msra.mxu0 0
        %1088 = vmatprep.subr.bf16.mxu0 0
        %1089 = vmatpush1.bf16.msra.mxu0 0
        %1090 = vmatprep.subr.bf16.mxu0 0
        %1091 = vmatpush1.bf16.msra.mxu0 0
        %1092 = vmatprep.subr.bf16.mxu0 0
        %1093 = vmatpush1.bf16.msra.mxu0 0
        %1094 = vmatprep.mubr.bf16.mxu0 0
        %1095 = vmatmul.mubr.bf16.gmra.mrb[0].mxu0 %v869
        %v1096 = vpop.f32.mrb[0].mxu0
        %v1097 = vadd.f32 0.0, %v1096
        %v1098 = vpop.f32.mrb[0].mxu0
        %v1099 = vadd.f32 0.0, %v1098
        %v1100 = vpop.f32.mrb[0].mxu0
        %v1101 = vpop.f32.mrb[0].mxu0
        %1102 = vdwg.mxu0
        %1103 = vmatprep.subr.bf16.mxu0 %v1001
        %1104 = vmatpush1.bf16.msra.mxu0 %v1000
        %1105 = vmatprep.subr.bf16.mxu0 %v1005
        %1106 = vmatpush1.bf16.msra.mxu0 %v1004
        %1107 = vmatprep.subr.bf16.mxu0 %v1009
        %1108 = vmatpush1.bf16.msra.mxu0 %v1008
        %1109 = vmatprep.subr.bf16.mxu0 %v1013
        %1110 = vmatpush1.bf16.msra.mxu0 %v1012
        %1111 = vmatprep.subr.bf16.mxu0 %v1017
        %1112 = vmatpush1.bf16.msra.mxu0 %v1016
        %1113 = vmatprep.subr.bf16.mxu0 %v1021
        %1114 = vmatpush1.bf16.msra.mxu0 %v1020
        %1115 = vmatprep.subr.bf16.mxu0 %v1025
        %1116 = vmatpush1.bf16.msra.mxu0 %v1024
        %1117 = vmatprep.subr.bf16.mxu0 %v1029
        %1118 = vmatpush1.bf16.msra.mxu0 %v1028
        %1119 = vmatprep.subr.bf16.mxu0 0
        %1120 = vmatpush1.bf16.msra.mxu0 0
        %1121 = vmatprep.subr.bf16.mxu0 0
        %1122 = vmatpush1.bf16.msra.mxu0 0
        %1123 = vmatprep.subr.bf16.mxu0 0
        %1124 = vmatpush1.bf16.msra.mxu0 0
        %1125 = vmatprep.subr.bf16.mxu0 0
        %1126 = vmatpush1.bf16.msra.mxu0 0
        %1127 = vmatprep.subr.bf16.mxu0 0
        %1128 = vmatpush1.bf16.msra.mxu0 0
        %1129 = vmatprep.subr.bf16.mxu0 0
        %1130 = vmatpush1.bf16.msra.mxu0 0
        %1131 = vmatprep.subr.bf16.mxu0 0
        %1132 = vmatpush1.bf16.msra.mxu0 0
        %1133 = vmatprep.subr.bf16.mxu0 0
        %1134 = vmatpush1.bf16.msra.mxu0 0
        %1135 = vmatprep.mubr.bf16.mxu0 0
        %1136 = vmatmul.mubr.bf16.gmra.mrb[0].mxu0 %v869
        %v1137 = vpop.f32.mrb[0].mxu0
        %v1138 = vadd.f32 0.0, %v1137
        %v1139 = vpop.f32.mrb[0].mxu0
        %v1140 = vadd.f32 0.0, %v1139
        %v1141 = vpop.f32.mrb[0].mxu0
        %v1142 = vpop.f32.mrb[0].mxu0
        %1143 = vdwg.mxu0
        %v1144 = vadd.f32 %v865, %v1097
        %v1145 = vadd.f32 %v866, %v1099
        %v1146 = vadd.f32 %v867, %v1138
        %v1147 = vadd.f32 %v868, %v1140
        %v1148 = vxor.u32 %v1144, 2147483648
        %v1149 = vmul.f32 %v1148, 1.442695
        %v1150 = vpow.pop %v1149
        %v1151 = vadd.f32 %v1150, 1.0
        %v1152 = vrcp.pop %v1151
        %v1153 = vmul.f32 1.0, %v1152
        %v1154 = vxor.u32 %v1145, 2147483648
        %v1155 = vmul.f32 %v1154, 1.442695
        %v1156 = vpow.pop %v1155
        %v1157 = vadd.f32 %v1156, 1.0
        %v1158 = vrcp.pop %v1157
        %v1159 = vmul.f32 1.0, %v1158
        %v1160 = vtanh.pop %v1146
        %v1161 = vxor.u32 %v1147, 2147483648
        %v1162 = vmul.f32 %v1161, 1.442695
        %v1163 = vpow.pop %v1162
        %v1164 = vadd.f32 %v1163, 1.0
        %v1165 = vrcp.pop %v1164
        %v1166 = vmul.f32 1.0, %v1165
        %v1167 = vmul.f32 %v1159, %v858
        %v1168 = vmul.f32 %v1153, %v1160
        %v1169 = vadd.f32 %v1167, %v1168
        %v1170 = vtanh.pop %v1169
        %v1171 = vmul.f32 %v1166, %v1170
        %s1172 = scalar_lea.vmem %s397, %s859 [#allocation11]
        %1173 = vst [vmem:[%s1172] sm:$0xff] %v1171
        %s1174 = smul.u32 %s34, 5
        %s1175 = sadd.s32 %s1174, 1
        %s1176 = smul.u32 %s1175, 8
        %s1177 = sshra.s32 %s1176, 3
        %s1178 = sand.u32 %s1176, 7
        %s1179 = smul.u32 %s1177, 4
        %s1180 = smul.addr %s1179, 8
        %s1181 = scalar_lea.vmem [#allocation2], %s1180
        %v1182 = vld [vmem:[%s1181] sm:$0xff]
        %v1183 = vld [vmem:[%s1181 + $0x8] sm:$0xff]
        %v1184 = vld [vmem:[%s1181 + $0x10] sm:$0xff]
        %v1185 = vld [vmem:[%s1181 + $0x18] sm:$0xff]
        %v1186 = vpack.c.bf16 %v1171, %v1171
        %v1187 = vld [vmem:[%s359] sm:$0xff]
        %v1188 = vld [vmem:[%s359 + $0x8] sm:$0xff]
        %v1189 = vld [vmem:[%s359 + $0x10] sm:$0xff]
        %v1190 = vld [vmem:[%s359 + $0x18] sm:$0xff]
        %v1191 = vld [vmem:[%s359 + $0x20] sm:$0xff]
        %v1192 = vld [vmem:[%s359 + $0x28] sm:$0xff]
        %v1193 = vld [vmem:[%s359 + $0x30] sm:$0xff]
        %v1194 = vld [vmem:[%s359 + $0x38] sm:$0xff]
        %v1195 = vld [vmem:[%s359 + $0x40] sm:$0xff]
        %v1196 = vld [vmem:[%s359 + $0x48] sm:$0xff]
        %v1197 = vld [vmem:[%s359 + $0x50] sm:$0xff]
        %v1198 = vld [vmem:[%s359 + $0x58] sm:$0xff]
        %v1199 = vld [vmem:[%s359 + $0x60] sm:$0xff]
        %v1200 = vld [vmem:[%s359 + $0x68] sm:$0xff]
        %v1201 = vld [vmem:[%s359 + $0x70] sm:$0xff]
        %v1202 = vld [vmem:[%s359 + $0x78] sm:$0xff]
        %v1203 = vld [vmem:[%s359 + $0x80] sm:$0xff]
        %v1204 = vld [vmem:[%s359 + $0x88] sm:$0xff]
        %v1205 = vld [vmem:[%s359 + $0x90] sm:$0xff]
        %v1206 = vld [vmem:[%s359 + $0x98] sm:$0xff]
        %v1207 = vld [vmem:[%s359 + $0xa0] sm:$0xff]
        %v1208 = vld [vmem:[%s359 + $0xa8] sm:$0xff]
        %v1209 = vld [vmem:[%s359 + $0xb0] sm:$0xff]
        %v1210 = vld [vmem:[%s359 + $0xb8] sm:$0xff]
        %v1211 = vld [vmem:[%s359 + $0xc0] sm:$0xff]
        %v1212 = vld [vmem:[%s359 + $0xc8] sm:$0xff]
        %v1213 = vld [vmem:[%s359 + $0xd0] sm:$0xff]
        %v1214 = vld [vmem:[%s359 + $0xd8] sm:$0xff]
        %v1215 = vld [vmem:[%s359 + $0xe0] sm:$0xff]
        %v1216 = vld [vmem:[%s359 + $0xe8] sm:$0xff]
        %v1217 = vld [vmem:[%s359 + $0xf0] sm:$0xff]
        %v1218 = vld [vmem:[%s359 + $0xf8] sm:$0xff]
        %v1251 = vunpack.c.l.b16 %v1187
        %v1252 = vunpack.c.h.b16 %v1187
        %v1253 = vunpack.c.l.b16 %v1188
        %v1254 = vunpack.c.h.b16 %v1188
        %v1255 = vunpack.c.l.b16 %v1189
        %v1256 = vunpack.c.h.b16 %v1189
        %v1257 = vunpack.c.l.b16 %v1190
        %v1258 = vunpack.c.h.b16 %v1190
        %v1259 = vunpack.c.l.b16 %v1191
        %v1260 = vunpack.c.h.b16 %v1191
        %v1261 = vunpack.c.l.b16 %v1192
        %v1262 = vunpack.c.h.b16 %v1192
        %v1263 = vunpack.c.l.b16 %v1193
        %v1264 = vunpack.c.h.b16 %v1193
        %v1265 = vunpack.c.l.b16 %v1194
        %v1266 = vunpack.c.h.b16 %v1194
        %v1267 = vunpack.c.l.b16 %v1195
        %v1268 = vunpack.c.h.b16 %v1195
        %v1269 = vunpack.c.l.b16 %v1196
        %v1270 = vunpack.c.h.b16 %v1196
        %v1271 = vunpack.c.l.b16 %v1197
        %v1272 = vunpack.c.h.b16 %v1197
        %v1273 = vunpack.c.l.b16 %v1198
        %v1274 = vunpack.c.h.b16 %v1198
        %v1275 = vunpack.c.l.b16 %v1199
        %v1276 = vunpack.c.h.b16 %v1199
        %v1277 = vunpack.c.l.b16 %v1200
        %v1278 = vunpack.c.h.b16 %v1200
        %v1279 = vunpack.c.l.b16 %v1201
        %v1280 = vunpack.c.h.b16 %v1201
        %v1281 = vunpack.c.l.b16 %v1202
        %v1282 = vunpack.c.h.b16 %v1202
        %v1283 = vunpack.c.l.b16 %v1203
        %v1284 = vunpack.c.h.b16 %v1203
        %v1285 = vunpack.c.l.b16 %v1204
        %v1286 = vunpack.c.h.b16 %v1204
        %v1287 = vunpack.c.l.b16 %v1205
        %v1288 = vunpack.c.h.b16 %v1205
        %v1289 = vunpack.c.l.b16 %v1206
        %v1290 = vunpack.c.h.b16 %v1206
        %v1291 = vunpack.c.l.b16 %v1207
        %v1292 = vunpack.c.h.b16 %v1207
        %v1293 = vunpack.c.l.b16 %v1208
        %v1294 = vunpack.c.h.b16 %v1208
        %v1295 = vunpack.c.l.b16 %v1209
        %v1296 = vunpack.c.h.b16 %v1209
        %v1297 = vunpack.c.l.b16 %v1210
        %v1298 = vunpack.c.h.b16 %v1210
        %v1299 = vunpack.c.l.b16 %v1211
        %v1300 = vunpack.c.h.b16 %v1211
        %v1301 = vunpack.c.l.b16 %v1212
        %v1302 = vunpack.c.h.b16 %v1212
        %v1303 = vunpack.c.l.b16 %v1213
        %v1304 = vunpack.c.h.b16 %v1213
        %v1305 = vunpack.c.l.b16 %v1214
        %v1306 = vunpack.c.h.b16 %v1214
        %v1307 = vunpack.c.l.b16 %v1215
        %v1308 = vunpack.c.h.b16 %v1215
        %v1309 = vunpack.c.l.b16 %v1216
        %v1310 = vunpack.c.h.b16 %v1216
        %v1311 = vunpack.c.l.b16 %v1217
        %v1312 = vunpack.c.h.b16 %v1217
        %v1313 = vunpack.c.l.b16 %v1218
        %v1314 = vunpack.c.h.b16 %v1218
        %v1315 = vpack.c.b16 %v1255, %v1251
        %v1316 = vpack.c.b16 %v1256, %v1252
        %v1317 = vpack.c.b16 %v1257, %v1253
        %v1318 = vpack.c.b16 %v1258, %v1254
        %v1319 = vpack.c.b16 %v1263, %v1259
        %v1320 = vpack.c.b16 %v1264, %v1260
        %v1321 = vpack.c.b16 %v1265, %v1261
        %v1322 = vpack.c.b16 %v1266, %v1262
        %v1323 = vpack.c.b16 %v1271, %v1267
        %v1324 = vpack.c.b16 %v1272, %v1268
        %v1325 = vpack.c.b16 %v1273, %v1269
        %v1326 = vpack.c.b16 %v1274, %v1270
        %v1327 = vpack.c.b16 %v1279, %v1275
        %v1328 = vpack.c.b16 %v1280, %v1276
        %v1329 = vpack.c.b16 %v1281, %v1277
        %v1330 = vpack.c.b16 %v1282, %v1278
        %v1331 = vpack.c.b16 %v1287, %v1283
        %v1332 = vpack.c.b16 %v1288, %v1284
        %v1333 = vpack.c.b16 %v1289, %v1285
        %v1334 = vpack.c.b16 %v1290, %v1286
        %v1335 = vpack.c.b16 %v1295, %v1291
        %v1336 = vpack.c.b16 %v1296, %v1292
        %v1337 = vpack.c.b16 %v1297, %v1293
        %v1338 = vpack.c.b16 %v1298, %v1294
        %v1339 = vpack.c.b16 %v1303, %v1299
        %v1340 = vpack.c.b16 %v1304, %v1300
        %v1341 = vpack.c.b16 %v1305, %v1301
        %v1342 = vpack.c.b16 %v1306, %v1302
        %v1343 = vpack.c.b16 %v1311, %v1307
        %v1344 = vpack.c.b16 %v1312, %v1308
        %v1345 = vpack.c.b16 %v1313, %v1309
        %v1346 = vpack.c.b16 %v1314, %v1310
        %1379 = vmatprep.subr.bf16.mxu0 %v1316
        %1380 = vmatpush1.bf16.msra.mxu0 %v1315
        %1381 = vmatprep.subr.bf16.mxu0 %v1320
        %1382 = vmatpush1.bf16.msra.mxu0 %v1319
        %1383 = vmatprep.subr.bf16.mxu0 %v1324
        %1384 = vmatpush1.bf16.msra.mxu0 %v1323
        %1385 = vmatprep.subr.bf16.mxu0 %v1328
        %1386 = vmatpush1.bf16.msra.mxu0 %v1327
        %1387 = vmatprep.subr.bf16.mxu0 %v1332
        %1388 = vmatpush1.bf16.msra.mxu0 %v1331
        %1389 = vmatprep.subr.bf16.mxu0 %v1336
        %1390 = vmatpush1.bf16.msra.mxu0 %v1335
        %1391 = vmatprep.subr.bf16.mxu0 %v1340
        %1392 = vmatpush1.bf16.msra.mxu0 %v1339
        %1393 = vmatprep.subr.bf16.mxu0 %v1344
        %1394 = vmatpush1.bf16.msra.mxu0 %v1343
        %1395 = vmatprep.subr.bf16.mxu0 0
        %1396 = vmatpush1.bf16.msra.mxu0 0
        %1397 = vmatprep.subr.bf16.mxu0 0
        %1398 = vmatpush1.bf16.msra.mxu0 0
        %1399 = vmatprep.subr.bf16.mxu0 0
        %1400 = vmatpush1.bf16.msra.mxu0 0
        %1401 = vmatprep.subr.bf16.mxu0 0
        %1402 = vmatpush1.bf16.msra.mxu0 0
        %1403 = vmatprep.subr.bf16.mxu0 0
        %1404 = vmatpush1.bf16.msra.mxu0 0
        %1405 = vmatprep.subr.bf16.mxu0 0
        %1406 = vmatpush1.bf16.msra.mxu0 0
        %1407 = vmatprep.subr.bf16.mxu0 0
        %1408 = vmatpush1.bf16.msra.mxu0 0
        %1409 = vmatprep.subr.bf16.mxu0 0
        %1410 = vmatpush1.bf16.msra.mxu0 0
        %1411 = vmatprep.mubr.bf16.mxu0 0
        %1412 = vmatmul.mubr.bf16.gmra.mrb[0].mxu0 %v1186
        %v1413 = vpop.f32.mrb[0].mxu0
        %v1414 = vadd.f32 0.0, %v1413
        %v1415 = vpop.f32.mrb[0].mxu0
        %v1416 = vadd.f32 0.0, %v1415
        %v1417 = vpop.f32.mrb[0].mxu0
        %v1418 = vpop.f32.mrb[0].mxu0
        %1419 = vdwg.mxu0
        %1420 = vmatprep.subr.bf16.mxu0 %v1318
        %1421 = vmatpush1.bf16.msra.mxu0 %v1317
        %1422 = vmatprep.subr.bf16.mxu0 %v1322
        %1423 = vmatpush1.bf16.msra.mxu0 %v1321
        %1424 = vmatprep.subr.bf16.mxu0 %v1326
        %1425 = vmatpush1.bf16.msra.mxu0 %v1325
        %1426 = vmatprep.subr.bf16.mxu0 %v1330
        %1427 = vmatpush1.bf16.msra.mxu0 %v1329
        %1428 = vmatprep.subr.bf16.mxu0 %v1334
        %1429 = vmatpush1.bf16.msra.mxu0 %v1333
        %1430 = vmatprep.subr.bf16.mxu0 %v1338
        %1431 = vmatpush1.bf16.msra.mxu0 %v1337
        %1432 = vmatprep.subr.bf16.mxu0 %v1342
        %1433 = vmatpush1.bf16.msra.mxu0 %v1341
        %1434 = vmatprep.subr.bf16.mxu0 %v1346
        %1435 = vmatpush1.bf16.msra.mxu0 %v1345
        %1436 = vmatprep.subr.bf16.mxu0 0
        %1437 = vmatpush1.bf16.msra.mxu0 0
        %1438 = vmatprep.subr.bf16.mxu0 0
        %1439 = vmatpush1.bf16.msra.mxu0 0
        %1440 = vmatprep.subr.bf16.mxu0 0
        %1441 = vmatpush1.bf16.msra.mxu0 0
        %1442 = vmatprep.subr.bf16.mxu0 0
        %1443 = vmatpush1.bf16.msra.mxu0 0
        %1444 = vmatprep.subr.bf16.mxu0 0
        %1445 = vmatpush1.bf16.msra.mxu0 0
        %1446 = vmatprep.subr.bf16.mxu0 0
        %1447 = vmatpush1.bf16.msra.mxu0 0
        %1448 = vmatprep.subr.bf16.mxu0 0
        %1449 = vmatpush1.bf16.msra.mxu0 0
        %1450 = vmatprep.subr.bf16.mxu0 0
        %1451 = vmatpush1.bf16.msra.mxu0 0
        %1452 = vmatprep.mubr.bf16.mxu0 0
        %1453 = vmatmul.mubr.bf16.gmra.mrb[0].mxu0 %v1186
        %v1454 = vpop.f32.mrb[0].mxu0
        %v1455 = vadd.f32 0.0, %v1454
        %v1456 = vpop.f32.mrb[0].mxu0
        %v1457 = vadd.f32 0.0, %v1456
        %v1458 = vpop.f32.mrb[0].mxu0
        %v1459 = vpop.f32.mrb[0].mxu0
        %1460 = vdwg.mxu0
        %v1461 = vadd.f32 %v1182, %v1414
        %v1462 = vadd.f32 %v1183, %v1416
        %v1463 = vadd.f32 %v1184, %v1455
        %v1464 = vadd.f32 %v1185, %v1457
        %v1465 = vxor.u32 %v1461, 2147483648
        %v1466 = vmul.f32 %v1465, 1.442695
        %v1467 = vpow.pop %v1466
        %v1468 = vadd.f32 %v1467, 1.0
        %v1469 = vrcp.pop %v1468
        %v1470 = vmul.f32 1.0, %v1469
        %v1471 = vxor.u32 %v1462, 2147483648
        %v1472 = vmul.f32 %v1471, 1.442695
        %v1473 = vpow.pop %v1472
        %v1474 = vadd.f32 %v1473, 1.0
        %v1475 = vrcp.pop %v1474
        %v1476 = vmul.f32 1.0, %v1475
        %v1477 = vtanh.pop %v1463
        %v1478 = vxor.u32 %v1464, 2147483648
        %v1479 = vmul.f32 %v1478, 1.442695
        %v1480 = vpow.pop %v1479
        %v1481 = vadd.f32 %v1480, 1.0
        %v1482 = vrcp.pop %v1481
        %v1483 = vmul.f32 1.0, %v1482
        %v1484 = vmul.f32 %v1476, %v1169
        %v1485 = vmul.f32 %v1470, %v1477
        %v1486 = vadd.f32 %v1484, %v1485
        %v1487 = vtanh.pop %v1486
        %v1488 = vmul.f32 %v1483, %v1487
        %s1489 = scalar_lea.vmem %s397, %s1176 [#allocation11]
        %1490 = vst [vmem:[%s1489] sm:$0xff] %v1488
        %s1491 = smul.u32 %s34, 3
        %s1492 = sadd.s32 %s1491, 2
        %s1493 = smul.u32 %s1492, 8
        %s1494 = sshra.s32 %s1493, 3
        %s1495 = sand.u32 %s1493, 7
        %s1496 = smul.u32 %s1494, 4
        %s1497 = smul.addr %s1496, 8
        %s1498 = scalar_lea.vmem [#allocation2], %s1497
        %v1499 = vld [vmem:[%s1498] sm:$0xff]
        %v1500 = vld [vmem:[%s1498 + $0x8] sm:$0xff]
        %v1501 = vld [vmem:[%s1498 + $0x10] sm:$0xff]
        %v1502 = vld [vmem:[%s1498 + $0x18] sm:$0xff]
        %v1503 = vpack.c.bf16 %v1488, %v1488
        %v1504 = vld [vmem:[%s359] sm:$0xff]
        %v1505 = vld [vmem:[%s359 + $0x8] sm:$0xff]
        %v1506 = vld [vmem:[%s359 + $0x10] sm:$0xff]
        %v1507 = vld [vmem:[%s359 + $0x18] sm:$0xff]
        %v1508 = vld [vmem:[%s359 + $0x20] sm:$0xff]
        %v1509 = vld [vmem:[%s359 + $0x28] sm:$0xff]
        %v1510 = vld [vmem:[%s359 + $0x30] sm:$0xff]
        %v1511 = vld [vmem:[%s359 + $0x38] sm:$0xff]
        %v1512 = vld [vmem:[%s359 + $0x40] sm:$0xff]
        %v1513 = vld [vmem:[%s359 + $0x48] sm:$0xff]
        %v1514 = vld [vmem:[%s359 + $0x50] sm:$0xff]
        %v1515 = vld [vmem:[%s359 + $0x58] sm:$0xff]
        %v1516 = vld [vmem:[%s359 + $0x60] sm:$0xff]
        %v1517 = vld [vmem:[%s359 + $0x68] sm:$0xff]
        %v1518 = vld [vmem:[%s359 + $0x70] sm:$0xff]
        %v1519 = vld [vmem:[%s359 + $0x78] sm:$0xff]
        %v1520 = vld [vmem:[%s359 + $0x80] sm:$0xff]
        %v1521 = vld [vmem:[%s359 + $0x88] sm:$0xff]
        %v1522 = vld [vmem:[%s359 + $0x90] sm:$0xff]
        %v1523 = vld [vmem:[%s359 + $0x98] sm:$0xff]
        %v1524 = vld [vmem:[%s359 + $0xa0] sm:$0xff]
        %v1525 = vld [vmem:[%s359 + $0xa8] sm:$0xff]
        %v1526 = vld [vmem:[%s359 + $0xb0] sm:$0xff]
        %v1527 = vld [vmem:[%s359 + $0xb8] sm:$0xff]
        %v1528 = vld [vmem:[%s359 + $0xc0] sm:$0xff]
        %v1529 = vld [vmem:[%s359 + $0xc8] sm:$0xff]
        %v1530 = vld [vmem:[%s359 + $0xd0] sm:$0xff]
        %v1531 = vld [vmem:[%s359 + $0xd8] sm:$0xff]
        %v1532 = vld [vmem:[%s359 + $0xe0] sm:$0xff]
        %v1533 = vld [vmem:[%s359 + $0xe8] sm:$0xff]
        %v1534 = vld [vmem:[%s359 + $0xf0] sm:$0xff]
        %v1535 = vld [vmem:[%s359 + $0xf8] sm:$0xff]
        %v1568 = vunpack.c.l.b16 %v1504
        %v1569 = vunpack.c.h.b16 %v1504
        %v1570 = vunpack.c.l.b16 %v1505
        %v1571 = vunpack.c.h.b16 %v1505
        %v1572 = vunpack.c.l.b16 %v1506
        %v1573 = vunpack.c.h.b16 %v1506
        %v1574 = vunpack.c.l.b16 %v1507
        %v1575 = vunpack.c.h.b16 %v1507
        %v1576 = vunpack.c.l.b16 %v1508
        %v1577 = vunpack.c.h.b16 %v1508
        %v1578 = vunpack.c.l.b16 %v1509
        %v1579 = vunpack.c.h.b16 %v1509
        %v1580 = vunpack.c.l.b16 %v1510
        %v1581 = vunpack.c.h.b16 %v1510
        %v1582 = vunpack.c.l.b16 %v1511
        %v1583 = vunpack.c.h.b16 %v1511
        %v1584 = vunpack.c.l.b16 %v1512
        %v1585 = vunpack.c.h.b16 %v1512
        %v1586 = vunpack.c.l.b16 %v1513
        %v1587 = vunpack.c.h.b16 %v1513
        %v1588 = vunpack.c.l.b16 %v1514
        %v1589 = vunpack.c.h.b16 %v1514
        %v1590 = vunpack.c.l.b16 %v1515
        %v1591 = vunpack.c.h.b16 %v1515
        %v1592 = vunpack.c.l.b16 %v1516
        %v1593 = vunpack.c.h.b16 %v1516
        %v1594 = vunpack.c.l.b16 %v1517
        %v1595 = vunpack.c.h.b16 %v1517
        %v1596 = vunpack.c.l.b16 %v1518
        %v1597 = vunpack.c.h.b16 %v1518
        %v1598 = vunpack.c.l.b16 %v1519
        %v1599 = vunpack.c.h.b16 %v1519
        %v1600 = vunpack.c.l.b16 %v1520
        %v1601 = vunpack.c.h.b16 %v1520
        %v1602 = vunpack.c.l.b16 %v1521
        %v1603 = vunpack.c.h.b16 %v1521
        %v1604 = vunpack.c.l.b16 %v1522
        %v1605 = vunpack.c.h.b16 %v1522
        %v1606 = vunpack.c.l.b16 %v1523
        %v1607 = vunpack.c.h.b16 %v1523
        %v1608 = vunpack.c.l.b16 %v1524
        %v1609 = vunpack.c.h.b16 %v1524
        %v1610 = vunpack.c.l.b16 %v1525
        %v1611 = vunpack.c.h.b16 %v1525
        %v1612 = vunpack.c.l.b16 %v1526
        %v1613 = vunpack.c.h.b16 %v1526
        %v1614 = vunpack.c.l.b16 %v1527
        %v1615 = vunpack.c.h.b16 %v1527
        %v1616 = vunpack.c.l.b16 %v1528
        %v1617 = vunpack.c.h.b16 %v1528
        %v1618 = vunpack.c.l.b16 %v1529
        %v1619 = vunpack.c.h.b16 %v1529
        %v1620 = vunpack.c.l.b16 %v1530
        %v1621 = vunpack.c.h.b16 %v1530
        %v1622 = vunpack.c.l.b16 %v1531
        %v1623 = vunpack.c.h.b16 %v1531
        %v1624 = vunpack.c.l.b16 %v1532
        %v1625 = vunpack.c.h.b16 %v1532
        %v1626 = vunpack.c.l.b16 %v1533
        %v1627 = vunpack.c.h.b16 %v1533
        %v1628 = vunpack.c.l.b16 %v1534
        %v1629 = vunpack.c.h.b16 %v1534
        %v1630 = vunpack.c.l.b16 %v1535
        %v1631 = vunpack.c.h.b16 %v1535
        %v1632 = vpack.c.b16 %v1572, %v1568
        %v1633 = vpack.c.b16 %v1573, %v1569
        %v1634 = vpack.c.b16 %v1574, %v1570
        %v1635 = vpack.c.b16 %v1575, %v1571
        %v1636 = vpack.c.b16 %v1580, %v1576
        %v1637 = vpack.c.b16 %v1581, %v1577
        %v1638 = vpack.c.b16 %v1582, %v1578
        %v1639 = vpack.c.b16 %v1583, %v1579
        %v1640 = vpack.c.b16 %v1588, %v1584
        %v1641 = vpack.c.b16 %v1589, %v1585
        %v1642 = vpack.c.b16 %v1590, %v1586
        %v1643 = vpack.c.b16 %v1591, %v1587
        %v1644 = vpack.c.b16 %v1596, %v1592
        %v1645 = vpack.c.b16 %v1597, %v1593
        %v1646 = vpack.c.b16 %v1598, %v1594
        %v1647 = vpack.c.b16 %v1599, %v1595
        %v1648 = vpack.c.b16 %v1604, %v1600
        %v1649 = vpack.c.b16 %v1605, %v1601
        %v1650 = vpack.c.b16 %v1606, %v1602
        %v1651 = vpack.c.b16 %v1607, %v1603
        %v1652 = vpack.c.b16 %v1612, %v1608
        %v1653 = vpack.c.b16 %v1613, %v1609
        %v1654 = vpack.c.b16 %v1614, %v1610
        %v1655 = vpack.c.b16 %v1615, %v1611
        %v1656 = vpack.c.b16 %v1620, %v1616
        %v1657 = vpack.c.b16 %v1621, %v1617
        %v1658 = vpack.c.b16 %v1622, %v1618
        %v1659 = vpack.c.b16 %v1623, %v1619
        %v1660 = vpack.c.b16 %v1628, %v1624
        %v1661 = vpack.c.b16 %v1629, %v1625
        %v1662 = vpack.c.b16 %v1630, %v1626
        %v1663 = vpack.c.b16 %v1631, %v1627
        %1696 = vmatprep.subr.bf16.mxu0 %v1633
        %1697 = vmatpush1.bf16.msra.mxu0 %v1632
        %1698 = vmatprep.subr.bf16.mxu0 %v1637
        %1699 = vmatpush1.bf16.msra.mxu0 %v1636
        %1700 = vmatprep.subr.bf16.mxu0 %v1641
        %1701 = vmatpush1.bf16.msra.mxu0 %v1640
        %1702 = vmatprep.subr.bf16.mxu0 %v1645
        %1703 = vmatpush1.bf16.msra.mxu0 %v1644
        %1704 = vmatprep.subr.bf16.mxu0 %v1649
        %1705 = vmatpush1.bf16.msra.mxu0 %v1648
        %1706 = vmatprep.subr.bf16.mxu0 %v1653
        %1707 = vmatpush1.bf16.msra.mxu0 %v1652
        %1708 = vmatprep.subr.bf16.mxu0 %v1657
        %1709 = vmatpush1.bf16.msra.mxu0 %v1656
        %1710 = vmatprep.subr.bf16.mxu0 %v1661
        %1711 = vmatpush1.bf16.msra.mxu0 %v1660
        %1712 = vmatprep.subr.bf16.mxu0 0
        %1713 = vmatpush1.bf16.msra.mxu0 0
        %1714 = vmatprep.subr.bf16.mxu0 0
        %1715 = vmatpush1.bf16.msra.mxu0 0
        %1716 = vmatprep.subr.bf16.mxu0 0
        %1717 = vmatpush1.bf16.msra.mxu0 0
        %1718 = vmatprep.subr.bf16.mxu0 0
        %1719 = vmatpush1.bf16.msra.mxu0 0
        %1720 = vmatprep.subr.bf16.mxu0 0
        %1721 = vmatpush1.bf16.msra.mxu0 0
        %1722 = vmatprep.subr.bf16.mxu0 0
        %1723 = vmatpush1.bf16.msra.mxu0 0
        %1724 = vmatprep.subr.bf16.mxu0 0
        %1725 = vmatpush1.bf16.msra.mxu0 0
        %1726 = vmatprep.subr.bf16.mxu0 0
        %1727 = vmatpush1.bf16.msra.mxu0 0
        %1728 = vmatprep.mubr.bf16.mxu0 0
        %1729 = vmatmul.mubr.bf16.gmra.mrb[0].mxu0 %v1503
        %v1730 = vpop.f32.mrb[0].mxu0
        %v1731 = vadd.f32 0.0, %v1730
        %v1732 = vpop.f32.mrb[0].mxu0
        %v1733 = vadd.f32 0.0, %v1732
        %v1734 = vpop.f32.mrb[0].mxu0
        %v1735 = vpop.f32.mrb[0].mxu0
        %1736 = vdwg.mxu0
        %1737 = vmatprep.subr.bf16.mxu0 %v1635
        %1738 = vmatpush1.bf16.msra.mxu0 %v1634
        %1739 = vmatprep.subr.bf16.mxu0 %v1639
        %1740 = vmatpush1.bf16.msra.mxu0 %v1638
        %1741 = vmatprep.subr.bf16.mxu0 %v1643
        %1742 = vmatpush1.bf16.msra.mxu0 %v1642
        %1743 = vmatprep.subr.bf16.mxu0 %v1647
        %1744 = vmatpush1.bf16.msra.mxu0 %v1646
        %1745 = vmatprep.subr.bf16.mxu0 %v1651
        %1746 = vmatpush1.bf16.msra.mxu0 %v1650
        %1747 = vmatprep.subr.bf16.mxu0 %v1655
        %1748 = vmatpush1.bf16.msra.mxu0 %v1654
        %1749 = vmatprep.subr.bf16.mxu0 %v1659
        %1750 = vmatpush1.bf16.msra.mxu0 %v1658
        %1751 = vmatprep.subr.bf16.mxu0 %v1663
        %1752 = vmatpush1.bf16.msra.mxu0 %v1662
        %1753 = vmatprep.subr.bf16.mxu0 0
        %1754 = vmatpush1.bf16.msra.mxu0 0
        %1755 = vmatprep.subr.bf16.mxu0 0
        %1756 = vmatpush1.bf16.msra.mxu0 0
        %1757 = vmatprep.subr.bf16.mxu0 0
        %1758 = vmatpush1.bf16.msra.mxu0 0
        %1759 = vmatprep.subr.bf16.mxu0 0
        %1760 = vmatpush1.bf16.msra.mxu0 0
        %1761 = vmatprep.subr.bf16.mxu0 0
        %1762 = vmatpush1.bf16.msra.mxu0 0
        %1763 = vmatprep.subr.bf16.mxu0 0
        %1764 = vmatpush1.bf16.msra.mxu0 0
        %1765 = vmatprep.subr.bf16.mxu0 0
        %1766 = vmatpush1.bf16.msra.mxu0 0
        %1767 = vmatprep.subr.bf16.mxu0 0
        %1768 = vmatpush1.bf16.msra.mxu0 0
        %1769 = vmatprep.mubr.bf16.mxu0 0
        %1770 = vmatmul.mubr.bf16.gmra.mrb[0].mxu0 %v1503
        %v1771 = vpop.f32.mrb[0].mxu0
        %v1772 = vadd.f32 0.0, %v1771
        %v1773 = vpop.f32.mrb[0].mxu0
        %v1774 = vadd.f32 0.0, %v1773
        %v1775 = vpop.f32.mrb[0].mxu0
        %v1776 = vpop.f32.mrb[0].mxu0
        %1777 = vdwg.mxu0
        %v1778 = vadd.f32 %v1499, %v1731
        %v1779 = vadd.f32 %v1500, %v1733
        %v1780 = vadd.f32 %v1501, %v1772
        %v1781 = vadd.f32 %v1502, %v1774
        %v1782 = vxor.u32 %v1778, 2147483648
        %v1783 = vmul.f32 %v1782, 1.442695
        %v1784 = vpow.pop %v1783
        %v1785 = vadd.f32 %v1784, 1.0
        %v1786 = vrcp.pop %v1785
        %v1787 = vmul.f32 1.0, %v1786
        %v1788 = vxor.u32 %v1779, 2147483648
        %v1789 = vmul.f32 %v1788, 1.442695
        %v1790 = vpow.pop %v1789
        %v1791 = vadd.f32 %v1790, 1.0
        %v1792 = vrcp.pop %v1791
        %v1793 = vmul.f32 1.0, %v1792
        %v1794 = vtanh.pop %v1780
        %v1795 = vxor.u32 %v1781, 2147483648
        %v1796 = vmul.f32 %v1795, 1.442695
        %v1797 = vpow.pop %v1796
        %v1798 = vadd.f32 %v1797, 1.0
        %v1799 = vrcp.pop %v1798
        %v1800 = vmul.f32 1.0, %v1799
        %v1801 = vmul.f32 %v1793, %v1486
        %v1802 = vmul.f32 %v1787, %v1794
        %v1803 = vadd.f32 %v1801, %v1802
        %v1804 = vtanh.pop %v1803
        %v1805 = vmul.f32 %v1800, %v1804
        %s1806 = scalar_lea.vmem %s397, %s1493 [#allocation11]
        %1807 = vst [vmem:[%s1806] sm:$0xff] %v1805
        %s1808 = sadd.s32 %s34, 3
        %s1809 = smul.u32 %s1808, 8
        %s1810 = sshra.s32 %s1809, 3
        %s1811 = sand.u32 %s1809, 7
        %s1812 = smul.u32 %s1810, 4
        %s1813 = smul.addr %s1812, 8
        %s1814 = scalar_lea.vmem [#allocation2], %s1813
        %v1815 = vld [vmem:[%s1814] sm:$0xff]
        %v1816 = vld [vmem:[%s1814 + $0x8] sm:$0xff]
        %v1817 = vld [vmem:[%s1814 + $0x10] sm:$0xff]
        %v1818 = vld [vmem:[%s1814 + $0x18] sm:$0xff]
        %v1819 = vpack.c.bf16 %v1805, %v1805
        %v1820 = vld [vmem:[%s359] sm:$0xff]
        %v1821 = vld [vmem:[%s359 + $0x8] sm:$0xff]
        %v1822 = vld [vmem:[%s359 + $0x10] sm:$0xff]
        %v1823 = vld [vmem:[%s359 + $0x18] sm:$0xff]
        %v1824 = vld [vmem:[%s359 + $0x20] sm:$0xff]
        %v1825 = vld [vmem:[%s359 + $0x28] sm:$0xff]
        %v1826 = vld [vmem:[%s359 + $0x30] sm:$0xff]
        %v1827 = vld [vmem:[%s359 + $0x38] sm:$0xff]
        %v1828 = vld [vmem:[%s359 + $0x40] sm:$0xff]
        %v1829 = vld [vmem:[%s359 + $0x48] sm:$0xff]
        %v1830 = vld [vmem:[%s359 + $0x50] sm:$0xff]
        %v1831 = vld [vmem:[%s359 + $0x58] sm:$0xff]
        %v1832 = vld [vmem:[%s359 + $0x60] sm:$0xff]
        %v1833 = vld [vmem:[%s359 + $0x68] sm:$0xff]
        %v1834 = vld [vmem:[%s359 + $0x70] sm:$0xff]
        %v1835 = vld [vmem:[%s359 + $0x78] sm:$0xff]
        %v1836 = vld [vmem:[%s359 + $0x80] sm:$0xff]
        %v1837 = vld [vmem:[%s359 + $0x88] sm:$0xff]
        %v1838 = vld [vmem:[%s359 + $0x90] sm:$0xff]
        %v1839 = vld [vmem:[%s359 + $0x98] sm:$0xff]
        %v1840 = vld [vmem:[%s359 + $0xa0] sm:$0xff]
        %v1841 = vld [vmem:[%s359 + $0xa8] sm:$0xff]
        %v1842 = vld [vmem:[%s359 + $0xb0] sm:$0xff]
        %v1843 = vld [vmem:[%s359 + $0xb8] sm:$0xff]
        %v1844 = vld [vmem:[%s359 + $0xc0] sm:$0xff]
        %v1845 = vld [vmem:[%s359 + $0xc8] sm:$0xff]
        %v1846 = vld [vmem:[%s359 + $0xd0] sm:$0xff]
        %v1847 = vld [vmem:[%s359 + $0xd8] sm:$0xff]
        %v1848 = vld [vmem:[%s359 + $0xe0] sm:$0xff]
        %v1849 = vld [vmem:[%s359 + $0xe8] sm:$0xff]
        %v1850 = vld [vmem:[%s359 + $0xf0] sm:$0xff]
        %v1851 = vld [vmem:[%s359 + $0xf8] sm:$0xff]
        %v1884 = vunpack.c.l.b16 %v1820
        %v1885 = vunpack.c.h.b16 %v1820
        %v1886 = vunpack.c.l.b16 %v1821
        %v1887 = vunpack.c.h.b16 %v1821
        %v1888 = vunpack.c.l.b16 %v1822
        %v1889 = vunpack.c.h.b16 %v1822
        %v1890 = vunpack.c.l.b16 %v1823
        %v1891 = vunpack.c.h.b16 %v1823
        %v1892 = vunpack.c.l.b16 %v1824
        %v1893 = vunpack.c.h.b16 %v1824
        %v1894 = vunpack.c.l.b16 %v1825
        %v1895 = vunpack.c.h.b16 %v1825
        %v1896 = vunpack.c.l.b16 %v1826
        %v1897 = vunpack.c.h.b16 %v1826
        %v1898 = vunpack.c.l.b16 %v1827
        %v1899 = vunpack.c.h.b16 %v1827
        %v1900 = vunpack.c.l.b16 %v1828
        %v1901 = vunpack.c.h.b16 %v1828
        %v1902 = vunpack.c.l.b16 %v1829
        %v1903 = vunpack.c.h.b16 %v1829
        %v1904 = vunpack.c.l.b16 %v1830
        %v1905 = vunpack.c.h.b16 %v1830
        %v1906 = vunpack.c.l.b16 %v1831
        %v1907 = vunpack.c.h.b16 %v1831
        %v1908 = vunpack.c.l.b16 %v1832
        %v1909 = vunpack.c.h.b16 %v1832
        %v1910 = vunpack.c.l.b16 %v1833
        %v1911 = vunpack.c.h.b16 %v1833
        %v1912 = vunpack.c.l.b16 %v1834
        %v1913 = vunpack.c.h.b16 %v1834
        %v1914 = vunpack.c.l.b16 %v1835
        %v1915 = vunpack.c.h.b16 %v1835
        %v1916 = vunpack.c.l.b16 %v1836
        %v1917 = vunpack.c.h.b16 %v1836
        %v1918 = vunpack.c.l.b16 %v1837
        %v1919 = vunpack.c.h.b16 %v1837
        %v1920 = vunpack.c.l.b16 %v1838
        %v1921 = vunpack.c.h.b16 %v1838
        %v1922 = vunpack.c.l.b16 %v1839
        %v1923 = vunpack.c.h.b16 %v1839
        %v1924 = vunpack.c.l.b16 %v1840
        %v1925 = vunpack.c.h.b16 %v1840
        %v1926 = vunpack.c.l.b16 %v1841
        %v1927 = vunpack.c.h.b16 %v1841
        %v1928 = vunpack.c.l.b16 %v1842
        %v1929 = vunpack.c.h.b16 %v1842
        %v1930 = vunpack.c.l.b16 %v1843
        %v1931 = vunpack.c.h.b16 %v1843
        %v1932 = vunpack.c.l.b16 %v1844
        %v1933 = vunpack.c.h.b16 %v1844
        %v1934 = vunpack.c.l.b16 %v1845
        %v1935 = vunpack.c.h.b16 %v1845
        %v1936 = vunpack.c.l.b16 %v1846
        %v1937 = vunpack.c.h.b16 %v1846
        %v1938 = vunpack.c.l.b16 %v1847
        %v1939 = vunpack.c.h.b16 %v1847
        %v1940 = vunpack.c.l.b16 %v1848
        %v1941 = vunpack.c.h.b16 %v1848
        %v1942 = vunpack.c.l.b16 %v1849
        %v1943 = vunpack.c.h.b16 %v1849
        %v1944 = vunpack.c.l.b16 %v1850
        %v1945 = vunpack.c.h.b16 %v1850
        %v1946 = vunpack.c.l.b16 %v1851
        %v1947 = vunpack.c.h.b16 %v1851
        %v1948 = vpack.c.b16 %v1888, %v1884
        %v1949 = vpack.c.b16 %v1889, %v1885
        %v1950 = vpack.c.b16 %v1890, %v1886
        %v1951 = vpack.c.b16 %v1891, %v1887
        %v1952 = vpack.c.b16 %v1896, %v1892
        %v1953 = vpack.c.b16 %v1897, %v1893
        %v1954 = vpack.c.b16 %v1898, %v1894
        %v1955 = vpack.c.b16 %v1899, %v1895
        %v1956 = vpack.c.b16 %v1904, %v1900
        %v1957 = vpack.c.b16 %v1905, %v1901
        %v1958 = vpack.c.b16 %v1906, %v1902
        %v1959 = vpack.c.b16 %v1907, %v1903
        %v1960 = vpack.c.b16 %v1912, %v1908
        %v1961 = vpack.c.b16 %v1913, %v1909
        %v1962 = vpack.c.b16 %v1914, %v1910
        %v1963 = vpack.c.b16 %v1915, %v1911
        %v1964 = vpack.c.b16 %v1920, %v1916
        %v1965 = vpack.c.b16 %v1921, %v1917
        %v1966 = vpack.c.b16 %v1922, %v1918
        %v1967 = vpack.c.b16 %v1923, %v1919
        %v1968 = vpack.c.b16 %v1928, %v1924
        %v1969 = vpack.c.b16 %v1929, %v1925
        %v1970 = vpack.c.b16 %v1930, %v1926
        %v1971 = vpack.c.b16 %v1931, %v1927
        %v1972 = vpack.c.b16 %v1936, %v1932
        %v1973 = vpack.c.b16 %v1937, %v1933
        %v1974 = vpack.c.b16 %v1938, %v1934
        %v1975 = vpack.c.b16 %v1939, %v1935
        %v1976 = vpack.c.b16 %v1944, %v1940
        %v1977 = vpack.c.b16 %v1945, %v1941
        %v1978 = vpack.c.b16 %v1946, %v1942
        %v1979 = vpack.c.b16 %v1947, %v1943
        %2012 = vmatprep.subr.bf16.mxu0 %v1949
        %2013 = vmatpush1.bf16.msra.mxu0 %v1948
        %2014 = vmatprep.subr.bf16.mxu0 %v1953
        %2015 = vmatpush1.bf16.msra.mxu0 %v1952
        %2016 = vmatprep.subr.bf16.mxu0 %v1957
        %2017 = vmatpush1.bf16.msra.mxu0 %v1956
        %2018 = vmatprep.subr.bf16.mxu0 %v1961
        %2019 = vmatpush1.bf16.msra.mxu0 %v1960
        %2020 = vmatprep.subr.bf16.mxu0 %v1965
        %2021 = vmatpush1.bf16.msra.mxu0 %v1964
        %2022 = vmatprep.subr.bf16.mxu0 %v1969
        %2023 = vmatpush1.bf16.msra.mxu0 %v1968
        %2024 = vmatprep.subr.bf16.mxu0 %v1973
        %2025 = vmatpush1.bf16.msra.mxu0 %v1972
        %2026 = vmatprep.subr.bf16.mxu0 %v1977
        %2027 = vmatpush1.bf16.msra.mxu0 %v1976
        %2028 = vmatprep.subr.bf16.mxu0 0
        %2029 = vmatpush1.bf16.msra.mxu0 0
        %2030 = vmatprep.subr.bf16.mxu0 0
        %2031 = vmatpush1.bf16.msra.mxu0 0
        %2032 = vmatprep.subr.bf16.mxu0 0
        %2033 = vmatpush1.bf16.msra.mxu0 0
        %2034 = vmatprep.subr.bf16.mxu0 0
        %2035 = vmatpush1.bf16.msra.mxu0 0
        %2036 = vmatprep.subr.bf16.mxu0 0
        %2037 = vmatpush1.bf16.msra.mxu0 0
        %2038 = vmatprep.subr.bf16.mxu0 0
        %2039 = vmatpush1.bf16.msra.mxu0 0
        %2040 = vmatprep.subr.bf16.mxu0 0
        %2041 = vmatpush1.bf16.msra.mxu0 0
        %2042 = vmatprep.subr.bf16.mxu0 0
        %2043 = vmatpush1.bf16.msra.mxu0 0
        %2044 = vmatprep.mubr.bf16.mxu0 0
        %2045 = vmatmul.mubr.bf16.gmra.mrb[0].mxu0 %v1819
        %v2046 = vpop.f32.mrb[0].mxu0
        %v2047 = vadd.f32 0.0, %v2046
        %v2048 = vpop.f32.mrb[0].mxu0
        %v2049 = vadd.f32 0.0, %v2048
        %v2050 = vpop.f32.mrb[0].mxu0
        %v2051 = vpop.f32.mrb[0].mxu0
        %2052 = vdwg.mxu0
        %2053 = vmatprep.subr.bf16.mxu0 %v1951
        %2054 = vmatpush1.bf16.msra.mxu0 %v1950
        %2055 = vmatprep.subr.bf16.mxu0 %v1955
        %2056 = vmatpush1.bf16.msra.mxu0 %v1954
        %2057 = vmatprep.subr.bf16.mxu0 %v1959
        %2058 = vmatpush1.bf16.msra.mxu0 %v1958
        %2059 = vmatprep.subr.bf16.mxu0 %v1963
        %2060 = vmatpush1.bf16.msra.mxu0 %v1962
        %2061 = vmatprep.subr.bf16.mxu0 %v1967
        %2062 = vmatpush1.bf16.msra.mxu0 %v1966
        %2063 = vmatprep.subr.bf16.mxu0 %v1971
        %2064 = vmatpush1.bf16.msra.mxu0 %v1970
        %2065 = vmatprep.subr.bf16.mxu0 %v1975
        %2066 = vmatpush1.bf16.msra.mxu0 %v1974
        %2067 = vmatprep.subr.bf16.mxu0 %v1979
        %2068 = vmatpush1.bf16.msra.mxu0 %v1978
        %2069 = vmatprep.subr.bf16.mxu0 0
        %2070 = vmatpush1.bf16.msra.mxu0 0
        %2071 = vmatprep.subr.bf16.mxu0 0
        %2072 = vmatpush1.bf16.msra.mxu0 0
        %2073 = vmatprep.subr.bf16.mxu0 0
        %2074 = vmatpush1.bf16.msra.mxu0 0
        %2075 = vmatprep.subr.bf16.mxu0 0
        %2076 = vmatpush1.bf16.msra.mxu0 0
        %2077 = vmatprep.subr.bf16.mxu0 0
        %2078 = vmatpush1.bf16.msra.mxu0 0
        %2079 = vmatprep.subr.bf16.mxu0 0
        %2080 = vmatpush1.bf16.msra.mxu0 0
        %2081 = vmatprep.subr.bf16.mxu0 0
        %2082 = vmatpush1.bf16.msra.mxu0 0
        %2083 = vmatprep.subr.bf16.mxu0 0
        %2084 = vmatpush1.bf16.msra.mxu0 0
        %2085 = vmatprep.mubr.bf16.mxu0 0
        %2086 = vmatmul.mubr.bf16.gmra.mrb[0].mxu0 %v1819
        %v2087 = vpop.f32.mrb[0].mxu0
        %v2088 = vadd.f32 0.0, %v2087
        %v2089 = vpop.f32.mrb[0].mxu0
        %v2090 = vadd.f32 0.0, %v2089
        %v2091 = vpop.f32.mrb[0].mxu0
        %v2092 = vpop.f32.mrb[0].mxu0
        %2093 = vdwg.mxu0
        %v2094 = vadd.f32 %v1815, %v2047
        %v2095 = vadd.f32 %v1816, %v2049
        %v2096 = vadd.f32 %v1817, %v2088
        %v2097 = vadd.f32 %v1818, %v2090
        %v2098 = vxor.u32 %v2094, 2147483648
        %v2099 = vmul.f32 %v2098, 1.442695
        %v2100 = vpow.pop %v2099
        %v2101 = vadd.f32 %v2100, 1.0
        %v2102 = vrcp.pop %v2101
        %v2103 = vmul.f32 1.0, %v2102
        %v2104 = vxor.u32 %v2095, 2147483648
        %v2105 = vmul.f32 %v2104, 1.442695
        %v2106 = vpow.pop %v2105
        %v2107 = vadd.f32 %v2106, 1.0
        %v2108 = vrcp.pop %v2107
        %v2109 = vmul.f32 1.0, %v2108
        %v2110 = vtanh.pop %v2096
        %v2111 = vxor.u32 %v2097, 2147483648
        %v2112 = vmul.f32 %v2111, 1.442695
        %v2113 = vpow.pop %v2112
        %v2114 = vadd.f32 %v2113, 1.0
        %v2115 = vrcp.pop %v2114
        %v2116 = vmul.f32 1.0, %v2115
        %v2117 = vmul.f32 %v2109, %v1803
        %v2118 = vmul.f32 %v2103, %v2110
        %v2119 = vadd.f32 %v2117, %v2118
        %v2120 = vtanh.pop %v2119
        %v2121 = vmul.f32 %v2116, %v2120
        %s2122 = scalar_lea.vmem %s397, %s1809 [#allocation11]
        %2123 = vst [vmem:[%s2122] sm:$0xff] %v2121
        %s2124 = ssub.s32 4, %s34
        %s2125 = smul.u32 %s2124, 8
        %s2126 = sshra.s32 %s2125, 3
        %s2127 = sand.u32 %s2125, 7
        %s2128 = smul.u32 %s2126, 4
        %s2129 = smul.addr %s2128, 8
        %s2130 = scalar_lea.vmem [#allocation2], %s2129
        %v2131 = vld [vmem:[%s2130] sm:$0xff]
        %v2132 = vld [vmem:[%s2130 + $0x8] sm:$0xff]
        %v2133 = vld [vmem:[%s2130 + $0x10] sm:$0xff]
        %v2134 = vld [vmem:[%s2130 + $0x18] sm:$0xff]
        %v2135 = vpack.c.bf16 %v2121, %v2121
        %v2136 = vld [vmem:[%s359] sm:$0xff]
        %v2137 = vld [vmem:[%s359 + $0x8] sm:$0xff]
        %v2138 = vld [vmem:[%s359 + $0x10] sm:$0xff]
        %v2139 = vld [vmem:[%s359 + $0x18] sm:$0xff]
        %v2140 = vld [vmem:[%s359 + $0x20] sm:$0xff]
        %v2141 = vld [vmem:[%s359 + $0x28] sm:$0xff]
        %v2142 = vld [vmem:[%s359 + $0x30] sm:$0xff]
        %v2143 = vld [vmem:[%s359 + $0x38] sm:$0xff]
        %v2144 = vld [vmem:[%s359 + $0x40] sm:$0xff]
        %v2145 = vld [vmem:[%s359 + $0x48] sm:$0xff]
        %v2146 = vld [vmem:[%s359 + $0x50] sm:$0xff]
        %v2147 = vld [vmem:[%s359 + $0x58] sm:$0xff]
        %v2148 = vld [vmem:[%s359 + $0x60] sm:$0xff]
        %v2149 = vld [vmem:[%s359 + $0x68] sm:$0xff]
        %v2150 = vld [vmem:[%s359 + $0x70] sm:$0xff]
        %v2151 = vld [vmem:[%s359 + $0x78] sm:$0xff]
        %v2152 = vld [vmem:[%s359 + $0x80] sm:$0xff]
        %v2153 = vld [vmem:[%s359 + $0x88] sm:$0xff]
        %v2154 = vld [vmem:[%s359 + $0x90] sm:$0xff]
        %v2155 = vld [vmem:[%s359 + $0x98] sm:$0xff]
        %v2156 = vld [vmem:[%s359 + $0xa0] sm:$0xff]
        %v2157 = vld [vmem:[%s359 + $0xa8] sm:$0xff]
        %v2158 = vld [vmem:[%s359 + $0xb0] sm:$0xff]
        %v2159 = vld [vmem:[%s359 + $0xb8] sm:$0xff]
        %v2160 = vld [vmem:[%s359 + $0xc0] sm:$0xff]
        %v2161 = vld [vmem:[%s359 + $0xc8] sm:$0xff]
        %v2162 = vld [vmem:[%s359 + $0xd0] sm:$0xff]
        %v2163 = vld [vmem:[%s359 + $0xd8] sm:$0xff]
        %v2164 = vld [vmem:[%s359 + $0xe0] sm:$0xff]
        %v2165 = vld [vmem:[%s359 + $0xe8] sm:$0xff]
        %v2166 = vld [vmem:[%s359 + $0xf0] sm:$0xff]
        %v2167 = vld [vmem:[%s359 + $0xf8] sm:$0xff]
        %v2200 = vunpack.c.l.b16 %v2136
        %v2201 = vunpack.c.h.b16 %v2136
        %v2202 = vunpack.c.l.b16 %v2137
        %v2203 = vunpack.c.h.b16 %v2137
        %v2204 = vunpack.c.l.b16 %v2138
        %v2205 = vunpack.c.h.b16 %v2138
        %v2206 = vunpack.c.l.b16 %v2139
        %v2207 = vunpack.c.h.b16 %v2139
        %v2208 = vunpack.c.l.b16 %v2140
        %v2209 = vunpack.c.h.b16 %v2140
        %v2210 = vunpack.c.l.b16 %v2141
        %v2211 = vunpack.c.h.b16 %v2141
        %v2212 = vunpack.c.l.b16 %v2142
        %v2213 = vunpack.c.h.b16 %v2142
        %v2214 = vunpack.c.l.b16 %v2143
        %v2215 = vunpack.c.h.b16 %v2143
        %v2216 = vunpack.c.l.b16 %v2144
        %v2217 = vunpack.c.h.b16 %v2144
        %v2218 = vunpack.c.l.b16 %v2145
        %v2219 = vunpack.c.h.b16 %v2145
        %v2220 = vunpack.c.l.b16 %v2146
        %v2221 = vunpack.c.h.b16 %v2146
        %v2222 = vunpack.c.l.b16 %v2147
        %v2223 = vunpack.c.h.b16 %v2147
        %v2224 = vunpack.c.l.b16 %v2148
        %v2225 = vunpack.c.h.b16 %v2148
        %v2226 = vunpack.c.l.b16 %v2149
        %v2227 = vunpack.c.h.b16 %v2149
        %v2228 = vunpack.c.l.b16 %v2150
        %v2229 = vunpack.c.h.b16 %v2150
        %v2230 = vunpack.c.l.b16 %v2151
        %v2231 = vunpack.c.h.b16 %v2151
        %v2232 = vunpack.c.l.b16 %v2152
        %v2233 = vunpack.c.h.b16 %v2152
        %v2234 = vunpack.c.l.b16 %v2153
        %v2235 = vunpack.c.h.b16 %v2153
        %v2236 = vunpack.c.l.b16 %v2154
        %v2237 = vunpack.c.h.b16 %v2154
        %v2238 = vunpack.c.l.b16 %v2155
        %v2239 = vunpack.c.h.b16 %v2155
        %v2240 = vunpack.c.l.b16 %v2156
        %v2241 = vunpack.c.h.b16 %v2156
        %v2242 = vunpack.c.l.b16 %v2157
        %v2243 = vunpack.c.h.b16 %v2157
        %v2244 = vunpack.c.l.b16 %v2158
        %v2245 = vunpack.c.h.b16 %v2158
        %v2246 = vunpack.c.l.b16 %v2159
        %v2247 = vunpack.c.h.b16 %v2159
        %v2248 = vunpack.c.l.b16 %v2160
        %v2249 = vunpack.c.h.b16 %v2160
        %v2250 = vunpack.c.l.b16 %v2161
        %v2251 = vunpack.c.h.b16 %v2161
        %v2252 = vunpack.c.l.b16 %v2162
        %v2253 = vunpack.c.h.b16 %v2162
        %v2254 = vunpack.c.l.b16 %v2163
        %v2255 = vunpack.c.h.b16 %v2163
        %v2256 = vunpack.c.l.b16 %v2164
        %v2257 = vunpack.c.h.b16 %v2164
        %v2258 = vunpack.c.l.b16 %v2165
        %v2259 = vunpack.c.h.b16 %v2165
        %v2260 = vunpack.c.l.b16 %v2166
        %v2261 = vunpack.c.h.b16 %v2166
        %v2262 = vunpack.c.l.b16 %v2167
        %v2263 = vunpack.c.h.b16 %v2167
        %v2264 = vpack.c.b16 %v2204, %v2200
        %v2265 = vpack.c.b16 %v2205, %v2201
        %v2266 = vpack.c.b16 %v2206, %v2202
        %v2267 = vpack.c.b16 %v2207, %v2203
        %v2268 = vpack.c.b16 %v2212, %v2208
        %v2269 = vpack.c.b16 %v2213, %v2209
        %v2270 = vpack.c.b16 %v2214, %v2210
        %v2271 = vpack.c.b16 %v2215, %v2211
        %v2272 = vpack.c.b16 %v2220, %v2216
        %v2273 = vpack.c.b16 %v2221, %v2217
        %v2274 = vpack.c.b16 %v2222, %v2218
        %v2275 = vpack.c.b16 %v2223, %v2219
        %v2276 = vpack.c.b16 %v2228, %v2224
        %v2277 = vpack.c.b16 %v2229, %v2225
        %v2278 = vpack.c.b16 %v2230, %v2226
        %v2279 = vpack.c.b16 %v2231, %v2227
        %v2280 = vpack.c.b16 %v2236, %v2232
        %v2281 = vpack.c.b16 %v2237, %v2233
        %v2282 = vpack.c.b16 %v2238, %v2234
        %v2283 = vpack.c.b16 %v2239, %v2235
        %v2284 = vpack.c.b16 %v2244, %v2240
        %v2285 = vpack.c.b16 %v2245, %v2241
        %v2286 = vpack.c.b16 %v2246, %v2242
        %v2287 = vpack.c.b16 %v2247, %v2243
        %v2288 = vpack.c.b16 %v2252, %v2248
        %v2289 = vpack.c.b16 %v2253, %v2249
        %v2290 = vpack.c.b16 %v2254, %v2250
        %v2291 = vpack.c.b16 %v2255, %v2251
        %v2292 = vpack.c.b16 %v2260, %v2256
        %v2293 = vpack.c.b16 %v2261, %v2257
        %v2294 = vpack.c.b16 %v2262, %v2258
        %v2295 = vpack.c.b16 %v2263, %v2259
        %2328 = vmatprep.subr.bf16.mxu0 %v2265
        %2329 = vmatpush1.bf16.msra.mxu0 %v2264
        %2330 = vmatprep.subr.bf16.mxu0 %v2269
        %2331 = vmatpush1.bf16.msra.mxu0 %v2268
        %2332 = vmatprep.subr.bf16.mxu0 %v2273
        %2333 = vmatpush1.bf16.msra.mxu0 %v2272
        %2334 = vmatprep.subr.bf16.mxu0 %v2277
        %2335 = vmatpush1.bf16.msra.mxu0 %v2276
        %2336 = vmatprep.subr.bf16.mxu0 %v2281
        %2337 = vmatpush1.bf16.msra.mxu0 %v2280
        %2338 = vmatprep.subr.bf16.mxu0 %v2285
        %2339 = vmatpush1.bf16.msra.mxu0 %v2284
        %2340 = vmatprep.subr.bf16.mxu0 %v2289
        %2341 = vmatpush1.bf16.msra.mxu0 %v2288
        %2342 = vmatprep.subr.bf16.mxu0 %v2293
        %2343 = vmatpush1.bf16.msra.mxu0 %v2292
        %2344 = vmatprep.subr.bf16.mxu0 0
        %2345 = vmatpush1.bf16.msra.mxu0 0
        %2346 = vmatprep.subr.bf16.mxu0 0
        %2347 = vmatpush1.bf16.msra.mxu0 0
        %2348 = vmatprep.subr.bf16.mxu0 0
        %2349 = vmatpush1.bf16.msra.mxu0 0
        %2350 = vmatprep.subr.bf16.mxu0 0
        %2351 = vmatpush1.bf16.msra.mxu0 0
        %2352 = vmatprep.subr.bf16.mxu0 0
        %2353 = vmatpush1.bf16.msra.mxu0 0
        %2354 = vmatprep.subr.bf16.mxu0 0
        %2355 = vmatpush1.bf16.msra.mxu0 0
        %2356 = vmatprep.subr.bf16.mxu0 0
        %2357 = vmatpush1.bf16.msra.mxu0 0
        %2358 = vmatprep.subr.bf16.mxu0 0
        %2359 = vmatpush1.bf16.msra.mxu0 0
        %2360 = vmatprep.mubr.bf16.mxu0 0
        %2361 = vmatmul.mubr.bf16.gmra.mrb[0].mxu0 %v2135
        %v2362 = vpop.f32.mrb[0].mxu0
        %v2363 = vadd.f32 0.0, %v2362
        %v2364 = vpop.f32.mrb[0].mxu0
        %v2365 = vadd.f32 0.0, %v2364
        %v2366 = vpop.f32.mrb[0].mxu0
        %v2367 = vpop.f32.mrb[0].mxu0
        %2368 = vdwg.mxu0
        %2369 = vmatprep.subr.bf16.mxu0 %v2267
        %2370 = vmatpush1.bf16.msra.mxu0 %v2266
        %2371 = vmatprep.subr.bf16.mxu0 %v2271
        %2372 = vmatpush1.bf16.msra.mxu0 %v2270
        %2373 = vmatprep.subr.bf16.mxu0 %v2275
        %2374 = vmatpush1.bf16.msra.mxu0 %v2274
        %2375 = vmatprep.subr.bf16.mxu0 %v2279
        %2376 = vmatpush1.bf16.msra.mxu0 %v2278
        %2377 = vmatprep.subr.bf16.mxu0 %v2283
        %2378 = vmatpush1.bf16.msra.mxu0 %v2282
        %2379 = vmatprep.subr.bf16.mxu0 %v2287
        %2380 = vmatpush1.bf16.msra.mxu0 %v2286
        %2381 = vmatprep.subr.bf16.mxu0 %v2291
        %2382 = vmatpush1.bf16.msra.mxu0 %v2290
        %2383 = vmatprep.subr.bf16.mxu0 %v2295
        %2384 = vmatpush1.bf16.msra.mxu0 %v2294
        %2385 = vmatprep.subr.bf16.mxu0 0
        %2386 = vmatpush1.bf16.msra.mxu0 0
        %2387 = vmatprep.subr.bf16.mxu0 0
        %2388 = vmatpush1.bf16.msra.mxu0 0
        %2389 = vmatprep.subr.bf16.mxu0 0
        %2390 = vmatpush1.bf16.msra.mxu0 0
        %2391 = vmatprep.subr.bf16.mxu0 0
        %2392 = vmatpush1.bf16.msra.mxu0 0
        %2393 = vmatprep.subr.bf16.mxu0 0
        %2394 = vmatpush1.bf16.msra.mxu0 0
        %2395 = vmatprep.subr.bf16.mxu0 0
        %2396 = vmatpush1.bf16.msra.mxu0 0
        %2397 = vmatprep.subr.bf16.mxu0 0
        %2398 = vmatpush1.bf16.msra.mxu0 0
        %2399 = vmatprep.subr.bf16.mxu0 0
        %2400 = vmatpush1.bf16.msra.mxu0 0
        %2401 = vmatprep.mubr.bf16.mxu0 0
        %2402 = vmatmul.mubr.bf16.gmra.mrb[0].mxu0 %v2135
        %v2403 = vpop.f32.mrb[0].mxu0
        %v2404 = vadd.f32 0.0, %v2403
        %v2405 = vpop.f32.mrb[0].mxu0
        %v2406 = vadd.f32 0.0, %v2405
        %v2407 = vpop.f32.mrb[0].mxu0
        %v2408 = vpop.f32.mrb[0].mxu0
        %2409 = vdwg.mxu0
        %v2410 = vadd.f32 %v2131, %v2363
        %v2411 = vadd.f32 %v2132, %v2365
        %v2412 = vadd.f32 %v2133, %v2404
        %v2413 = vadd.f32 %v2134, %v2406
        %v2414 = vxor.u32 %v2410, 2147483648
        %v2415 = vmul.f32 %v2414, 1.442695
        %v2416 = vpow.pop %v2415
        %v2417 = vadd.f32 %v2416, 1.0
        %v2418 = vrcp.pop %v2417
        %v2419 = vmul.f32 1.0, %v2418
        %v2420 = vxor.u32 %v2411, 2147483648
        %v2421 = vmul.f32 %v2420, 1.442695
        %v2422 = vpow.pop %v2421
        %v2423 = vadd.f32 %v2422, 1.0
        %v2424 = vrcp.pop %v2423
        %v2425 = vmul.f32 1.0, %v2424
        %v2426 = vtanh.pop %v2412
        %v2427 = vxor.u32 %v2413, 2147483648
        %v2428 = vmul.f32 %v2427, 1.442695
        %v2429 = vpow.pop %v2428
        %v2430 = vadd.f32 %v2429, 1.0
        %v2431 = vrcp.pop %v2430
        %v2432 = vmul.f32 1.0, %v2431
        %v2433 = vmul.f32 %v2425, %v2119
        %v2434 = vmul.f32 %v2419, %v2426
        %v2435 = vadd.f32 %v2433, %v2434
        %v2436 = vtanh.pop %v2435
        %v2437 = vmul.f32 %v2432, %v2436
        %s2438 = scalar_lea.vmem %s397, %s2125 [#allocation11]
        %2439 = vst [vmem:[%s2438] sm:$0xff] %v2437
        %s2440 = smul.u32 %s34, 4294967293
        %s2441 = sadd.s32 %s2440, 5
        %s2442 = smul.u32 %s2441, 8
        %s2443 = sshra.s32 %s2442, 3
        %s2444 = sand.u32 %s2442, 7
        %s2445 = smul.u32 %s2443, 4
        %s2446 = smul.addr %s2445, 8
        %s2447 = scalar_lea.vmem [#allocation2], %s2446
        %v2448 = vld [vmem:[%s2447] sm:$0xff]
        %v2449 = vld [vmem:[%s2447 + $0x8] sm:$0xff]
        %v2450 = vld [vmem:[%s2447 + $0x10] sm:$0xff]
        %v2451 = vld [vmem:[%s2447 + $0x18] sm:$0xff]
        %v2452 = vpack.c.bf16 %v2437, %v2437
        %v2453 = vld [vmem:[%s359] sm:$0xff]
        %v2454 = vld [vmem:[%s359 + $0x8] sm:$0xff]
        %v2455 = vld [vmem:[%s359 + $0x10] sm:$0xff]
        %v2456 = vld [vmem:[%s359 + $0x18] sm:$0xff]
        %v2457 = vld [vmem:[%s359 + $0x20] sm:$0xff]
        %v2458 = vld [vmem:[%s359 + $0x28] sm:$0xff]
        %v2459 = vld [vmem:[%s359 + $0x30] sm:$0xff]
        %v2460 = vld [vmem:[%s359 + $0x38] sm:$0xff]
        %v2461 = vld [vmem:[%s359 + $0x40] sm:$0xff]
        %v2462 = vld [vmem:[%s359 + $0x48] sm:$0xff]
        %v2463 = vld [vmem:[%s359 + $0x50] sm:$0xff]
        %v2464 = vld [vmem:[%s359 + $0x58] sm:$0xff]
        %v2465 = vld [vmem:[%s359 + $0x60] sm:$0xff]
        %v2466 = vld [vmem:[%s359 + $0x68] sm:$0xff]
        %v2467 = vld [vmem:[%s359 + $0x70] sm:$0xff]
        %v2468 = vld [vmem:[%s359 + $0x78] sm:$0xff]
        %v2469 = vld [vmem:[%s359 + $0x80] sm:$0xff]
        %v2470 = vld [vmem:[%s359 + $0x88] sm:$0xff]
        %v2471 = vld [vmem:[%s359 + $0x90] sm:$0xff]
        %v2472 = vld [vmem:[%s359 + $0x98] sm:$0xff]
        %v2473 = vld [vmem:[%s359 + $0xa0] sm:$0xff]
        %v2474 = vld [vmem:[%s359 + $0xa8] sm:$0xff]
        %v2475 = vld [vmem:[%s359 + $0xb0] sm:$0xff]
        %v2476 = vld [vmem:[%s359 + $0xb8] sm:$0xff]
        %v2477 = vld [vmem:[%s359 + $0xc0] sm:$0xff]
        %v2478 = vld [vmem:[%s359 + $0xc8] sm:$0xff]
        %v2479 = vld [vmem:[%s359 + $0xd0] sm:$0xff]
        %v2480 = vld [vmem:[%s359 + $0xd8] sm:$0xff]
        %v2481 = vld [vmem:[%s359 + $0xe0] sm:$0xff]
        %v2482 = vld [vmem:[%s359 + $0xe8] sm:$0xff]
        %v2483 = vld [vmem:[%s359 + $0xf0] sm:$0xff]
        %v2484 = vld [vmem:[%s359 + $0xf8] sm:$0xff]
        %v2517 = vunpack.c.l.b16 %v2453
        %v2518 = vunpack.c.h.b16 %v2453
        %v2519 = vunpack.c.l.b16 %v2454
        %v2520 = vunpack.c.h.b16 %v2454
        %v2521 = vunpack.c.l.b16 %v2455
        %v2522 = vunpack.c.h.b16 %v2455
        %v2523 = vunpack.c.l.b16 %v2456
        %v2524 = vunpack.c.h.b16 %v2456
        %v2525 = vunpack.c.l.b16 %v2457
        %v2526 = vunpack.c.h.b16 %v2457
        %v2527 = vunpack.c.l.b16 %v2458
        %v2528 = vunpack.c.h.b16 %v2458
        %v2529 = vunpack.c.l.b16 %v2459
        %v2530 = vunpack.c.h.b16 %v2459
        %v2531 = vunpack.c.l.b16 %v2460
        %v2532 = vunpack.c.h.b16 %v2460
        %v2533 = vunpack.c.l.b16 %v2461
        %v2534 = vunpack.c.h.b16 %v2461
        %v2535 = vunpack.c.l.b16 %v2462
        %v2536 = vunpack.c.h.b16 %v2462
        %v2537 = vunpack.c.l.b16 %v2463
        %v2538 = vunpack.c.h.b16 %v2463
        %v2539 = vunpack.c.l.b16 %v2464
        %v2540 = vunpack.c.h.b16 %v2464
        %v2541 = vunpack.c.l.b16 %v2465
        %v2542 = vunpack.c.h.b16 %v2465
        %v2543 = vunpack.c.l.b16 %v2466
        %v2544 = vunpack.c.h.b16 %v2466
        %v2545 = vunpack.c.l.b16 %v2467
        %v2546 = vunpack.c.h.b16 %v2467
        %v2547 = vunpack.c.l.b16 %v2468
        %v2548 = vunpack.c.h.b16 %v2468
        %v2549 = vunpack.c.l.b16 %v2469
        %v2550 = vunpack.c.h.b16 %v2469
        %v2551 = vunpack.c.l.b16 %v2470
        %v2552 = vunpack.c.h.b16 %v2470
        %v2553 = vunpack.c.l.b16 %v2471
        %v2554 = vunpack.c.h.b16 %v2471
        %v2555 = vunpack.c.l.b16 %v2472
        %v2556 = vunpack.c.h.b16 %v2472
        %v2557 = vunpack.c.l.b16 %v2473
        %v2558 = vunpack.c.h.b16 %v2473
        %v2559 = vunpack.c.l.b16 %v2474
        %v2560 = vunpack.c.h.b16 %v2474
        %v2561 = vunpack.c.l.b16 %v2475
        %v2562 = vunpack.c.h.b16 %v2475
        %v2563 = vunpack.c.l.b16 %v2476
        %v2564 = vunpack.c.h.b16 %v2476
        %v2565 = vunpack.c.l.b16 %v2477
        %v2566 = vunpack.c.h.b16 %v2477
        %v2567 = vunpack.c.l.b16 %v2478
        %v2568 = vunpack.c.h.b16 %v2478
        %v2569 = vunpack.c.l.b16 %v2479
        %v2570 = vunpack.c.h.b16 %v2479
        %v2571 = vunpack.c.l.b16 %v2480
        %v2572 = vunpack.c.h.b16 %v2480
        %v2573 = vunpack.c.l.b16 %v2481
        %v2574 = vunpack.c.h.b16 %v2481
        %v2575 = vunpack.c.l.b16 %v2482
        %v2576 = vunpack.c.h.b16 %v2482
        %v2577 = vunpack.c.l.b16 %v2483
        %v2578 = vunpack.c.h.b16 %v2483
        %v2579 = vunpack.c.l.b16 %v2484
        %v2580 = vunpack.c.h.b16 %v2484
        %v2581 = vpack.c.b16 %v2521, %v2517
        %v2582 = vpack.c.b16 %v2522, %v2518
        %v2583 = vpack.c.b16 %v2523, %v2519
        %v2584 = vpack.c.b16 %v2524, %v2520
        %v2585 = vpack.c.b16 %v2529, %v2525
        %v2586 = vpack.c.b16 %v2530, %v2526
        %v2587 = vpack.c.b16 %v2531, %v2527
        %v2588 = vpack.c.b16 %v2532, %v2528
        %v2589 = vpack.c.b16 %v2537, %v2533
        %v2590 = vpack.c.b16 %v2538, %v2534
        %v2591 = vpack.c.b16 %v2539, %v2535
        %v2592 = vpack.c.b16 %v2540, %v2536
        %v2593 = vpack.c.b16 %v2545, %v2541
        %v2594 = vpack.c.b16 %v2546, %v2542
        %v2595 = vpack.c.b16 %v2547, %v2543
        %v2596 = vpack.c.b16 %v2548, %v2544
        %v2597 = vpack.c.b16 %v2553, %v2549
        %v2598 = vpack.c.b16 %v2554, %v2550
        %v2599 = vpack.c.b16 %v2555, %v2551
        %v2600 = vpack.c.b16 %v2556, %v2552
        %v2601 = vpack.c.b16 %v2561, %v2557
        %v2602 = vpack.c.b16 %v2562, %v2558
        %v2603 = vpack.c.b16 %v2563, %v2559
        %v2604 = vpack.c.b16 %v2564, %v2560
        %v2605 = vpack.c.b16 %v2569, %v2565
        %v2606 = vpack.c.b16 %v2570, %v2566
        %v2607 = vpack.c.b16 %v2571, %v2567
        %v2608 = vpack.c.b16 %v2572, %v2568
        %v2609 = vpack.c.b16 %v2577, %v2573
        %v2610 = vpack.c.b16 %v2578, %v2574
        %v2611 = vpack.c.b16 %v2579, %v2575
        %v2612 = vpack.c.b16 %v2580, %v2576
        %2645 = vmatprep.subr.bf16.mxu0 %v2582
        %2646 = vmatpush1.bf16.msra.mxu0 %v2581
        %2647 = vmatprep.subr.bf16.mxu0 %v2586
        %2648 = vmatpush1.bf16.msra.mxu0 %v2585
        %2649 = vmatprep.subr.bf16.mxu0 %v2590
        %2650 = vmatpush1.bf16.msra.mxu0 %v2589
        %2651 = vmatprep.subr.bf16.mxu0 %v2594
        %2652 = vmatpush1.bf16.msra.mxu0 %v2593
        %2653 = vmatprep.subr.bf16.mxu0 %v2598
        %2654 = vmatpush1.bf16.msra.mxu0 %v2597
        %2655 = vmatprep.subr.bf16.mxu0 %v2602
        %2656 = vmatpush1.bf16.msra.mxu0 %v2601
        %2657 = vmatprep.subr.bf16.mxu0 %v2606
        %2658 = vmatpush1.bf16.msra.mxu0 %v2605
        %2659 = vmatprep.subr.bf16.mxu0 %v2610
        %2660 = vmatpush1.bf16.msra.mxu0 %v2609
        %2661 = vmatprep.subr.bf16.mxu0 0
        %2662 = vmatpush1.bf16.msra.mxu0 0
        %2663 = vmatprep.subr.bf16.mxu0 0
        %2664 = vmatpush1.bf16.msra.mxu0 0
        %2665 = vmatprep.subr.bf16.mxu0 0
        %2666 = vmatpush1.bf16.msra.mxu0 0
        %2667 = vmatprep.subr.bf16.mxu0 0
        %2668 = vmatpush1.bf16.msra.mxu0 0
        %2669 = vmatprep.subr.bf16.mxu0 0
        %2670 = vmatpush1.bf16.msra.mxu0 0
        %2671 = vmatprep.subr.bf16.mxu0 0
        %2672 = vmatpush1.bf16.msra.mxu0 0
        %2673 = vmatprep.subr.bf16.mxu0 0
        %2674 = vmatpush1.bf16.msra.mxu0 0
        %2675 = vmatprep.subr.bf16.mxu0 0
        %2676 = vmatpush1.bf16.msra.mxu0 0
        %2677 = vmatprep.mubr.bf16.mxu0 0
        %2678 = vmatmul.mubr.bf16.gmra.mrb[0].mxu0 %v2452
        %v2679 = vpop.f32.mrb[0].mxu0
        %v2680 = vadd.f32 0.0, %v2679
        %v2681 = vpop.f32.mrb[0].mxu0
        %v2682 = vadd.f32 0.0, %v2681
        %v2683 = vpop.f32.mrb[0].mxu0
        %v2684 = vpop.f32.mrb[0].mxu0
        %2685 = vdwg.mxu0
        %2686 = vmatprep.subr.bf16.mxu0 %v2584
        %2687 = vmatpush1.bf16.msra.mxu0 %v2583
        %2688 = vmatprep.subr.bf16.mxu0 %v2588
        %2689 = vmatpush1.bf16.msra.mxu0 %v2587
        %2690 = vmatprep.subr.bf16.mxu0 %v2592
        %2691 = vmatpush1.bf16.msra.mxu0 %v2591
        %2692 = vmatprep.subr.bf16.mxu0 %v2596
        %2693 = vmatpush1.bf16.msra.mxu0 %v2595
        %2694 = vmatprep.subr.bf16.mxu0 %v2600
        %2695 = vmatpush1.bf16.msra.mxu0 %v2599
        %2696 = vmatprep.subr.bf16.mxu0 %v2604
        %2697 = vmatpush1.bf16.msra.mxu0 %v2603
        %2698 = vmatprep.subr.bf16.mxu0 %v2608
        %2699 = vmatpush1.bf16.msra.mxu0 %v2607
        %2700 = vmatprep.subr.bf16.mxu0 %v2612
        %2701 = vmatpush1.bf16.msra.mxu0 %v2611
        %2702 = vmatprep.subr.bf16.mxu0 0
        %2703 = vmatpush1.bf16.msra.mxu0 0
        %2704 = vmatprep.subr.bf16.mxu0 0
        %2705 = vmatpush1.bf16.msra.mxu0 0
        %2706 = vmatprep.subr.bf16.mxu0 0
        %2707 = vmatpush1.bf16.msra.mxu0 0
        %2708 = vmatprep.subr.bf16.mxu0 0
        %2709 = vmatpush1.bf16.msra.mxu0 0
        %2710 = vmatprep.subr.bf16.mxu0 0
        %2711 = vmatpush1.bf16.msra.mxu0 0
        %2712 = vmatprep.subr.bf16.mxu0 0
        %2713 = vmatpush1.bf16.msra.mxu0 0
        %2714 = vmatprep.subr.bf16.mxu0 0
        %2715 = vmatpush1.bf16.msra.mxu0 0
        %2716 = vmatprep.subr.bf16.mxu0 0
        %2717 = vmatpush1.bf16.msra.mxu0 0
        %2718 = vmatprep.mubr.bf16.mxu0 0
        %2719 = vmatmul.mubr.bf16.gmra.mrb[0].mxu0 %v2452
        %v2720 = vpop.f32.mrb[0].mxu0
        %v2721 = vadd.f32 0.0, %v2720
        %v2722 = vpop.f32.mrb[0].mxu0
        %v2723 = vadd.f32 0.0, %v2722
        %v2724 = vpop.f32.mrb[0].mxu0
        %v2725 = vpop.f32.mrb[0].mxu0
        %2726 = vdwg.mxu0
        %v2727 = vadd.f32 %v2448, %v2680
        %v2728 = vadd.f32 %v2449, %v2682
        %v2729 = vadd.f32 %v2450, %v2721
        %v2730 = vadd.f32 %v2451, %v2723
        %v2731 = vxor.u32 %v2727, 2147483648
        %v2732 = vmul.f32 %v2731, 1.442695
        %v2733 = vpow.pop %v2732
        %v2734 = vadd.f32 %v2733, 1.0
        %v2735 = vrcp.pop %v2734
        %v2736 = vmul.f32 1.0, %v2735
        %v2737 = vxor.u32 %v2728, 2147483648
        %v2738 = vmul.f32 %v2737, 1.442695
        %v2739 = vpow.pop %v2738
        %v2740 = vadd.f32 %v2739, 1.0
        %v2741 = vrcp.pop %v2740
        %v2742 = vmul.f32 1.0, %v2741
        %v2743 = vtanh.pop %v2729
        %v2744 = vxor.u32 %v2730, 2147483648
        %v2745 = vmul.f32 %v2744, 1.442695
        %v2746 = vpow.pop %v2745
        %v2747 = vadd.f32 %v2746, 1.0
        %v2748 = vrcp.pop %v2747
        %v2749 = vmul.f32 1.0, %v2748
        %v2750 = vmul.f32 %v2742, %v2435
        %v2751 = vmul.f32 %v2736, %v2743
        %v2752 = vadd.f32 %v2750, %v2751
        %v2753 = vtanh.pop %v2752
        %v2754 = vmul.f32 %v2749, %v2753
        %s2755 = scalar_lea.vmem %s397, %s2442 [#allocation11]
        %2756 = vst [vmem:[%s2755] sm:$0xff] %v2754
        %s2757 = smul.u32 %s34, 4294967291
        %s2758 = sadd.s32 %s2757, 6
        %s2759 = smul.u32 %s2758, 8
        %s2760 = sshra.s32 %s2759, 3
        %s2761 = sand.u32 %s2759, 7
        %s2762 = smul.u32 %s2760, 4
        %s2763 = smul.addr %s2762, 8
        %s2764 = scalar_lea.vmem [#allocation2], %s2763
        %v2765 = vld [vmem:[%s2764] sm:$0xff]
        %v2766 = vld [vmem:[%s2764 + $0x8] sm:$0xff]
        %v2767 = vld [vmem:[%s2764 + $0x10] sm:$0xff]
        %v2768 = vld [vmem:[%s2764 + $0x18] sm:$0xff]
        %v2769 = vpack.c.bf16 %v2754, %v2754
        %v2770 = vld [vmem:[%s359] sm:$0xff]
        %v2771 = vld [vmem:[%s359 + $0x8] sm:$0xff]
        %v2772 = vld [vmem:[%s359 + $0x10] sm:$0xff]
        %v2773 = vld [vmem:[%s359 + $0x18] sm:$0xff]
        %v2774 = vld [vmem:[%s359 + $0x20] sm:$0xff]
        %v2775 = vld [vmem:[%s359 + $0x28] sm:$0xff]
        %v2776 = vld [vmem:[%s359 + $0x30] sm:$0xff]
        %v2777 = vld [vmem:[%s359 + $0x38] sm:$0xff]
        %v2778 = vld [vmem:[%s359 + $0x40] sm:$0xff]
        %v2779 = vld [vmem:[%s359 + $0x48] sm:$0xff]
        %v2780 = vld [vmem:[%s359 + $0x50] sm:$0xff]
        %v2781 = vld [vmem:[%s359 + $0x58] sm:$0xff]
        %v2782 = vld [vmem:[%s359 + $0x60] sm:$0xff]
        %v2783 = vld [vmem:[%s359 + $0x68] sm:$0xff]
        %v2784 = vld [vmem:[%s359 + $0x70] sm:$0xff]
        %v2785 = vld [vmem:[%s359 + $0x78] sm:$0xff]
        %v2786 = vld [vmem:[%s359 + $0x80] sm:$0xff]
        %v2787 = vld [vmem:[%s359 + $0x88] sm:$0xff]
        %v2788 = vld [vmem:[%s359 + $0x90] sm:$0xff]
        %v2789 = vld [vmem:[%s359 + $0x98] sm:$0xff]
        %v2790 = vld [vmem:[%s359 + $0xa0] sm:$0xff]
        %v2791 = vld [vmem:[%s359 + $0xa8] sm:$0xff]
        %v2792 = vld [vmem:[%s359 + $0xb0] sm:$0xff]
        %v2793 = vld [vmem:[%s359 + $0xb8] sm:$0xff]
        %v2794 = vld [vmem:[%s359 + $0xc0] sm:$0xff]
        %v2795 = vld [vmem:[%s359 + $0xc8] sm:$0xff]
        %v2796 = vld [vmem:[%s359 + $0xd0] sm:$0xff]
        %v2797 = vld [vmem:[%s359 + $0xd8] sm:$0xff]
        %v2798 = vld [vmem:[%s359 + $0xe0] sm:$0xff]
        %v2799 = vld [vmem:[%s359 + $0xe8] sm:$0xff]
        %v2800 = vld [vmem:[%s359 + $0xf0] sm:$0xff]
        %v2801 = vld [vmem:[%s359 + $0xf8] sm:$0xff]
        %v2834 = vunpack.c.l.b16 %v2770
        %v2835 = vunpack.c.h.b16 %v2770
        %v2836 = vunpack.c.l.b16 %v2771
        %v2837 = vunpack.c.h.b16 %v2771
        %v2838 = vunpack.c.l.b16 %v2772
        %v2839 = vunpack.c.h.b16 %v2772
        %v2840 = vunpack.c.l.b16 %v2773
        %v2841 = vunpack.c.h.b16 %v2773
        %v2842 = vunpack.c.l.b16 %v2774
        %v2843 = vunpack.c.h.b16 %v2774
        %v2844 = vunpack.c.l.b16 %v2775
        %v2845 = vunpack.c.h.b16 %v2775
        %v2846 = vunpack.c.l.b16 %v2776
        %v2847 = vunpack.c.h.b16 %v2776
        %v2848 = vunpack.c.l.b16 %v2777
        %v2849 = vunpack.c.h.b16 %v2777
        %v2850 = vunpack.c.l.b16 %v2778
        %v2851 = vunpack.c.h.b16 %v2778
        %v2852 = vunpack.c.l.b16 %v2779
        %v2853 = vunpack.c.h.b16 %v2779
        %v2854 = vunpack.c.l.b16 %v2780
        %v2855 = vunpack.c.h.b16 %v2780
        %v2856 = vunpack.c.l.b16 %v2781
        %v2857 = vunpack.c.h.b16 %v2781
        %v2858 = vunpack.c.l.b16 %v2782
        %v2859 = vunpack.c.h.b16 %v2782
        %v2860 = vunpack.c.l.b16 %v2783
        %v2861 = vunpack.c.h.b16 %v2783
        %v2862 = vunpack.c.l.b16 %v2784
        %v2863 = vunpack.c.h.b16 %v2784
        %v2864 = vunpack.c.l.b16 %v2785
        %v2865 = vunpack.c.h.b16 %v2785
        %v2866 = vunpack.c.l.b16 %v2786
        %v2867 = vunpack.c.h.b16 %v2786
        %v2868 = vunpack.c.l.b16 %v2787
        %v2869 = vunpack.c.h.b16 %v2787
        %v2870 = vunpack.c.l.b16 %v2788
        %v2871 = vunpack.c.h.b16 %v2788
        %v2872 = vunpack.c.l.b16 %v2789
        %v2873 = vunpack.c.h.b16 %v2789
        %v2874 = vunpack.c.l.b16 %v2790
        %v2875 = vunpack.c.h.b16 %v2790
        %v2876 = vunpack.c.l.b16 %v2791
        %v2877 = vunpack.c.h.b16 %v2791
        %v2878 = vunpack.c.l.b16 %v2792
        %v2879 = vunpack.c.h.b16 %v2792
        %v2880 = vunpack.c.l.b16 %v2793
        %v2881 = vunpack.c.h.b16 %v2793
        %v2882 = vunpack.c.l.b16 %v2794
        %v2883 = vunpack.c.h.b16 %v2794
        %v2884 = vunpack.c.l.b16 %v2795
        %v2885 = vunpack.c.h.b16 %v2795
        %v2886 = vunpack.c.l.b16 %v2796
        %v2887 = vunpack.c.h.b16 %v2796
        %v2888 = vunpack.c.l.b16 %v2797
        %v2889 = vunpack.c.h.b16 %v2797
        %v2890 = vunpack.c.l.b16 %v2798
        %v2891 = vunpack.c.h.b16 %v2798
        %v2892 = vunpack.c.l.b16 %v2799
        %v2893 = vunpack.c.h.b16 %v2799
        %v2894 = vunpack.c.l.b16 %v2800
        %v2895 = vunpack.c.h.b16 %v2800
        %v2896 = vunpack.c.l.b16 %v2801
        %v2897 = vunpack.c.h.b16 %v2801
        %v2898 = vpack.c.b16 %v2838, %v2834
        %v2899 = vpack.c.b16 %v2839, %v2835
        %v2900 = vpack.c.b16 %v2840, %v2836
        %v2901 = vpack.c.b16 %v2841, %v2837
        %v2902 = vpack.c.b16 %v2846, %v2842
        %v2903 = vpack.c.b16 %v2847, %v2843
        %v2904 = vpack.c.b16 %v2848, %v2844
        %v2905 = vpack.c.b16 %v2849, %v2845
        %v2906 = vpack.c.b16 %v2854, %v2850
        %v2907 = vpack.c.b16 %v2855, %v2851
        %v2908 = vpack.c.b16 %v2856, %v2852
        %v2909 = vpack.c.b16 %v2857, %v2853
        %v2910 = vpack.c.b16 %v2862, %v2858
        %v2911 = vpack.c.b16 %v2863, %v2859
        %v2912 = vpack.c.b16 %v2864, %v2860
        %v2913 = vpack.c.b16 %v2865, %v2861
        %v2914 = vpack.c.b16 %v2870, %v2866
        %v2915 = vpack.c.b16 %v2871, %v2867
        %v2916 = vpack.c.b16 %v2872, %v2868
        %v2917 = vpack.c.b16 %v2873, %v2869
        %v2918 = vpack.c.b16 %v2878, %v2874
        %v2919 = vpack.c.b16 %v2879, %v2875
        %v2920 = vpack.c.b16 %v2880, %v2876
        %v2921 = vpack.c.b16 %v2881, %v2877
        %v2922 = vpack.c.b16 %v2886, %v2882
        %v2923 = vpack.c.b16 %v2887, %v2883
        %v2924 = vpack.c.b16 %v2888, %v2884
        %v2925 = vpack.c.b16 %v2889, %v2885
        %v2926 = vpack.c.b16 %v2894, %v2890
        %v2927 = vpack.c.b16 %v2895, %v2891
        %v2928 = vpack.c.b16 %v2896, %v2892
        %v2929 = vpack.c.b16 %v2897, %v2893
        %2962 = vmatprep.subr.bf16.mxu0 %v2899
        %2963 = vmatpush1.bf16.msra.mxu0 %v2898
        %2964 = vmatprep.subr.bf16.mxu0 %v2903
        %2965 = vmatpush1.bf16.msra.mxu0 %v2902
        %2966 = vmatprep.subr.bf16.mxu0 %v2907
        %2967 = vmatpush1.bf16.msra.mxu0 %v2906
        %2968 = vmatprep.subr.bf16.mxu0 %v2911
        %2969 = vmatpush1.bf16.msra.mxu0 %v2910
        %2970 = vmatprep.subr.bf16.mxu0 %v2915
        %2971 = vmatpush1.bf16.msra.mxu0 %v2914
        %2972 = vmatprep.subr.bf16.mxu0 %v2919
        %2973 = vmatpush1.bf16.msra.mxu0 %v2918
        %2974 = vmatprep.subr.bf16.mxu0 %v2923
        %2975 = vmatpush1.bf16.msra.mxu0 %v2922
        %2976 = vmatprep.subr.bf16.mxu0 %v2927
        %2977 = vmatpush1.bf16.msra.mxu0 %v2926
        %2978 = vmatprep.subr.bf16.mxu0 0
        %2979 = vmatpush1.bf16.msra.mxu0 0
        %2980 = vmatprep.subr.bf16.mxu0 0
        %2981 = vmatpush1.bf16.msra.mxu0 0
        %2982 = vmatprep.subr.bf16.mxu0 0
        %2983 = vmatpush1.bf16.msra.mxu0 0
        %2984 = vmatprep.subr.bf16.mxu0 0
        %2985 = vmatpush1.bf16.msra.mxu0 0
        %2986 = vmatprep.subr.bf16.mxu0 0
        %2987 = vmatpush1.bf16.msra.mxu0 0
        %2988 = vmatprep.subr.bf16.mxu0 0
        %2989 = vmatpush1.bf16.msra.mxu0 0
        %2990 = vmatprep.subr.bf16.mxu0 0
        %2991 = vmatpush1.bf16.msra.mxu0 0
        %2992 = vmatprep.subr.bf16.mxu0 0
        %2993 = vmatpush1.bf16.msra.mxu0 0
        %2994 = vmatprep.mubr.bf16.mxu0 0
        %2995 = vmatmul.mubr.bf16.gmra.mrb[0].mxu0 %v2769
        %v2996 = vpop.f32.mrb[0].mxu0
        %v2997 = vadd.f32 0.0, %v2996
        %v2998 = vpop.f32.mrb[0].mxu0
        %v2999 = vadd.f32 0.0, %v2998
        %v3000 = vpop.f32.mrb[0].mxu0
        %v3001 = vpop.f32.mrb[0].mxu0
        %3002 = vdwg.mxu0
        %3003 = vmatprep.subr.bf16.mxu0 %v2901
        %3004 = vmatpush1.bf16.msra.mxu0 %v2900
        %3005 = vmatprep.subr.bf16.mxu0 %v2905
        %3006 = vmatpush1.bf16.msra.mxu0 %v2904
        %3007 = vmatprep.subr.bf16.mxu0 %v2909
        %3008 = vmatpush1.bf16.msra.mxu0 %v2908
        %3009 = vmatprep.subr.bf16.mxu0 %v2913
        %3010 = vmatpush1.bf16.msra.mxu0 %v2912
        %3011 = vmatprep.subr.bf16.mxu0 %v2917
        %3012 = vmatpush1.bf16.msra.mxu0 %v2916
        %3013 = vmatprep.subr.bf16.mxu0 %v2921
        %3014 = vmatpush1.bf16.msra.mxu0 %v2920
        %3015 = vmatprep.subr.bf16.mxu0 %v2925
        %3016 = vmatpush1.bf16.msra.mxu0 %v2924
        %3017 = vmatprep.subr.bf16.mxu0 %v2929
        %3018 = vmatpush1.bf16.msra.mxu0 %v2928
        %3019 = vmatprep.subr.bf16.mxu0 0
        %3020 = vmatpush1.bf16.msra.mxu0 0
        %3021 = vmatprep.subr.bf16.mxu0 0
        %3022 = vmatpush1.bf16.msra.mxu0 0
        %3023 = vmatprep.subr.bf16.mxu0 0
        %3024 = vmatpush1.bf16.msra.mxu0 0
        %3025 = vmatprep.subr.bf16.mxu0 0
        %3026 = vmatpush1.bf16.msra.mxu0 0
        %3027 = vmatprep.subr.bf16.mxu0 0
        %3028 = vmatpush1.bf16.msra.mxu0 0
        %3029 = vmatprep.subr.bf16.mxu0 0
        %3030 = vmatpush1.bf16.msra.mxu0 0
        %3031 = vmatprep.subr.bf16.mxu0 0
        %3032 = vmatpush1.bf16.msra.mxu0 0
        %3033 = vmatprep.subr.bf16.mxu0 0
        %3034 = vmatpush1.bf16.msra.mxu0 0
        %3035 = vmatprep.mubr.bf16.mxu0 0
        %3036 = vmatmul.mubr.bf16.gmra.mrb[0].mxu0 %v2769
        %v3037 = vpop.f32.mrb[0].mxu0
        %v3038 = vadd.f32 0.0, %v3037
        %v3039 = vpop.f32.mrb[0].mxu0
        %v3040 = vadd.f32 0.0, %v3039
        %v3041 = vpop.f32.mrb[0].mxu0
        %v3042 = vpop.f32.mrb[0].mxu0
        %3043 = vdwg.mxu0
        %v3044 = vadd.f32 %v2765, %v2997
        %v3045 = vadd.f32 %v2766, %v2999
        %v3046 = vadd.f32 %v2767, %v3038
        %v3047 = vadd.f32 %v2768, %v3040
        %v3048 = vxor.u32 %v3044, 2147483648
        %v3049 = vmul.f32 %v3048, 1.442695
        %v3050 = vpow.pop %v3049
        %v3051 = vadd.f32 %v3050, 1.0
        %v3052 = vrcp.pop %v3051
        %v3053 = vmul.f32 1.0, %v3052
        %v3054 = vxor.u32 %v3045, 2147483648
        %v3055 = vmul.f32 %v3054, 1.442695
        %v3056 = vpow.pop %v3055
        %v3057 = vadd.f32 %v3056, 1.0
        %v3058 = vrcp.pop %v3057
        %v3059 = vmul.f32 1.0, %v3058
        %v3060 = vtanh.pop %v3046
        %v3061 = vxor.u32 %v3047, 2147483648
        %v3062 = vmul.f32 %v3061, 1.442695
        %v3063 = vpow.pop %v3062
        %v3064 = vadd.f32 %v3063, 1.0
        %v3065 = vrcp.pop %v3064
        %v3066 = vmul.f32 1.0, %v3065
        %v3067 = vmul.f32 %v3059, %v2752
        %v3068 = vmul.f32 %v3053, %v3060
        %v3069 = vadd.f32 %v3067, %v3068
        %v3070 = vtanh.pop %v3069
        %v3071 = vmul.f32 %v3066, %v3070
        %s3072 = scalar_lea.vmem %s397, %s2759 [#allocation11]
        %3073 = vst [vmem:[%s3072] sm:$0xff] %v3071
        %s3074 = smul.u32 %s34, 4294967289
        %s3075 = sadd.s32 %s3074, 7
        %s3076 = smul.u32 %s3075, 8
        %s3077 = sshra.s32 %s3076, 3
        %s3078 = sand.u32 %s3076, 7
        %s3079 = smul.u32 %s3077, 4
        %s3080 = smul.addr %s3079, 8
        %s3081 = scalar_lea.vmem [#allocation2], %s3080
        %v3082 = vld [vmem:[%s3081] sm:$0xff]
        %v3083 = vld [vmem:[%s3081 + $0x8] sm:$0xff]
        %v3084 = vld [vmem:[%s3081 + $0x10] sm:$0xff]
        %v3085 = vld [vmem:[%s3081 + $0x18] sm:$0xff]
        %v3086 = vpack.c.bf16 %v3071, %v3071
        %v3087 = vld [vmem:[%s359] sm:$0xff]
        %v3088 = vld [vmem:[%s359 + $0x8] sm:$0xff]
        %v3089 = vld [vmem:[%s359 + $0x10] sm:$0xff]
        %v3090 = vld [vmem:[%s359 + $0x18] sm:$0xff]
        %v3091 = vld [vmem:[%s359 + $0x20] sm:$0xff]
        %v3092 = vld [vmem:[%s359 + $0x28] sm:$0xff]
        %v3093 = vld [vmem:[%s359 + $0x30] sm:$0xff]
        %v3094 = vld [vmem:[%s359 + $0x38] sm:$0xff]
        %v3095 = vld [vmem:[%s359 + $0x40] sm:$0xff]
        %v3096 = vld [vmem:[%s359 + $0x48] sm:$0xff]
        %v3097 = vld [vmem:[%s359 + $0x50] sm:$0xff]
        %v3098 = vld [vmem:[%s359 + $0x58] sm:$0xff]
        %v3099 = vld [vmem:[%s359 + $0x60] sm:$0xff]
        %v3100 = vld [vmem:[%s359 + $0x68] sm:$0xff]
        %v3101 = vld [vmem:[%s359 + $0x70] sm:$0xff]
        %v3102 = vld [vmem:[%s359 + $0x78] sm:$0xff]
        %v3103 = vld [vmem:[%s359 + $0x80] sm:$0xff]
        %v3104 = vld [vmem:[%s359 + $0x88] sm:$0xff]
        %v3105 = vld [vmem:[%s359 + $0x90] sm:$0xff]
        %v3106 = vld [vmem:[%s359 + $0x98] sm:$0xff]
        %v3107 = vld [vmem:[%s359 + $0xa0] sm:$0xff]
        %v3108 = vld [vmem:[%s359 + $0xa8] sm:$0xff]
        %v3109 = vld [vmem:[%s359 + $0xb0] sm:$0xff]
        %v3110 = vld [vmem:[%s359 + $0xb8] sm:$0xff]
        %v3111 = vld [vmem:[%s359 + $0xc0] sm:$0xff]
        %v3112 = vld [vmem:[%s359 + $0xc8] sm:$0xff]
        %v3113 = vld [vmem:[%s359 + $0xd0] sm:$0xff]
        %v3114 = vld [vmem:[%s359 + $0xd8] sm:$0xff]
        %v3115 = vld [vmem:[%s359 + $0xe0] sm:$0xff]
        %v3116 = vld [vmem:[%s359 + $0xe8] sm:$0xff]
        %v3117 = vld [vmem:[%s359 + $0xf0] sm:$0xff]
        %v3118 = vld [vmem:[%s359 + $0xf8] sm:$0xff]
        %v3151 = vunpack.c.l.b16 %v3087
        %v3152 = vunpack.c.h.b16 %v3087
        %v3153 = vunpack.c.l.b16 %v3088
        %v3154 = vunpack.c.h.b16 %v3088
        %v3155 = vunpack.c.l.b16 %v3089
        %v3156 = vunpack.c.h.b16 %v3089
        %v3157 = vunpack.c.l.b16 %v3090
        %v3158 = vunpack.c.h.b16 %v3090
        %v3159 = vunpack.c.l.b16 %v3091
        %v3160 = vunpack.c.h.b16 %v3091
        %v3161 = vunpack.c.l.b16 %v3092
        %v3162 = vunpack.c.h.b16 %v3092
        %v3163 = vunpack.c.l.b16 %v3093
        %v3164 = vunpack.c.h.b16 %v3093
        %v3165 = vunpack.c.l.b16 %v3094
        %v3166 = vunpack.c.h.b16 %v3094
        %v3167 = vunpack.c.l.b16 %v3095
        %v3168 = vunpack.c.h.b16 %v3095
        %v3169 = vunpack.c.l.b16 %v3096
        %v3170 = vunpack.c.h.b16 %v3096
        %v3171 = vunpack.c.l.b16 %v3097
        %v3172 = vunpack.c.h.b16 %v3097
        %v3173 = vunpack.c.l.b16 %v3098
        %v3174 = vunpack.c.h.b16 %v3098
        %v3175 = vunpack.c.l.b16 %v3099
        %v3176 = vunpack.c.h.b16 %v3099
        %v3177 = vunpack.c.l.b16 %v3100
        %v3178 = vunpack.c.h.b16 %v3100
        %v3179 = vunpack.c.l.b16 %v3101
        %v3180 = vunpack.c.h.b16 %v3101
        %v3181 = vunpack.c.l.b16 %v3102
        %v3182 = vunpack.c.h.b16 %v3102
        %v3183 = vunpack.c.l.b16 %v3103
        %v3184 = vunpack.c.h.b16 %v3103
        %v3185 = vunpack.c.l.b16 %v3104
        %v3186 = vunpack.c.h.b16 %v3104
        %v3187 = vunpack.c.l.b16 %v3105
        %v3188 = vunpack.c.h.b16 %v3105
        %v3189 = vunpack.c.l.b16 %v3106
        %v3190 = vunpack.c.h.b16 %v3106
        %v3191 = vunpack.c.l.b16 %v3107
        %v3192 = vunpack.c.h.b16 %v3107
        %v3193 = vunpack.c.l.b16 %v3108
        %v3194 = vunpack.c.h.b16 %v3108
        %v3195 = vunpack.c.l.b16 %v3109
        %v3196 = vunpack.c.h.b16 %v3109
        %v3197 = vunpack.c.l.b16 %v3110
        %v3198 = vunpack.c.h.b16 %v3110
        %v3199 = vunpack.c.l.b16 %v3111
        %v3200 = vunpack.c.h.b16 %v3111
        %v3201 = vunpack.c.l.b16 %v3112
        %v3202 = vunpack.c.h.b16 %v3112
        %v3203 = vunpack.c.l.b16 %v3113
        %v3204 = vunpack.c.h.b16 %v3113
        %v3205 = vunpack.c.l.b16 %v3114
        %v3206 = vunpack.c.h.b16 %v3114
        %v3207 = vunpack.c.l.b16 %v3115
        %v3208 = vunpack.c.h.b16 %v3115
        %v3209 = vunpack.c.l.b16 %v3116
        %v3210 = vunpack.c.h.b16 %v3116
        %v3211 = vunpack.c.l.b16 %v3117
        %v3212 = vunpack.c.h.b16 %v3117
        %v3213 = vunpack.c.l.b16 %v3118
        %v3214 = vunpack.c.h.b16 %v3118
        %v3215 = vpack.c.b16 %v3155, %v3151
        %v3216 = vpack.c.b16 %v3156, %v3152
        %v3217 = vpack.c.b16 %v3157, %v3153
        %v3218 = vpack.c.b16 %v3158, %v3154
        %v3219 = vpack.c.b16 %v3163, %v3159
        %v3220 = vpack.c.b16 %v3164, %v3160
        %v3221 = vpack.c.b16 %v3165, %v3161
        %v3222 = vpack.c.b16 %v3166, %v3162
        %v3223 = vpack.c.b16 %v3171, %v3167
        %v3224 = vpack.c.b16 %v3172, %v3168
        %v3225 = vpack.c.b16 %v3173, %v3169
        %v3226 = vpack.c.b16 %v3174, %v3170
        %v3227 = vpack.c.b16 %v3179, %v3175
        %v3228 = vpack.c.b16 %v3180, %v3176
        %v3229 = vpack.c.b16 %v3181, %v3177
        %v3230 = vpack.c.b16 %v3182, %v3178
        %v3231 = vpack.c.b16 %v3187, %v3183
        %v3232 = vpack.c.b16 %v3188, %v3184
        %v3233 = vpack.c.b16 %v3189, %v3185
        %v3234 = vpack.c.b16 %v3190, %v3186
        %v3235 = vpack.c.b16 %v3195, %v3191
        %v3236 = vpack.c.b16 %v3196, %v3192
        %v3237 = vpack.c.b16 %v3197, %v3193
        %v3238 = vpack.c.b16 %v3198, %v3194
        %v3239 = vpack.c.b16 %v3203, %v3199
        %v3240 = vpack.c.b16 %v3204, %v3200
        %v3241 = vpack.c.b16 %v3205, %v3201
        %v3242 = vpack.c.b16 %v3206, %v3202
        %v3243 = vpack.c.b16 %v3211, %v3207
        %v3244 = vpack.c.b16 %v3212, %v3208
        %v3245 = vpack.c.b16 %v3213, %v3209
        %v3246 = vpack.c.b16 %v3214, %v3210
        %3279 = vmatprep.subr.bf16.mxu0 %v3216
        %3280 = vmatpush1.bf16.msra.mxu0 %v3215
        %3281 = vmatprep.subr.bf16.mxu0 %v3220
        %3282 = vmatpush1.bf16.msra.mxu0 %v3219
        %3283 = vmatprep.subr.bf16.mxu0 %v3224
        %3284 = vmatpush1.bf16.msra.mxu0 %v3223
        %3285 = vmatprep.subr.bf16.mxu0 %v3228
        %3286 = vmatpush1.bf16.msra.mxu0 %v3227
        %3287 = vmatprep.subr.bf16.mxu0 %v3232
        %3288 = vmatpush1.bf16.msra.mxu0 %v3231
        %3289 = vmatprep.subr.bf16.mxu0 %v3236
        %3290 = vmatpush1.bf16.msra.mxu0 %v3235
        %3291 = vmatprep.subr.bf16.mxu0 %v3240
        %3292 = vmatpush1.bf16.msra.mxu0 %v3239
        %3293 = vmatprep.subr.bf16.mxu0 %v3244
        %3294 = vmatpush1.bf16.msra.mxu0 %v3243
        %3295 = vmatprep.subr.bf16.mxu0 0
        %3296 = vmatpush1.bf16.msra.mxu0 0
        %3297 = vmatprep.subr.bf16.mxu0 0
        %3298 = vmatpush1.bf16.msra.mxu0 0
        %3299 = vmatprep.subr.bf16.mxu0 0
        %3300 = vmatpush1.bf16.msra.mxu0 0
        %3301 = vmatprep.subr.bf16.mxu0 0
        %3302 = vmatpush1.bf16.msra.mxu0 0
        %3303 = vmatprep.subr.bf16.mxu0 0
        %3304 = vmatpush1.bf16.msra.mxu0 0
        %3305 = vmatprep.subr.bf16.mxu0 0
        %3306 = vmatpush1.bf16.msra.mxu0 0
        %3307 = vmatprep.subr.bf16.mxu0 0
        %3308 = vmatpush1.bf16.msra.mxu0 0
        %3309 = vmatprep.subr.bf16.mxu0 0
        %3310 = vmatpush1.bf16.msra.mxu0 0
        %3311 = vmatprep.mubr.bf16.mxu0 0
        %3312 = vmatmul.mubr.bf16.gmra.mrb[0].mxu0 %v3086
        %v3313 = vpop.f32.mrb[0].mxu0
        %v3314 = vadd.f32 0.0, %v3313
        %v3315 = vpop.f32.mrb[0].mxu0
        %v3316 = vadd.f32 0.0, %v3315
        %v3317 = vpop.f32.mrb[0].mxu0
        %v3318 = vpop.f32.mrb[0].mxu0
        %3319 = vdwg.mxu0
        %3320 = vmatprep.subr.bf16.mxu0 %v3218
        %3321 = vmatpush1.bf16.msra.mxu0 %v3217
        %3322 = vmatprep.subr.bf16.mxu0 %v3222
        %3323 = vmatpush1.bf16.msra.mxu0 %v3221
        %3324 = vmatprep.subr.bf16.mxu0 %v3226
        %3325 = vmatpush1.bf16.msra.mxu0 %v3225
        %3326 = vmatprep.subr.bf16.mxu0 %v3230
        %3327 = vmatpush1.bf16.msra.mxu0 %v3229
        %3328 = vmatprep.subr.bf16.mxu0 %v3234
        %3329 = vmatpush1.bf16.msra.mxu0 %v3233
        %3330 = vmatprep.subr.bf16.mxu0 %v3238
        %3331 = vmatpush1.bf16.msra.mxu0 %v3237
        %3332 = vmatprep.subr.bf16.mxu0 %v3242
        %3333 = vmatpush1.bf16.msra.mxu0 %v3241
        %3334 = vmatprep.subr.bf16.mxu0 %v3246
        %3335 = vmatpush1.bf16.msra.mxu0 %v3245
        %3336 = vmatprep.subr.bf16.mxu0 0
        %3337 = vmatpush1.bf16.msra.mxu0 0
        %3338 = vmatprep.subr.bf16.mxu0 0
        %3339 = vmatpush1.bf16.msra.mxu0 0
        %3340 = vmatprep.subr.bf16.mxu0 0
        %3341 = vmatpush1.bf16.msra.mxu0 0
        %3342 = vmatprep.subr.bf16.mxu0 0
        %3343 = vmatpush1.bf16.msra.mxu0 0
        %3344 = vmatprep.subr.bf16.mxu0 0
        %3345 = vmatpush1.bf16.msra.mxu0 0
        %3346 = vmatprep.subr.bf16.mxu0 0
        %3347 = vmatpush1.bf16.msra.mxu0 0
        %3348 = vmatprep.subr.bf16.mxu0 0
        %3349 = vmatpush1.bf16.msra.mxu0 0
        %3350 = vmatprep.subr.bf16.mxu0 0
        %3351 = vmatpush1.bf16.msra.mxu0 0
        %3352 = vmatprep.mubr.bf16.mxu0 0
        %3353 = vmatmul.mubr.bf16.gmra.mrb[0].mxu0 %v3086
        %v3354 = vpop.f32.mrb[0].mxu0
        %v3355 = vadd.f32 0.0, %v3354
        %v3356 = vpop.f32.mrb[0].mxu0
        %v3357 = vadd.f32 0.0, %v3356
        %v3358 = vpop.f32.mrb[0].mxu0
        %v3359 = vpop.f32.mrb[0].mxu0
        %3360 = vdwg.mxu0
        %v3361 = vadd.f32 %v3082, %v3314
        %v3362 = vadd.f32 %v3083, %v3316
        %v3363 = vadd.f32 %v3084, %v3355
        %v3364 = vadd.f32 %v3085, %v3357
        %v3365 = vxor.u32 %v3361, 2147483648
        %v3366 = vmul.f32 %v3365, 1.442695
        %v3367 = vpow.pop %v3366
        %v3368 = vadd.f32 %v3367, 1.0
        %v3369 = vrcp.pop %v3368
        %v3370 = vmul.f32 1.0, %v3369
        %v3371 = vxor.u32 %v3362, 2147483648
        %v3372 = vmul.f32 %v3371, 1.442695
        %v3373 = vpow.pop %v3372
        %v3374 = vadd.f32 %v3373, 1.0
        %v3375 = vrcp.pop %v3374
        %v3376 = vmul.f32 1.0, %v3375
        %v3377 = vtanh.pop %v3363
        %v3378 = vxor.u32 %v3364, 2147483648
        %v3379 = vmul.f32 %v3378, 1.442695
        %v3380 = vpow.pop %v3379
        %v3381 = vadd.f32 %v3380, 1.0
        %v3382 = vrcp.pop %v3381
        %v3383 = vmul.f32 1.0, %v3382
        %v3384 = vmul.f32 %v3376, %v3069
        %v3385 = vmul.f32 %v3370, %v3377
        %v3386 = vadd.f32 %v3384, %v3385
        %v3387 = vtanh.pop %v3386
        %v3388 = vmul.f32 %v3383, %v3387
        %s3389 = scalar_lea.vmem %s397, %s3076 [#allocation11]
        %3390 = vst [vmem:[%s3389] sm:$0xff] %v3388
        %3391 = vst [vmem:[#allocation3] sm:$0xff] %v3388
        %3392 = vst [vmem:[#allocation4] sm:$0xff] %v3386
        // Predicated region
        $region53: #{tpu_custom_call.1} parent=35 // pred_check
          %p3393 = pneg %p427
        $region54: #{tpu_custom_call.1} parent=35 // pred_check_branch
          %3395 = sbr.rel (%p3393) target = $region56
        $region55: #{tpu_custom_call.1} parent=35 // pred_region
          %3396 = vst [vmem:[%s404] sm:$0xff] %v3388
          %3397 = vst [vmem:[%s411] sm:$0xff] %v3386
        $region56: #{tpu_custom_call.1} parent=35 // pred_fallthru
          _
        %s3398 = sand.u32 %s172, 1
        %s3399 = scalar_lea.sflag [#allocation7], %s3398
        %s3400 = sand.u32 %s172, 1
        %s3401 = smul.addr %s3400, 64
        %s3402 = scalar_lea.vmem [#allocation11], %s3401
        %s3403 = sand.u32 %s30, 1
        %s3404 = scalar_lea.sflag [#allocation13], %s3403
        %s3405 = sand.u32 %s198, 1
        %s3406 = smul.addr %s3405, 8
        %s3407 = scalar_lea.vmem [#allocation12], %s3406
        %s3408 = sand.u32 %s30, 1
        %s3409 = scalar_lea.sflag [#allocation13], %s3408
        %s3410 = sand.u32 %s224, 1
        %s3411 = smul.addr %s3410, 8
        %s3412 = scalar_lea.vmem [#allocation14], %s3411
        // Predicated region
        $region57: #{tpu_custom_call.1} parent=35 // pred_check
          %p3413 = pneg %p182
        $region58: #{tpu_custom_call.1} parent=35 // pred_check_branch
          %3415 = sbr.rel (%p3413) target = $region60
        $region59: #{tpu_custom_call.1} parent=35 // pred_region
          %s3416 = smul.u32 %s35, 2
          %s3417 = ssub.s32 0, %s3416
          %s3418 = smul.u32 %s34, %s3417
          %s3419 = sadd.s32 %s35, %s3418
          %s3420 = smul.u32 8, %s3419
          %s3422 = ssub.s32 1024, 1024
          %3423 = vsyncadd %s3399, %s3422
          %s3424 = smul.addr %s34, 8
          %s3425 = sadd.s32 %s3420, %s3424
          %s3426 = smul.addr %s3425, 128
          %s3427 = scalar_lea.hbm %s4, %s3426
          %s3428 = sshll.u32 %s3402, 4
          %s3429 = int_to_ptr.vmem [resolvable:$true] %s3428
          %3434 = dma.vmem_to_hbm [thread:$0]  %s3429, 1024, %s3427, %s3399, 128, 128, 8
        $region60: #{tpu_custom_call.1} parent=35 // pred_fallthru
          _
        // Predicated region
        $region61: #{tpu_custom_call.1} parent=35 // pred_check
          %p3435 = pneg %p208
        $region62: #{tpu_custom_call.1} parent=35 // pred_check_branch
          %3437 = sbr.rel (%p3435) target = $region64
        $region63: #{tpu_custom_call.1} parent=35 // pred_region
          %s3439 = ssub.s32 128, 128
          %3440 = vsyncadd %s3404, %s3439
          %s3441 = smul.addr %s34, 128
          %s3442 = scalar_lea.hbm %s5, %s3441
          %s3444 = sshll.u32 %s3407, 4
          %s3445 = int_to_ptr.vmem [resolvable:$true] %s3444
          %3447 = dma.vmem_to_hbm [thread:$0]  %s3445, 128, %s3442, %s3404
        $region64: #{tpu_custom_call.1} parent=35 // pred_fallthru
          _
        // Predicated region
        $region65: #{tpu_custom_call.1} parent=35 // pred_check
          %p3448 = pneg %p234
        $region66: #{tpu_custom_call.1} parent=35 // pred_check_branch
          %3450 = sbr.rel (%p3448) target = $region68
        $region67: #{tpu_custom_call.1} parent=35 // pred_region
          %s3452 = ssub.s32 128, 128
          %3453 = vsyncadd %s3409, %s3452
          %s3454 = smul.addr %s34, 128
          %s3455 = scalar_lea.hbm %s6, %s3454
          %s3457 = sshll.u32 %s3412, 4
          %s3458 = int_to_ptr.vmem [resolvable:$true] %s3457
          %3460 = dma.vmem_to_hbm [thread:$0]  %s3458, 128, %s3455, %s3409
        $region68: #{tpu_custom_call.1} parent=35 // pred_fallthru
          _
      $region36: #{tpu_custom_call.1} parent=5 // pred_fallthru
        _
      %p3461 = scmp.le.s32.totalorder 2, %s25
      // Predicated region
      $region69: #{tpu_custom_call.1} parent=5 // pred_check
        %p3462 = pneg %p3461
      $region70: #{tpu_custom_call.1} parent=5 // pred_check_branch
        %3464 = sbr.rel (%p3462) target = $region72
      $region71: #{tpu_custom_call.1} parent=5 // pred_region
        %s3465 = ssub.s32 %s25, 2
        // Predicated region
        $region73: #{tpu_custom_call.1} parent=71 // pred_check
          %p3466 = pneg %p188
        $region74: #{tpu_custom_call.1} parent=71 // pred_check_branch
          %3468 = sbr.rel (%p3466) target = $region76
        $region75: #{tpu_custom_call.1} parent=71 // pred_region
          %s3469 = sand.u32 %s173, 1
          %s3470 = scalar_lea.sflag [#allocation7], %s3469
          %s3471 = sand.u32 %s173, 1
          %s3472 = smul.addr %s3471, 64
          %s3473 = scalar_lea.vmem [#allocation11], %s3472
          %3474 = dma.done %s3470, 1024
        $region76: #{tpu_custom_call.1} parent=71 // pred_fallthru
          _
        // Predicated region
        $region77: #{tpu_custom_call.1} parent=71 // pred_check
          %p3475 = pneg %p214
        $region78: #{tpu_custom_call.1} parent=71 // pred_check_branch
          %3477 = sbr.rel (%p3475) target = $region80
        $region79: #{tpu_custom_call.1} parent=71 // pred_region
          %s3478 = sand.u32 %s31, 1
          %s3479 = scalar_lea.sflag [#allocation13], %s3478
          %s3480 = sand.u32 %s199, 1
          %s3481 = smul.addr %s3480, 8
          %s3482 = scalar_lea.vmem [#allocation12], %s3481
          %3483 = dma.done %s3479, 128
        $region80: #{tpu_custom_call.1} parent=71 // pred_fallthru
          _
        // Predicated region
        $region81: #{tpu_custom_call.1} parent=71 // pred_check
          %p3484 = pneg %p240
        $region82: #{tpu_custom_call.1} parent=71 // pred_check_branch
          %3486 = sbr.rel (%p3484) target = $region84
        $region83: #{tpu_custom_call.1} parent=71 // pred_region
          %s3487 = sand.u32 %s31, 1
          %s3488 = scalar_lea.sflag [#allocation13], %s3487
          %s3489 = sand.u32 %s225, 1
          %s3490 = smul.addr %s3489, 8
          %s3491 = scalar_lea.vmem [#allocation14], %s3490
          %3492 = dma.done %s3488, 128
        $region84: #{tpu_custom_call.1} parent=71 // pred_fallthru
          _
      $region72: #{tpu_custom_call.1} parent=5 // pred_fallthru
        _
    $region6: #{tpu_custom_call.1} parent=1 // loop_footer
      %s29 = sadd.s32 1, %s25
    $region7: #{tpu_custom_call.1} parent=1 // loop_footer_branch
      %24 = sbr.rel target = $region3
    $region8: #{tpu_custom_call.1} parent=1 // loop_exit
      _
    %3493 = vsyncpa [#allocation6], 1
    %s3494 = scalar_lea.sflag [#allocation6], 1
    %3495 = vsyncpa %s3494, 1
    %3496 = vsyncpa [#allocation9], 1
    %s3497 = scalar_lea.sflag [#allocation9], 1
    %3498 = vsyncpa %s3497, 1
    %3499 = vsyncpa [#allocation7], 1
    %s3500 = scalar_lea.sflag [#allocation7], 1
    %3501 = vsyncpa %s3500, 1
    %3502 = vsyncpa [#allocation13], 1
    %s3503 = scalar_lea.sflag [#allocation13], 1
    %3504 = vsyncpa %s3503, 1

</llo_original>
